<compile_context>
chip_gen: v7x
topology: tpu7x:2x2x1
jax: 0.10.0
libtpu: 0.0.40
codegen_flags: <defaults>
</compile_context>

<pallas_src>
import functools

import jax
import jax.numpy as jnp
from jax import lax
from jax.experimental import pallas as pl
from jax.experimental.pallas import tpu as pltpu

EPS = 1e-5
LANE = 128
_FUSED_BYTES_MAX = 1 * 1024 * 1024  # padded-activation f32 bytes for fused path


def _round_up(x, m):
    return (x + m - 1) // m * m


def _pick_tl(length, target, min_tiles=1):
    """Largest divisor of `length` <= target, preferring multiples of 128
    (lane-dense f32/bf16 tiles), then 16/8.  Tries to yield >= min_tiles tiles
    so both v7x TensorCores get work."""
    best = None
    for align in (128, 16, 8):
        for t in range(min(length, target), align - 1, -1):
            if length % t == 0 and t % align == 0:
                if length // t >= min_tiles:
                    return t
                if best is None:
                    best = t
    return best if best is not None else length
    # TODO(synk): ragged / masked last tiles for lengths with no multiple-of-8
    # divisor (prime or odd L).


# --------------------------------- kernels ---------------------------------
def _conv_stats_kernel(x_ref, halo_ref, w_ref, scale_ref, shift_ref,
                       y_ref, edge_ref, s_ref, *, apply_pre_bn_relu, tl):
    """One (batch, L-tile) step: optional folded BN+ReLU on the input tile,
    1x3 conv as three accumulating (Cp,Cp) bf16 MXU matmuls, per-tile
    (sum, sum^2) stats and the tile's boundary rows (for the next phase)."""
    x = x_ref[0].astype(jnp.float32)                       # (TL, Cp)
    if apply_pre_bn_relu:                                  # folded bn1 + relu
        x = jnp.maximum(x * scale_ref[...] + shift_ref[...], 0.0)

    # Halo slab is resident per batch row; pick this tile's (left, right) rows.
    halo = halo_ref[0, pl.program_id(1)]                   # (2, Cp) f32
    left = halo[0:1, :]
    right = halo[1:2, :]

    # Shifted taps via sublane roll (XLU) + boundary-row fixup (VPU work that
    # hides under the HBM-bound pipeline).
    rows = lax.broadcasted_iota(jnp.int32, x.shape, 0)
    x_prev = jnp.where(rows == 0, left, pltpu.roll(x, shift=1, axis=0))
    x_next = jnp.where(rows == tl - 1, right, pltpu.roll(x, shift=tl - 1, axis=0))

    # Three accumulating MXU matmuls (bf16 in, f32 acc) -- no im2col concat.
    y = jnp.dot(x_prev.astype(jnp.bfloat16), w_ref[0],
                preferred_element_type=jnp.float32)
    y += jnp.dot(x.astype(jnp.bfloat16), w_ref[1],
                 preferred_element_type=jnp.float32)
    y += jnp.dot(x_next.astype(jnp.bfloat16), w_ref[2],
                 preferred_element_type=jnp.float32)

    y_ref[0] = y.astype(y_ref.dtype)                       # bf16 store

    # Tile boundary rows of y (f32) -> phase-2 halo construction.
    edge_ref[0, 0] = jnp.concatenate([y[0:1, :], y[tl - 1:tl, :]], axis=0)
    # Per-tile partial BN stats: row0 = sum, row1 = sum of squares (f32).
    s_ref[0, 0] = jnp.concatenate([jnp.sum(y, axis=0, keepdims=True),
                                   jnp.sum(y * y, axis=0, keepdims=True)],
                                  axis=0)


def _bn_add_relu_kernel(y_ref, res_ref, scale_ref, shift_ref, o_ref):
    """Elementwise: relu(bn2(y) + residual), with bn2 folded to scale/shift."""
    y = y_ref[0].astype(jnp.float32)
    r = res_ref[0]
    o_ref[0] = jnp.maximum(y * scale_ref[...] + shift_ref[...] + r,
                           0.0).astype(o_ref.dtype)


def _fused_block_kernel(x_ref, w1_ref, w2_ref, g1_ref, b1_ref, g2_ref, b2_ref,
                        o_ref, *, n, l, cp):
    """Whole block in one kernel (small problems): x/y1/y2 never leave VMEM."""
    cnt = float(n * l)
    x3 = x_ref[...]                                        # (n, l, Cp) f32

    def conv(z3, w_ref_):
        zero = jnp.zeros((n, 1, cp), jnp.float32)
        zp = jnp.concatenate([zero, z3[:, :l - 1, :]], axis=1)   # x[l-1], 0-pad
        zn = jnp.concatenate([z3[:, 1:, :], zero], axis=1)       # x[l+1], 0-pad

        def mm(a3, k):
            return jnp.dot(a3.reshape(n * l, cp).astype(jnp.bfloat16),
                           w_ref_[k], preferred_element_type=jnp.float32)

        return mm(zp, 0) + mm(z3, 1) + mm(zn, 2)           # (n*l, Cp) f32

    def bn(y2d, g, b):
        mean = jnp.sum(y2d, axis=0, keepdims=True) / cnt
        var = jnp.sum(y2d * y2d, axis=0, keepdims=True) / cnt - mean * mean
        scale = g * lax.rsqrt(var + EPS)
        return y2d * scale + (b - mean * scale)

    y1 = conv(x3, w1_ref)
    z = jnp.maximum(bn(y1, g1_ref[...], b1_ref[...]), 0.0)
    y2 = conv(z.reshape(n, l, cp), w2_ref)
    out = jnp.maximum(bn(y2, g2_ref[...], b2_ref[...]) + x3.reshape(n * l, cp),
                      0.0)
    o_ref[...] = out.reshape(n, l, cp)


# ------------------------------ wrapper helpers ------------------------------
def _tap_weights(w_pt, cp):
    """PyTorch (Cout, Cin, 3) -> lane-padded per-tap weights (3, Cp, Cp) bf16."""
    cout, cin, _ = w_pt.shape
    wt = jnp.transpose(w_pt, (2, 1, 0)).astype(jnp.float32)   # (3, Cin, Cout)
    wt = jnp.pad(wt, ((0, 0), (0, cp - cin), (0, cp - cout)))
    return wt.astype(jnp.bfloat16)


def _pad_affine(v, cp):
    return jnp.pad(v.astype(jnp.float32), (0, cp - v.shape[0])).reshape(1, cp)


def _make_halos(x, tl):
    """Per-tile (left, right) neighbour rows of x; zeros at sequence
    boundaries (== the conv's zero padding).  Shape (N, nt, 2, Cp)."""
    n, l, cp = x.shape
    zero = jnp.zeros((n, 1, cp), x.dtype)
    lefts = jnp.concatenate([zero, x[:, tl - 1:l - 1:tl, :]], axis=1)
    rights = jnp.concatenate([x[:, tl:l:tl, :], zero], axis=1)
    return jnp.stack([lefts, rights], axis=2)


def _stats_to_affine(s, gamma, beta, count):
    """(sum, sum^2) partials -> folded BN scale/shift (biased var, f32)."""
    tot = jnp.sum(s, axis=(0, 1))                  # (2, Cp)
    mean = tot[0] / count
    var = tot[1] / count - mean * mean
    scale = gamma * lax.rsqrt(var + EPS)           # (1, Cp)
    shift = beta - mean * scale
    return scale, shift


_TILED_PARAMS = pltpu.CompilerParams(
    dimension_semantics=("parallel", "parallel"),
    vmem_limit_bytes=32 * 1024 * 1024)
_FUSED_PARAMS = pltpu.CompilerParams(
    dimension_semantics=("arbitrary",),
    vmem_limit_bytes=32 * 1024 * 1024)


def _conv_phase_call(x, halo, w_taps, scale, shift, *, apply_pre, tl):
    n, l, cp = x.shape
    nt = l // tl
    kernel = functools.partial(_conv_stats_kernel,
                               apply_pre_bn_relu=apply_pre, tl=tl)
    const2 = lambda i, j: (0, 0)
    tile = lambda: pl.BlockSpec((1, tl, cp), lambda i, j: (i, j, 0))
    small = pl.BlockSpec((1, 1, 2, cp), lambda i, j: (i, j, 0, 0))
    return pl.pallas_call(
        kernel,
        grid=(n, nt),
        in_specs=[tile(),
                  # halo slab resident per batch row (re-fetched only when i changes)
                  pl.BlockSpec((1, nt, 2, cp), lambda i, j: (i, 0, 0, 0)),
                  pl.BlockSpec((3, cp, cp), lambda i, j: (0, 0, 0)),  # weights resident
                  pl.BlockSpec((1, cp), const2),
                  pl.BlockSpec((1, cp), const2)],
        out_specs=(tile(), small, small),
        out_shape=(jax.ShapeDtypeStruct((n, l, cp), jnp.bfloat16),   # y (bf16!)
                   jax.ShapeDtypeStruct((n, nt, 2, cp), jnp.float32),  # edges
                   jax.ShapeDtypeStruct((n, nt, 2, cp), jnp.float32)),  # stats
        compiler_params=_TILED_PARAMS,
    )(x, halo, w_taps, scale, shift)


def _fused_call(x, w1, w2, g1p, b1p, g2p, b2p):
    n, l, cp = x.shape
    kernel = functools.partial(_fused_block_kernel, n=n, l=l, cp=cp)
    full = pl.BlockSpec((n, l, cp), lambda i: (0, 0, 0))
    wspec = pl.BlockSpec((3, cp, cp), lambda i: (0, 0, 0))
    aspec = pl.BlockSpec((1, cp), lambda i: (0, 0))
    return pl.pallas_call(
        kernel,
        grid=(1,),
        in_specs=[full, wspec, wspec, aspec, aspec, aspec, aspec],
        out_specs=full,
        out_shape=jax.ShapeDtypeStruct((n, l, cp), jnp.float32),
        compiler_params=_FUSED_PARAMS,
    )(x, w1, w2, g1p, b1p, g2p, b2p)


def _tiled_block(x, w1, w2, g1p, b1p, g2p, b2p, *, tl_target):
    n, l, cp = x.shape
    tl = _pick_tl(l, tl_target, min_tiles=1 if n >= 2 else 2)  # v7x megacore
    nt = l // tl
    zeros = jnp.zeros((1, cp), jnp.float32)

    # ---- phase 1: conv1 + partial BN1 stats + y1 tile-boundary rows ----
    y1, edge1, s1 = _conv_phase_call(x, _make_halos(x, tl), w1, zeros, zeros,
                                     apply_pre=False, tl=tl)
    scale1, shift1 = _stats_to_affine(s1, g1p, b1p, n * l)

    # ---- phase 2: bn1+relu folded into conv2 + partial BN2 stats ----
    # Halos of z = relu(bn1(y1)) come from the tiny edge1 rows (no strided
    # gather over the full y1); sequence-boundary halos stay literal zeros
    # (the conv zero-pads z).
    z_edge = jnp.maximum(edge1 * scale1 + shift1, 0.0)      # (n, nt, 2, cp)
    zrow = jnp.zeros((n, 1, cp), jnp.float32)
    lefts = jnp.concatenate([zrow, z_edge[:, :nt - 1, 1, :]], axis=1)
    rights = jnp.concatenate([z_edge[:, 1:, 0, :], zrow], axis=1)
    halo2 = jnp.stack([lefts, rights], axis=2)
    y2, _, s2 = _conv_phase_call(y1, halo2, w2, scale1, shift1,
                                 apply_pre=True, tl=tl)
    scale2, shift2 = _stats_to_affine(s2, g2p, b2p, n * l)

    # ---- phase 3: bn2 + residual + relu (tiled elementwise) ----
    const = lambda i, j: (0, 0)
    tile = pl.BlockSpec((1, tl, cp), lambda i, j: (i, j, 0))
    return pl.pallas_call(
        _bn_add_relu_kernel,
        grid=(n, nt),
        in_specs=[pl.BlockSpec((1, tl, cp), lambda i, j: (i, j, 0)),  # y2 bf16
                  tile,                                               # residual x
                  pl.BlockSpec((1, cp), const),
                  pl.BlockSpec((1, cp), const)],
        out_specs=tile,
        out_shape=jax.ShapeDtypeStruct((n, l, cp), jnp.float32),
        compiler_params=_TILED_PARAMS,
    )(y2, x, scale2, shift2)


def basic_block_1d(x_ncl, w1_pt, w2_pt, g1, b1, g2, b2, *,
                   tl_target=1024, force_tiled=False):
    """x_ncl: (N, C, L) f32.  w*_pt: PyTorch layout (Cout, Cin, 3)."""
    # TODO(synk): assumes stride=1, downsample=None, inplanes==planes (module
    # defaults); other BasicBlock1d configs need a strided conv + projection.
    n, c, l = x_ncl.shape
    cp = _round_up(c, LANE)

    # NCL -> NLC once (channels on the lane axis), lane-pad channels.
    # TODO(synk): in a full model keep activations NLC across the block stack
    # (or fold this transpose into the kernels) so it is paid once per network,
    # not once per block.
    x = jnp.transpose(x_ncl, (0, 2, 1)).astype(jnp.float32)
    x = jnp.pad(x, ((0, 0), (0, 0), (0, cp - c)))

    w1 = _tap_weights(w1_pt, cp)                 # (3, Cp, Cp) bf16
    w2 = _tap_weights(w2_pt, cp)
    g1p, b1p = _pad_affine(g1, cp), _pad_affine(b1, cp)
    g2p, b2p = _pad_affine(g2, cp), _pad_affine(b2, cp)

    fits_vmem = (n * l * cp * 4 <= _FUSED_BYTES_MAX) and (l % 8 == 0)
    if fits_vmem and not force_tiled:
        out = _fused_call(x, w1, w2, g1p, b1p, g2p, b2p)
    else:
        out = _tiled_block(x, w1, w2, g1p, b1p, g2p, b2p, tl_target=tl_target)
    return jnp.transpose(out[:, :, :c], (0, 2, 1))          # back to (N, C, L)


# ----------------------------- pure-JAX reference -----------------------------
def _conv1x3_ref(x_ncl, w_pt):
    # Same MXU precision as the kernels: bf16 operands, f32 accumulation.
    return lax.conv_general_dilated(
        x_ncl.astype(jnp.bfloat16), w_pt.astype(jnp.bfloat16),
        window_strides=(1,), padding=((1, 1),),
        dimension_numbers=('NCH', 'OIH', 'NCH'),
        preferred_element_type=jnp.float32)


def _bn_ref(y_ncl, gamma, beta):
    mean = jnp.mean(y_ncl, axis=(0, 2), keepdims=True)
    var = jnp.mean(jnp.square(y_ncl - mean), axis=(0, 2), keepdims=True)
    return ((y_ncl - mean) * lax.rsqrt(var + EPS)
            * gamma.reshape(1, -1, 1) + beta.reshape(1, -1, 1))


def basic_block_1d_ref(x, w1, w2, g1, b1, g2, b2):
    out = jnp.maximum(_bn_ref(_conv1x3_ref(x, w1), g1, b1), 0.0)
    out = _bn_ref(_conv1x3_ref(out, w2), g2, b2)
    return jnp.maximum(out + x, 0.0)


if __name__ == "__main__":
    key = jax.random.PRNGKey(0)
    N, C, L = 2, 64, 256            # inplanes = planes = 64, stride = 1
    ks = jax.random.split(key, 7)

    x = jax.random.normal(ks[0], (N, C, L), jnp.float32)
    w1 = jax.random.normal(ks[1], (C, C, 3), jnp.float32) * (2.0 / (C * 3)) ** 0.5
    w2 = jax.random.normal(ks[2], (C, C, 3), jnp.float32) * (2.0 / (C * 3)) ** 0.5
    g1 = 1.0 + 0.1 * jax.random.normal(ks[3], (C,), jnp.float32)
    b1 = 0.1 * jax.random.normal(ks[4], (C,), jnp.float32)
    g2 = 1.0 + 0.1 * jax.random.normal(ks[5], (C,), jnp.float32)
    b2 = 0.1 * jax.random.normal(ks[6], (C,), jnp.float32)

    ref = jax.block_until_ready(basic_block_1d_ref(x, w1, w2, g1, b1, g2, b2))

    # 1) small-problem path: fully fused single pallas_call (no HBM round trips)
    out_fused = jax.block_until_ready(basic_block_1d(x, w1, w2, g1, b1, g2, b2))
    assert out_fused.shape == (N, C, L), out_fused.shape
    err_f = float(jnp.max(jnp.abs(out_fused - ref)))
    assert jnp.allclose(out_fused, ref, atol=5e-3, rtol=5e-3), err_f

    # 2) large-problem path: tiled 3-pass with bf16 intermediates; small
    #    tl_target so the multi-tile halo path is exercised (grid 2x4).
    out_tiled = jax.block_until_ready(
        basic_block_1d(x, w1, w2, g1, b1, g2, b2, tl_target=64, force_tiled=True))
    assert out_tiled.shape == (N, C, L), out_tiled.shape
    err_t = float(jnp.max(jnp.abs(out_tiled - ref)))
    # bf16 storage of y1/y2 is a deliberate bandwidth/precision tradeoff.
    assert jnp.allclose(out_tiled, ref, atol=4e-2, rtol=4e-2), err_t

    print("KERNEL_OK")
</pallas_src>

<mosaic_0001>
module attributes {stable_mosaic.version = 11 : i64} {
  func.func @_fused_block_kernel(%arg0: i32, %arg1: memref<2x256x128xf32, #tpu.memory_space<vmem>>, %arg2: memref<3x128x128xbf16, #tpu.memory_space<vmem>>, %arg3: memref<3x128x128xbf16, #tpu.memory_space<vmem>>, %arg4: memref<1x128xf32, #tpu.memory_space<vmem>>, %arg5: memref<1x128xf32, #tpu.memory_space<vmem>>, %arg6: memref<1x128xf32, #tpu.memory_space<vmem>>, %arg7: memref<1x128xf32, #tpu.memory_space<vmem>>, %arg8: memref<2x256x128xf32, #tpu.memory_space<vmem>>) attributes {dimension_semantics = [#tpu.dimension_semantics<arbitrary>], iteration_bounds = array<i64: 1>, scalar_prefetch = 0 : i64, scratch_operands = 0 : i64, tpu.core_type = #tpu.core_type<tc>, window_params = [{pipeline_mode = #tpu.pipeline_mode<synchronous>, transform_indices = @transform_0, window_bounds = array<i64: 2, 256, 128>}, {pipeline_mode = #tpu.pipeline_mode<synchronous>, transform_indices = @transform_1, window_bounds = array<i64: 3, 128, 128>}, {pipeline_mode = #tpu.pipeline_mode<synchronous>, transform_indices = @transform_2, window_bounds = array<i64: 3, 128, 128>}, {pipeline_mode = #tpu.pipeline_mode<synchronous>, transform_indices = @transform_3, window_bounds = array<i64: 1, 128>}, {pipeline_mode = #tpu.pipeline_mode<synchronous>, transform_indices = @transform_4, window_bounds = array<i64: 1, 128>}, {pipeline_mode = #tpu.pipeline_mode<synchronous>, transform_indices = @transform_5, window_bounds = array<i64: 1, 128>}, {pipeline_mode = #tpu.pipeline_mode<synchronous>, transform_indices = @transform_6, window_bounds = array<i64: 1, 128>}, {pipeline_mode = #tpu.pipeline_mode<synchronous>, transform_indices = @transform_7, window_bounds = array<i64: 2, 256, 128>}]} {
    %c0 = arith.constant 0 : index
    %c0_0 = arith.constant 0 : index
    %c0_1 = arith.constant 0 : index
    %0 = vector.load %arg1[%c0, %c0_0, %c0_1] : memref<2x256x128xf32, #tpu.memory_space<vmem>>, vector<2x256x128xf32>
    %cst = arith.constant 0.000000e+00 : f32
    %1 = vector.broadcast %cst : f32 to vector<2x1x128xf32>
    %2 = vector.extract_strided_slice %0 {offsets = [0, 0, 0], sizes = [2, 255, 128], strides = [1, 1, 1]} : vector<2x256x128xf32> to vector<2x255x128xf32>
    %3 = tpu.concatenate %1, %2 in 1 : vector<2x1x128xf32>, vector<2x255x128xf32> -> vector<2x256x128xf32>
    %4 = vector.extract_strided_slice %0 {offsets = [0, 1, 0], sizes = [2, 255, 128], strides = [1, 1, 1]} : vector<2x256x128xf32> to vector<2x255x128xf32>
    %5 = tpu.concatenate %4, %1 in 1 : vector<2x255x128xf32>, vector<2x1x128xf32> -> vector<2x256x128xf32>
    %6 = vector.shape_cast %3 : vector<2x256x128xf32> to vector<512x128xf32>
    %7 = arith.truncf %6 : vector<512x128xf32> to vector<512x128xbf16>
    %c0_2 = arith.constant 0 : index
    %c0_3 = arith.constant 0 : index
    %c0_4 = arith.constant 0 : index
    %8 = vector.load %arg2[%c0_2, %c0_3, %c0_4] : memref<3x128x128xbf16, #tpu.memory_space<vmem>>, vector<1x128x128xbf16>
    %9 = vector.shape_cast %8 : vector<1x128x128xbf16> to vector<128x128xbf16>
    %cst_5 = arith.constant dense<0.000000e+00> : vector<512x128xf32>
    %10 = tpu.matmul %7, %9, %cst_5 {dimension_numbers = #tpu.dot_dimension_numbers<[1], [0], [0], [1], [0, 0, 1, 1], [], []>} : vector<512x128xbf16>, vector<128x128xbf16>, vector<512x128xf32> -> vector<512x128xf32>
    %11 = vector.shape_cast %0 : vector<2x256x128xf32> to vector<512x128xf32>
    %12 = arith.truncf %11 : vector<512x128xf32> to vector<512x128xbf16>
    %c1 = arith.constant 1 : index
    %c0_6 = arith.constant 0 : index
    %c0_7 = arith.constant 0 : index
    %13 = vector.load %arg2[%c1, %c0_6, %c0_7] : memref<3x128x128xbf16, #tpu.memory_space<vmem>>, vector<1x128x128xbf16>
    %14 = vector.shape_cast %13 : vector<1x128x128xbf16> to vector<128x128xbf16>
    %cst_8 = arith.constant dense<0.000000e+00> : vector<512x128xf32>
    %15 = tpu.matmul %12, %14, %cst_8 {dimension_numbers = #tpu.dot_dimension_numbers<[1], [0], [0], [1], [0, 0, 1, 1], [], []>} : vector<512x128xbf16>, vector<128x128xbf16>, vector<512x128xf32> -> vector<512x128xf32>
    %16 = arith.addf %10, %15 : vector<512x128xf32>
    %17 = vector.shape_cast %5 : vector<2x256x128xf32> to vector<512x128xf32>
    %18 = arith.truncf %17 : vector<512x128xf32> to vector<512x128xbf16>
    %c2 = arith.constant 2 : index
    %c0_9 = arith.constant 0 : index
    %c0_10 = arith.constant 0 : index
    %19 = vector.load %arg2[%c2, %c0_9, %c0_10] : memref<3x128x128xbf16, #tpu.memory_space<vmem>>, vector<1x128x128xbf16>
    %20 = vector.shape_cast %19 : vector<1x128x128xbf16> to vector<128x128xbf16>
    %cst_11 = arith.constant dense<0.000000e+00> : vector<512x128xf32>
    %21 = tpu.matmul %18, %20, %cst_11 {dimension_numbers = #tpu.dot_dimension_numbers<[1], [0], [0], [1], [0, 0, 1, 1], [], []>} : vector<512x128xbf16>, vector<128x128xbf16>, vector<512x128xf32> -> vector<512x128xf32>
    %22 = arith.addf %16, %21 : vector<512x128xf32>
    %c0_12 = arith.constant 0 : index
    %c0_13 = arith.constant 0 : index
    %23 = vector.load %arg4[%c0_12, %c0_13] : memref<1x128xf32, #tpu.memory_space<vmem>>, vector<1x128xf32>
    %c0_14 = arith.constant 0 : index
    %c0_15 = arith.constant 0 : index
    %24 = vector.load %arg5[%c0_14, %c0_15] : memref<1x128xf32, #tpu.memory_space<vmem>>, vector<1x128xf32>
    %cst_16 = arith.constant dense<0.000000e+00> : vector<128xf32>
    %25 = vector.multi_reduction <add>, %22, %cst_16 [0] : vector<512x128xf32> to vector<128xf32>
    %26 = vector.shape_cast %25 : vector<128xf32> to vector<1x128xf32>
    %cst_17 = arith.constant 5.120000e+02 : f32
    %27 = vector.broadcast %cst_17 : f32 to vector<1x128xf32>
    %28 = arith.divf %26, %27 : vector<1x128xf32>
    %29 = arith.mulf %22, %22 : vector<512x128xf32>
    %cst_18 = arith.constant dense<0.000000e+00> : vector<128xf32>
    %30 = vector.multi_reduction <add>, %29, %cst_18 [0] : vector<512x128xf32> to vector<128xf32>
    %31 = vector.shape_cast %30 : vector<128xf32> to vector<1x128xf32>
    %cst_19 = arith.constant 5.120000e+02 : f32
    %32 = vector.broadcast %cst_19 : f32 to vector<1x128xf32>
    %33 = arith.divf %31, %32 : vector<1x128xf32>
    %34 = arith.mulf %28, %28 : vector<1x128xf32>
    %35 = arith.subf %33, %34 : vector<1x128xf32>
    %cst_20 = arith.constant 9.99999974E-6 : f32
    %36 = vector.broadcast %cst_20 : f32 to vector<1x128xf32>
    %37 = arith.addf %35, %36 : vector<1x128xf32>
    %38 = math.rsqrt %37 : vector<1x128xf32>
    %39 = arith.mulf %23, %38 : vector<1x128xf32>
    %40 = vector.broadcast %39 : vector<1x128xf32> to vector<512x128xf32>
    %41 = arith.mulf %22, %40 : vector<512x128xf32>
    %42 = arith.mulf %28, %39 : vector<1x128xf32>
    %43 = arith.subf %24, %42 : vector<1x128xf32>
    %44 = vector.broadcast %43 : vector<1x128xf32> to vector<512x128xf32>
    %45 = arith.addf %41, %44 : vector<512x128xf32>
    %cst_21 = arith.constant 0.000000e+00 : f32
    %46 = vector.broadcast %cst_21 : f32 to vector<512x128xf32>
    %47 = arith.maximumf %45, %46 : vector<512x128xf32>
    %48 = vector.shape_cast %47 : vector<512x128xf32> to vector<2x256x128xf32>
    %cst_22 = arith.constant 0.000000e+00 : f32
    %49 = vector.broadcast %cst_22 : f32 to vector<2x1x128xf32>
    %50 = vector.extract_strided_slice %48 {offsets = [0, 0, 0], sizes = [2, 255, 128], strides = [1, 1, 1]} : vector<2x256x128xf32> to vector<2x255x128xf32>
    %51 = tpu.concatenate %49, %50 in 1 : vector<2x1x128xf32>, vector<2x255x128xf32> -> vector<2x256x128xf32>
    %52 = vector.extract_strided_slice %48 {offsets = [0, 1, 0], sizes = [2, 255, 128], strides = [1, 1, 1]} : vector<2x256x128xf32> to vector<2x255x128xf32>
    %53 = tpu.concatenate %52, %49 in 1 : vector<2x255x128xf32>, vector<2x1x128xf32> -> vector<2x256x128xf32>
    %54 = vector.shape_cast %51 : vector<2x256x128xf32> to vector<512x128xf32>
    %55 = arith.truncf %54 : vector<512x128xf32> to vector<512x128xbf16>
    %c0_23 = arith.constant 0 : index
    %c0_24 = arith.constant 0 : index
    %c0_25 = arith.constant 0 : index
    %56 = vector.load %arg3[%c0_23, %c0_24, %c0_25] : memref<3x128x128xbf16, #tpu.memory_space<vmem>>, vector<1x128x128xbf16>
    %57 = vector.shape_cast %56 : vector<1x128x128xbf16> to vector<128x128xbf16>
    %cst_26 = arith.constant dense<0.000000e+00> : vector<512x128xf32>
    %58 = tpu.matmul %55, %57, %cst_26 {dimension_numbers = #tpu.dot_dimension_numbers<[1], [0], [0], [1], [0, 0, 1, 1], [], []>} : vector<512x128xbf16>, vector<128x128xbf16>, vector<512x128xf32> -> vector<512x128xf32>
    %59 = vector.shape_cast %48 : vector<2x256x128xf32> to vector<512x128xf32>
    %60 = arith.truncf %59 : vector<512x128xf32> to vector<512x128xbf16>
    %c1_27 = arith.constant 1 : index
    %c0_28 = arith.constant 0 : index
    %c0_29 = arith.constant 0 : index
    %61 = vector.load %arg3[%c1_27, %c0_28, %c0_29] : memref<3x128x128xbf16, #tpu.memory_space<vmem>>, vector<1x128x128xbf16>
    %62 = vector.shape_cast %61 : vector<1x128x128xbf16> to vector<128x128xbf16>
    %cst_30 = arith.constant dense<0.000000e+00> : vector<512x128xf32>
    %63 = tpu.matmul %60, %62, %cst_30 {dimension_numbers = #tpu.dot_dimension_numbers<[1], [0], [0], [1], [0, 0, 1, 1], [], []>} : vector<512x128xbf16>, vector<128x128xbf16>, vector<512x128xf32> -> vector<512x128xf32>
    %64 = arith.addf %58, %63 : vector<512x128xf32>
    %65 = vector.shape_cast %53 : vector<2x256x128xf32> to vector<512x128xf32>
    %66 = arith.truncf %65 : vector<512x128xf32> to vector<512x128xbf16>
    %c2_31 = arith.constant 2 : index
    %c0_32 = arith.constant 0 : index
    %c0_33 = arith.constant 0 : index
    %67 = vector.load %arg3[%c2_31, %c0_32, %c0_33] : memref<3x128x128xbf16, #tpu.memory_space<vmem>>, vector<1x128x128xbf16>
    %68 = vector.shape_cast %67 : vector<1x128x128xbf16> to vector<128x128xbf16>
    %cst_34 = arith.constant dense<0.000000e+00> : vector<512x128xf32>
    %69 = tpu.matmul %66, %68, %cst_34 {dimension_numbers = #tpu.dot_dimension_numbers<[1], [0], [0], [1], [0, 0, 1, 1], [], []>} : vector<512x128xbf16>, vector<128x128xbf16>, vector<512x128xf32> -> vector<512x128xf32>
    %70 = arith.addf %64, %69 : vector<512x128xf32>
    %c0_35 = arith.constant 0 : index
    %c0_36 = arith.constant 0 : index
    %71 = vector.load %arg6[%c0_35, %c0_36] : memref<1x128xf32, #tpu.memory_space<vmem>>, vector<1x128xf32>
    %c0_37 = arith.constant 0 : index
    %c0_38 = arith.constant 0 : index
    %72 = vector.load %arg7[%c0_37, %c0_38] : memref<1x128xf32, #tpu.memory_space<vmem>>, vector<1x128xf32>
    %cst_39 = arith.constant dense<0.000000e+00> : vector<128xf32>
    %73 = vector.multi_reduction <add>, %70, %cst_39 [0] : vector<512x128xf32> to vector<128xf32>
    %74 = vector.shape_cast %73 : vector<128xf32> to vector<1x128xf32>
    %cst_40 = arith.constant 5.120000e+02 : f32
    %75 = vector.broadcast %cst_40 : f32 to vector<1x128xf32>
    %76 = arith.divf %74, %75 : vector<1x128xf32>
    %77 = arith.mulf %70, %70 : vector<512x128xf32>
    %cst_41 = arith.constant dense<0.000000e+00> : vector<128xf32>
    %78 = vector.multi_reduction <add>, %77, %cst_41 [0] : vector<512x128xf32> to vector<128xf32>
    %79 = vector.shape_cast %78 : vector<128xf32> to vector<1x128xf32>
    %cst_42 = arith.constant 5.120000e+02 : f32
    %80 = vector.broadcast %cst_42 : f32 to vector<1x128xf32>
    %81 = arith.divf %79, %80 : vector<1x128xf32>
    %82 = arith.mulf %76, %76 : vector<1x128xf32>
    %83 = arith.subf %81, %82 : vector<1x128xf32>
    %cst_43 = arith.constant 9.99999974E-6 : f32
    %84 = vector.broadcast %cst_43 : f32 to vector<1x128xf32>
    %85 = arith.addf %83, %84 : vector<1x128xf32>
    %86 = math.rsqrt %85 : vector<1x128xf32>
    %87 = arith.mulf %71, %86 : vector<1x128xf32>
    %88 = vector.broadcast %87 : vector<1x128xf32> to vector<512x128xf32>
    %89 = arith.mulf %70, %88 : vector<512x128xf32>
    %90 = arith.mulf %76, %87 : vector<1x128xf32>
    %91 = arith.subf %72, %90 : vector<1x128xf32>
    %92 = vector.broadcast %91 : vector<1x128xf32> to vector<512x128xf32>
    %93 = arith.addf %89, %92 : vector<512x128xf32>
    %94 = vector.shape_cast %0 : vector<2x256x128xf32> to vector<512x128xf32>
    %95 = arith.addf %93, %94 : vector<512x128xf32>
    %cst_44 = arith.constant 0.000000e+00 : f32
    %96 = vector.broadcast %cst_44 : f32 to vector<512x128xf32>
    %97 = arith.maximumf %95, %96 : vector<512x128xf32>
    %98 = vector.shape_cast %97 : vector<512x128xf32> to vector<2x256x128xf32>
    %c0_45 = arith.constant 0 : index
    %c0_46 = arith.constant 0 : index
    %c0_47 = arith.constant 0 : index
    %99 = vector.load %arg8[%c0_45, %c0_46, %c0_47] : memref<2x256x128xf32, #tpu.memory_space<vmem>>, vector<2x256x128xf32>
    tpu.vector_store %arg8[%c0_45, %c0_46, %c0_47], %98 {strides = array<i32>} : memref<2x256x128xf32, #tpu.memory_space<vmem>>, vector<2x256x128xf32>,
    return
  }
  func.func @transform_0(%arg0: i32) -> (i32, i32, i32) {
    %c0_i32 = arith.constant 0 : i32
    %c0_i32_0 = arith.constant 0 : i32
    %c0_i32_1 = arith.constant 0 : i32
    %c0_i32_2 = arith.constant 0 : i32
    return %c0_i32, %c0_i32_0, %c0_i32_1 : i32, i32, i32
  }
  func.func @transform_1(%arg0: i32) -> (i32, i32, i32) {
    %c0_i32 = arith.constant 0 : i32
    %c0_i32_0 = arith.constant 0 : i32
    %c0_i32_1 = arith.constant 0 : i32
    %c0_i32_2 = arith.constant 0 : i32
    return %c0_i32, %c0_i32_0, %c0_i32_1 : i32, i32, i32
  }
  func.func @transform_2(%arg0: i32) -> (i32, i32, i32) {
    %c0_i32 = arith.constant 0 : i32
    %c0_i32_0 = arith.constant 0 : i32
    %c0_i32_1 = arith.constant 0 : i32
    %c0_i32_2 = arith.constant 0 : i32
    return %c0_i32, %c0_i32_0, %c0_i32_1 : i32, i32, i32
  }
  func.func @transform_3(%arg0: i32) -> (i32, i32) {
    %c0_i32 = arith.constant 0 : i32
    %c0_i32_0 = arith.constant 0 : i32
    %c0_i32_1 = arith.constant 0 : i32
    return %c0_i32, %c0_i32_0 : i32, i32
  }
  func.func @transform_4(%arg0: i32) -> (i32, i32) {
    %c0_i32 = arith.constant 0 : i32
    %c0_i32_0 = arith.constant 0 : i32
    %c0_i32_1 = arith.constant 0 : i32
    return %c0_i32, %c0_i32_0 : i32, i32
  }
  func.func @transform_5(%arg0: i32) -> (i32, i32) {
    %c0_i32 = arith.constant 0 : i32
    %c0_i32_0 = arith.constant 0 : i32
    %c0_i32_1 = arith.constant 0 : i32
    return %c0_i32, %c0_i32_0 : i32, i32
  }
  func.func @transform_6(%arg0: i32) -> (i32, i32) {
    %c0_i32 = arith.constant 0 : i32
    %c0_i32_0 = arith.constant 0 : i32
    %c0_i32_1 = arith.constant 0 : i32
    return %c0_i32, %c0_i32_0 : i32, i32
  }
  func.func @transform_7(%arg0: i32) -> (i32, i32, i32) {
    %c0_i32 = arith.constant 0 : i32
    %c0_i32_0 = arith.constant 0 : i32
    %c0_i32_1 = arith.constant 0 : i32
    %c0_i32_2 = arith.constant 0 : i32
    return %c0_i32, %c0_i32_0, %c0_i32_1 : i32, i32, i32
  }
}

</mosaic_0001>

<llo_original>
// kernel: tpu_custom_call.1
$region0: #{tpu_custom_call.1}
  #allocation0 [shape = 'u32[]', space=smem, size = 0x4, offset = 0x4, fixed_abs, tag = 'smem constant byte address 0x4 - core index']
  #allocation1 [shape = 'u32[144,128]{1,0:T(1,128)}', space=vmem, size = 0x12000, scoped, tag = 'internal scratch']
  %s0 = inlined_call_operand.hbm [shape: f32[2,256,128], index: 0, kind: input, shape index: {}]
  %s1 = inlined_call_operand.hbm [shape: bf16[3,128,128], index: 1, kind: input, shape index: {}]
  %s2 = inlined_call_operand.hbm [shape: bf16[3,128,128], index: 2, kind: input, shape index: {}]
  %s3 = inlined_call_operand.vmem [shape: f32[1,128], index: 3, kind: input, shape index: {}]
  %s4 = inlined_call_operand.vmem [shape: f32[1,128], index: 4, kind: input, shape index: {}]
  %s5 = inlined_call_operand.vmem [shape: f32[1,128], index: 5, kind: input, shape index: {}]
  %s6 = inlined_call_operand.vmem [shape: f32[1,128], index: 6, kind: input, shape index: {}]
  %s7 = inlined_call_operand.hbm [shape: f32[2,256,128], index: 7, kind: output, shape index: {}]
  %s8 = sld [smem:[#allocation0]]
  $region50: #{tpu_custom_call.1} parent=0
    _
  %s10 = ssub.s32 1, %s8
  %s11 = scalar_select 0, %s10, %s8
  $region1: #{tpu_custom_call.1} parent=0
    #allocation2 [shape = 'u8[262144]{0}', space=vmem, size = 0x40000, scoped, tag = 'input window, operand 0, single buffered']
    #allocation3 [shape = 's32[1]{0}', space=sflag, size = 0x4, scoped, tag = 'scoped memory for tpu_custom_call.1']
    #allocation4 [shape = 's32[1]{0}', space=sflag, size = 0x4, scoped, tag = 'scoped memory for tpu_custom_call.1']
    #allocation5 [shape = 'u8[98304]{0}', space=vmem, size = 0x18000, scoped, tag = 'input window, operand 1, single buffered']
    #allocation6 [shape = 's32[1]{0}', space=sflag, size = 0x4, scoped, tag = 'scoped memory for tpu_custom_call.1']
    #allocation7 [shape = 'u8[98304]{0}', space=vmem, size = 0x18000, scoped, tag = 'input window, operand 2, single buffered']
    #allocation8 [shape = 'u8[262144]{0}', space=vmem, size = 0x40000, scoped, tag = 'output window, operand 0, single buffered']
    %12 = vsyncpa [#allocation3], 0
    %13 = vsyncpa [#allocation6], 0
    %14 = vsyncpa [#allocation4], 0
    // Predicated region
    $region2: #{tpu_custom_call.1} parent=1 // pred_check
      _
    $region3: #{tpu_custom_call.1} parent=1 // pred_check_branch
      %16 = sbr.rel (0) target = $region5
    $region4: #{tpu_custom_call.1} parent=1 // pred_region
      %s18 = ssub.s32 8192, 8192
      %19 = vsyncadd [#allocation3], %s18
      %s20 = sshll.u32 [#allocation2], 4
      %s21 = int_to_ptr.vmem [resolvable:$true] %s20
      %26 = dma.hbm_to_vmem [thread:$0]  %s0, 8192, %s21, [#allocation3], 128, 128, 8
    $region5: #{tpu_custom_call.1} parent=1 // pred_fallthru
      _
    // Predicated region
    $region6: #{tpu_custom_call.1} parent=1 // pred_check
      _
    $region7: #{tpu_custom_call.1} parent=1 // pred_check_branch
      %28 = sbr.rel (0) target = $region9
    $region8: #{tpu_custom_call.1} parent=1 // pred_region
      %s30 = ssub.s32 3072, 3072
      %31 = vsyncadd [#allocation6], %s30
      %s32 = sshll.u32 [#allocation5], 4
      %s33 = int_to_ptr.vmem [resolvable:$true] %s32
      %38 = dma.hbm_to_vmem [thread:$0]  %s1, 3072, %s33, [#allocation6], 64, 64, 4
    $region9: #{tpu_custom_call.1} parent=1 // pred_fallthru
      _
    // Predicated region
    $region10: #{tpu_custom_call.1} parent=1 // pred_check
      _
    $region11: #{tpu_custom_call.1} parent=1 // pred_check_branch
      %40 = sbr.rel (0) target = $region13
    $region12: #{tpu_custom_call.1} parent=1 // pred_region
      %s42 = ssub.s32 3072, 3072
      %43 = vsyncadd [#allocation6], %s42
      %s44 = sshll.u32 [#allocation7], 4
      %s45 = int_to_ptr.vmem [resolvable:$true] %s44
      %50 = dma.hbm_to_vmem [thread:$0]  %s2, 3072, %s45, [#allocation6], 64, 64, 4
    $region13: #{tpu_custom_call.1} parent=1 // pred_fallthru
      _
    // Predicated region
    $region14: #{tpu_custom_call.1} parent=1 // pred_check
      _
    $region15: #{tpu_custom_call.1} parent=1 // pred_check_branch
      %52 = sbr.rel (0) target = $region17
    $region16: #{tpu_custom_call.1} parent=1 // pred_region
      _
    $region17: #{tpu_custom_call.1} parent=1 // pred_fallthru
      _
    // Predicated region
    $region18: #{tpu_custom_call.1} parent=1 // pred_check
      _
    $region19: #{tpu_custom_call.1} parent=1 // pred_check_branch
      %54 = sbr.rel (0) target = $region21
    $region20: #{tpu_custom_call.1} parent=1 // pred_region
      _
    $region21: #{tpu_custom_call.1} parent=1 // pred_fallthru
      _
    // Predicated region
    $region22: #{tpu_custom_call.1} parent=1 // pred_check
      _
    $region23: #{tpu_custom_call.1} parent=1 // pred_check_branch
      %56 = sbr.rel (0) target = $region25
    $region24: #{tpu_custom_call.1} parent=1 // pred_region
      _
    $region25: #{tpu_custom_call.1} parent=1 // pred_fallthru
      _
    // Predicated region
    $region26: #{tpu_custom_call.1} parent=1 // pred_check
      _
    $region27: #{tpu_custom_call.1} parent=1 // pred_check_branch
      %58 = sbr.rel (0) target = $region29
    $region28: #{tpu_custom_call.1} parent=1 // pred_region
      _
    $region29: #{tpu_custom_call.1} parent=1 // pred_fallthru
      _
    // Predicated region
    $region30: #{tpu_custom_call.1} parent=1 // pred_check
      _
    $region31: #{tpu_custom_call.1} parent=1 // pred_check_branch
      %60 = sbr.rel (0) target = $region33
    $region32: #{tpu_custom_call.1} parent=1 // pred_region
      %61 = dma.done [#allocation3], 8192
    $region33: #{tpu_custom_call.1} parent=1 // pred_fallthru
      _
    // Predicated region
    $region34: #{tpu_custom_call.1} parent=1 // pred_check
      _
    $region35: #{tpu_custom_call.1} parent=1 // pred_check_branch
      %63 = sbr.rel (0) target = $region37
    $region36: #{tpu_custom_call.1} parent=1 // pred_region
      %64 = dma.done [#allocation6], 3072
    $region37: #{tpu_custom_call.1} parent=1 // pred_fallthru
      _
    // Predicated region
    $region38: #{tpu_custom_call.1} parent=1 // pred_check
      _
    $region39: #{tpu_custom_call.1} parent=1 // pred_check_branch
      %66 = sbr.rel (0) target = $region41
    $region40: #{tpu_custom_call.1} parent=1 // pred_region
      %67 = dma.done [#allocation6], 3072
    $region41: #{tpu_custom_call.1} parent=1 // pred_fallthru
      _
    %v69 = vld [vmem:[#allocation2] sm:$0xff]
    %v70 = vld [vmem:[#allocation2 + $0x8] sm:$0xff]
    %v71 = vld [vmem:[#allocation2 + $0x10] sm:$0xff]
    %v72 = vld [vmem:[#allocation2 + $0x18] sm:$0xff]
    %v73 = vld [vmem:[#allocation2 + $0x20] sm:$0xff]
    %v74 = vld [vmem:[#allocation2 + $0x28] sm:$0xff]
    %v75 = vld [vmem:[#allocation2 + $0x30] sm:$0xff]
    %v76 = vld [vmem:[#allocation2 + $0x38] sm:$0xff]
    %v77 = vld [vmem:[#allocation2 + $0x40] sm:$0xff]
    %v78 = vld [vmem:[#allocation2 + $0x48] sm:$0xff]
    %v79 = vld [vmem:[#allocation2 + $0x50] sm:$0xff]
    %v80 = vld [vmem:[#allocation2 + $0x58] sm:$0xff]
    %v81 = vld [vmem:[#allocation2 + $0x60] sm:$0xff]
    %v82 = vld [vmem:[#allocation2 + $0x68] sm:$0xff]
    %v83 = vld [vmem:[#allocation2 + $0x70] sm:$0xff]
    %v84 = vld [vmem:[#allocation2 + $0x78] sm:$0xff]
    %v85 = vld [vmem:[#allocation2 + $0x80] sm:$0xff]
    %v86 = vld [vmem:[#allocation2 + $0x88] sm:$0xff]
    %v87 = vld [vmem:[#allocation2 + $0x90] sm:$0xff]
    %v88 = vld [vmem:[#allocation2 + $0x98] sm:$0xff]
    %v89 = vld [vmem:[#allocation2 + $0xa0] sm:$0xff]
    %v90 = vld [vmem:[#allocation2 + $0xa8] sm:$0xff]
    %v91 = vld [vmem:[#allocation2 + $0xb0] sm:$0xff]
    %v92 = vld [vmem:[#allocation2 + $0xb8] sm:$0xff]
    %v93 = vld [vmem:[#allocation2 + $0xc0] sm:$0xff]
    %v94 = vld [vmem:[#allocation2 + $0xc8] sm:$0xff]
    %v95 = vld [vmem:[#allocation2 + $0xd0] sm:$0xff]
    %v96 = vld [vmem:[#allocation2 + $0xd8] sm:$0xff]
    %v97 = vld [vmem:[#allocation2 + $0xe0] sm:$0xff]
    %v98 = vld [vmem:[#allocation2 + $0xe8] sm:$0xff]
    %v99 = vld [vmem:[#allocation2 + $0xf0] sm:$0xff]
    %v100 = vld [vmem:[#allocation2 + $0xf8] sm:$0xff]
    %v101 = vld [vmem:[#allocation2 + $0x100] sm:$0xff]
    %v102 = vld [vmem:[#allocation2 + $0x108] sm:$0xff]
    %v103 = vld [vmem:[#allocation2 + $0x110] sm:$0xff]
    %v104 = vld [vmem:[#allocation2 + $0x118] sm:$0xff]
    %v105 = vld [vmem:[#allocation2 + $0x120] sm:$0xff]
    %v106 = vld [vmem:[#allocation2 + $0x128] sm:$0xff]
    %v107 = vld [vmem:[#allocation2 + $0x130] sm:$0xff]
    %v108 = vld [vmem:[#allocation2 + $0x138] sm:$0xff]
    %v109 = vld [vmem:[#allocation2 + $0x140] sm:$0xff]
    %v110 = vld [vmem:[#allocation2 + $0x148] sm:$0xff]
    %v111 = vld [vmem:[#allocation2 + $0x150] sm:$0xff]
    %v112 = vld [vmem:[#allocation2 + $0x158] sm:$0xff]
    %v113 = vld [vmem:[#allocation2 + $0x160] sm:$0xff]
    %v114 = vld [vmem:[#allocation2 + $0x168] sm:$0xff]
    %v115 = vld [vmem:[#allocation2 + $0x170] sm:$0xff]
    %v116 = vld [vmem:[#allocation2 + $0x178] sm:$0xff]
    %v117 = vld [vmem:[#allocation2 + $0x180] sm:$0xff]
    %v118 = vld [vmem:[#allocation2 + $0x188] sm:$0xff]
    %v119 = vld [vmem:[#allocation2 + $0x190] sm:$0xff]
    %v120 = vld [vmem:[#allocation2 + $0x198] sm:$0xff]
    %v121 = vld [vmem:[#allocation2 + $0x1a0] sm:$0xff]
    %v122 = vld [vmem:[#allocation2 + $0x1a8] sm:$0xff]
    %v123 = vld [vmem:[#allocation2 + $0x1b0] sm:$0xff]
    %v124 = vld [vmem:[#allocation2 + $0x1b8] sm:$0xff]
    %v125 = vld [vmem:[#allocation2 + $0x1c0] sm:$0xff]
    %v126 = vld [vmem:[#allocation2 + $0x1c8] sm:$0xff]
    %v127 = vld [vmem:[#allocation2 + $0x1d0] sm:$0xff]
    %v128 = vld [vmem:[#allocation2 + $0x1d8] sm:$0xff]
    %v129 = vld [vmem:[#allocation2 + $0x1e0] sm:$0xff]
    %v130 = vld [vmem:[#allocation2 + $0x1e8] sm:$0xff]
    %v131 = vld [vmem:[#allocation2 + $0x1f0] sm:$0xff]
    %v132 = vld [vmem:[#allocation2 + $0x1f8] sm:$0xff]
    %vm197 = vcmask 1040384
    %v198 = vrot.slane %v69, 7
    %v199 = vrot.slane %v70, 7
    %v200 = vsel %vm197, %v198, %v199
    %v201 = vrot.slane %v71, 7
    %v202 = vsel %vm197, %v199, %v201
    %v203 = vrot.slane %v72, 7
    %v204 = vsel %vm197, %v201, %v203
    %v205 = vrot.slane %v73, 7
    %v206 = vsel %vm197, %v203, %v205
    %v207 = vrot.slane %v74, 7
    %v208 = vsel %vm197, %v205, %v207
    %v209 = vrot.slane %v75, 7
    %v210 = vsel %vm197, %v207, %v209
    %v211 = vrot.slane %v76, 7
    %v212 = vsel %vm197, %v209, %v211
    %v213 = vrot.slane %v77, 7
    %v214 = vsel %vm197, %v211, %v213
    %v215 = vrot.slane %v78, 7
    %v216 = vsel %vm197, %v213, %v215
    %v217 = vrot.slane %v79, 7
    %v218 = vsel %vm197, %v215, %v217
    %v219 = vrot.slane %v80, 7
    %v220 = vsel %vm197, %v217, %v219
    %v221 = vrot.slane %v81, 7
    %v222 = vsel %vm197, %v219, %v221
    %v223 = vrot.slane %v82, 7
    %v224 = vsel %vm197, %v221, %v223
    %v225 = vrot.slane %v83, 7
    %v226 = vsel %vm197, %v223, %v225
    %v227 = vrot.slane %v84, 7
    %v228 = vsel %vm197, %v225, %v227
    %v229 = vrot.slane %v85, 7
    %v230 = vsel %vm197, %v227, %v229
    %v231 = vrot.slane %v86, 7
    %v232 = vsel %vm197, %v229, %v231
    %v233 = vrot.slane %v87, 7
    %v234 = vsel %vm197, %v231, %v233
    %v235 = vrot.slane %v88, 7
    %v236 = vsel %vm197, %v233, %v235
    %v237 = vrot.slane %v89, 7
    %v238 = vsel %vm197, %v235, %v237
    %v239 = vrot.slane %v90, 7
    %v240 = vsel %vm197, %v237, %v239
    %v241 = vrot.slane %v91, 7
    %v242 = vsel %vm197, %v239, %v241
    %v243 = vrot.slane %v92, 7
    %v244 = vsel %vm197, %v241, %v243
    %v245 = vrot.slane %v93, 7
    %v246 = vsel %vm197, %v243, %v245
    %v247 = vrot.slane %v94, 7
    %v248 = vsel %vm197, %v245, %v247
    %v249 = vrot.slane %v95, 7
    %v250 = vsel %vm197, %v247, %v249
    %v251 = vrot.slane %v96, 7
    %v252 = vsel %vm197, %v249, %v251
    %v253 = vrot.slane %v97, 7
    %v254 = vsel %vm197, %v251, %v253
    %v255 = vrot.slane %v98, 7
    %v256 = vsel %vm197, %v253, %v255
    %v257 = vrot.slane %v99, 7
    %v258 = vsel %vm197, %v255, %v257
    %v259 = vrot.slane %v100, 7
    %v260 = vsel %vm197, %v257, %v259
    %v261 = vrot.slane %v101, 7
    %v262 = vrot.slane %v102, 7
    %v263 = vsel %vm197, %v261, %v262
    %v264 = vrot.slane %v103, 7
    %v265 = vsel %vm197, %v262, %v264
    %v266 = vrot.slane %v104, 7
    %v267 = vsel %vm197, %v264, %v266
    %v268 = vrot.slane %v105, 7
    %v269 = vsel %vm197, %v266, %v268
    %v270 = vrot.slane %v106, 7
    %v271 = vsel %vm197, %v268, %v270
    %v272 = vrot.slane %v107, 7
    %v273 = vsel %vm197, %v270, %v272
    %v274 = vrot.slane %v108, 7
    %v275 = vsel %vm197, %v272, %v274
    %v276 = vrot.slane %v109, 7
    %v277 = vsel %vm197, %v274, %v276
    %v278 = vrot.slane %v110, 7
    %v279 = vsel %vm197, %v276, %v278
    %v280 = vrot.slane %v111, 7
    %v281 = vsel %vm197, %v278, %v280
    %v282 = vrot.slane %v112, 7
    %v283 = vsel %vm197, %v280, %v282
    %v284 = vrot.slane %v113, 7
    %v285 = vsel %vm197, %v282, %v284
    %v286 = vrot.slane %v114, 7
    %v287 = vsel %vm197, %v284, %v286
    %v288 = vrot.slane %v115, 7
    %v289 = vsel %vm197, %v286, %v288
    %v290 = vrot.slane %v116, 7
    %v291 = vsel %vm197, %v288, %v290
    %v292 = vrot.slane %v117, 7
    %v293 = vsel %vm197, %v290, %v292
    %v294 = vrot.slane %v118, 7
    %v295 = vsel %vm197, %v292, %v294
    %v296 = vrot.slane %v119, 7
    %v297 = vsel %vm197, %v294, %v296
    %v298 = vrot.slane %v120, 7
    %v299 = vsel %vm197, %v296, %v298
    %v300 = vrot.slane %v121, 7
    %v301 = vsel %vm197, %v298, %v300
    %v302 = vrot.slane %v122, 7
    %v303 = vsel %vm197, %v300, %v302
    %v304 = vrot.slane %v123, 7
    %v305 = vsel %vm197, %v302, %v304
    %v306 = vrot.slane %v124, 7
    %v307 = vsel %vm197, %v304, %v306
    %v308 = vrot.slane %v125, 7
    %v309 = vsel %vm197, %v306, %v308
    %v310 = vrot.slane %v126, 7
    %v311 = vsel %vm197, %v308, %v310
    %v312 = vrot.slane %v127, 7
    %v313 = vsel %vm197, %v310, %v312
    %v314 = vrot.slane %v128, 7
    %v315 = vsel %vm197, %v312, %v314
    %v316 = vrot.slane %v129, 7
    %v317 = vsel %vm197, %v314, %v316
    %v318 = vrot.slane %v130, 7
    %v319 = vsel %vm197, %v316, %v318
    %v320 = vrot.slane %v131, 7
    %v321 = vsel %vm197, %v318, %v320
    %v322 = vrot.slane %v132, 7
    %v323 = vsel %vm197, %v320, %v322
    %v388 = vsel %vm197, 0.0, %v198
    %v389 = vsel %vm197, 0.0, %v261
    %vm390 = vcmask 1046528
    %v391 = vrot.slane %v69, 1
    %v392 = vrot.slane %v70, 1
    %v393 = vsel %vm390, %v391, %v392
    %v394 = vrot.slane %v71, 1
    %v395 = vsel %vm390, %v392, %v394
    %v396 = vrot.slane %v72, 1
    %v397 = vsel %vm390, %v394, %v396
    %v398 = vrot.slane %v73, 1
    %v399 = vsel %vm390, %v396, %v398
    %v400 = vrot.slane %v74, 1
    %v401 = vsel %vm390, %v398, %v400
    %v402 = vrot.slane %v75, 1
    %v403 = vsel %vm390, %v400, %v402
    %v404 = vrot.slane %v76, 1
    %v405 = vsel %vm390, %v402, %v404
    %v406 = vrot.slane %v77, 1
    %v407 = vsel %vm390, %v404, %v406
    %v408 = vrot.slane %v78, 1
    %v409 = vsel %vm390, %v406, %v408
    %v410 = vrot.slane %v79, 1
    %v411 = vsel %vm390, %v408, %v410
    %v412 = vrot.slane %v80, 1
    %v413 = vsel %vm390, %v410, %v412
    %v414 = vrot.slane %v81, 1
    %v415 = vsel %vm390, %v412, %v414
    %v416 = vrot.slane %v82, 1
    %v417 = vsel %vm390, %v414, %v416
    %v418 = vrot.slane %v83, 1
    %v419 = vsel %vm390, %v416, %v418
    %v420 = vrot.slane %v84, 1
    %v421 = vsel %vm390, %v418, %v420
    %v422 = vrot.slane %v85, 1
    %v423 = vsel %vm390, %v420, %v422
    %v424 = vrot.slane %v86, 1
    %v425 = vsel %vm390, %v422, %v424
    %v426 = vrot.slane %v87, 1
    %v427 = vsel %vm390, %v424, %v426
    %v428 = vrot.slane %v88, 1
    %v429 = vsel %vm390, %v426, %v428
    %v430 = vrot.slane %v89, 1
    %v431 = vsel %vm390, %v428, %v430
    %v432 = vrot.slane %v90, 1
    %v433 = vsel %vm390, %v430, %v432
    %v434 = vrot.slane %v91, 1
    %v435 = vsel %vm390, %v432, %v434
    %v436 = vrot.slane %v92, 1
    %v437 = vsel %vm390, %v434, %v436
    %v438 = vrot.slane %v93, 1
    %v439 = vsel %vm390, %v436, %v438
    %v440 = vrot.slane %v94, 1
    %v441 = vsel %vm390, %v438, %v440
    %v442 = vrot.slane %v95, 1
    %v443 = vsel %vm390, %v440, %v442
    %v444 = vrot.slane %v96, 1
    %v445 = vsel %vm390, %v442, %v444
    %v446 = vrot.slane %v97, 1
    %v447 = vsel %vm390, %v444, %v446
    %v448 = vrot.slane %v98, 1
    %v449 = vsel %vm390, %v446, %v448
    %v450 = vrot.slane %v99, 1
    %v451 = vsel %vm390, %v448, %v450
    %v452 = vrot.slane %v100, 1
    %v453 = vsel %vm390, %v450, %v452
    %v454 = vrot.slane %v101, 1
    %v455 = vrot.slane %v102, 1
    %v456 = vsel %vm390, %v454, %v455
    %v457 = vrot.slane %v103, 1
    %v458 = vsel %vm390, %v455, %v457
    %v459 = vrot.slane %v104, 1
    %v460 = vsel %vm390, %v457, %v459
    %v461 = vrot.slane %v105, 1
    %v462 = vsel %vm390, %v459, %v461
    %v463 = vrot.slane %v106, 1
    %v464 = vsel %vm390, %v461, %v463
    %v465 = vrot.slane %v107, 1
    %v466 = vsel %vm390, %v463, %v465
    %v467 = vrot.slane %v108, 1
    %v468 = vsel %vm390, %v465, %v467
    %v469 = vrot.slane %v109, 1
    %v470 = vsel %vm390, %v467, %v469
    %v471 = vrot.slane %v110, 1
    %v472 = vsel %vm390, %v469, %v471
    %v473 = vrot.slane %v111, 1
    %v474 = vsel %vm390, %v471, %v473
    %v475 = vrot.slane %v112, 1
    %v476 = vsel %vm390, %v473, %v475
    %v477 = vrot.slane %v113, 1
    %v478 = vsel %vm390, %v475, %v477
    %v479 = vrot.slane %v114, 1
    %v480 = vsel %vm390, %v477, %v479
    %v481 = vrot.slane %v115, 1
    %v482 = vsel %vm390, %v479, %v481
    %v483 = vrot.slane %v116, 1
    %v484 = vsel %vm390, %v481, %v483
    %v485 = vrot.slane %v117, 1
    %v486 = vsel %vm390, %v483, %v485
    %v487 = vrot.slane %v118, 1
    %v488 = vsel %vm390, %v485, %v487
    %v489 = vrot.slane %v119, 1
    %v490 = vsel %vm390, %v487, %v489
    %v491 = vrot.slane %v120, 1
    %v492 = vsel %vm390, %v489, %v491
    %v493 = vrot.slane %v121, 1
    %v494 = vsel %vm390, %v491, %v493
    %v495 = vrot.slane %v122, 1
    %v496 = vsel %vm390, %v493, %v495
    %v497 = vrot.slane %v123, 1
    %v498 = vsel %vm390, %v495, %v497
    %v499 = vrot.slane %v124, 1
    %v500 = vsel %vm390, %v497, %v499
    %v501 = vrot.slane %v125, 1
    %v502 = vsel %vm390, %v499, %v501
    %v503 = vrot.slane %v126, 1
    %v504 = vsel %vm390, %v501, %v503
    %v505 = vrot.slane %v127, 1
    %v506 = vsel %vm390, %v503, %v505
    %v507 = vrot.slane %v128, 1
    %v508 = vsel %vm390, %v505, %v507
    %v509 = vrot.slane %v129, 1
    %v510 = vsel %vm390, %v507, %v509
    %v511 = vrot.slane %v130, 1
    %v512 = vsel %vm390, %v509, %v511
    %v513 = vrot.slane %v131, 1
    %v514 = vsel %vm390, %v511, %v513
    %v515 = vrot.slane %v132, 1
    %v516 = vsel %vm390, %v513, %v515
    %v581 = vsel %vm390, %v452, 0.0
    %v582 = vsel %vm390, %v515, 0.0
    %v583 = vpack.c.bf16 %v200, %v388
    %v584 = vpack.c.bf16 %v204, %v202
    %v585 = vpack.c.bf16 %v208, %v206
    %v586 = vpack.c.bf16 %v212, %v210
    %v587 = vpack.c.bf16 %v216, %v214
    %v588 = vpack.c.bf16 %v220, %v218
    %v589 = vpack.c.bf16 %v224, %v222
    %v590 = vpack.c.bf16 %v228, %v226
    %v591 = vpack.c.bf16 %v232, %v230
    %v592 = vpack.c.bf16 %v236, %v234
    %v593 = vpack.c.bf16 %v240, %v238
    %v594 = vpack.c.bf16 %v244, %v242
    %v595 = vpack.c.bf16 %v248, %v246
    %v596 = vpack.c.bf16 %v252, %v250
    %v597 = vpack.c.bf16 %v256, %v254
    %v598 = vpack.c.bf16 %v260, %v258
    %v599 = vpack.c.bf16 %v263, %v389
    %v600 = vpack.c.bf16 %v267, %v265
    %v601 = vpack.c.bf16 %v271, %v269
    %v602 = vpack.c.bf16 %v275, %v273
    %v603 = vpack.c.bf16 %v279, %v277
    %v604 = vpack.c.bf16 %v283, %v281
    %v605 = vpack.c.bf16 %v287, %v285
    %v606 = vpack.c.bf16 %v291, %v289
    %v607 = vpack.c.bf16 %v295, %v293
    %v608 = vpack.c.bf16 %v299, %v297
    %v609 = vpack.c.bf16 %v303, %v301
    %v610 = vpack.c.bf16 %v307, %v305
    %v611 = vpack.c.bf16 %v311, %v309
    %v612 = vpack.c.bf16 %v315, %v313
    %v613 = vpack.c.bf16 %v319, %v317
    %v614 = vpack.c.bf16 %v323, %v321
    %v615 = vld [vmem:[#allocation5] sm:$0xf]
    %v616 = vld [vmem:[#allocation5 + $0x4] sm:$0xf]
    %v617 = vld [vmem:[#allocation5 + $0x8] sm:$0xf]
    %v618 = vld [vmem:[#allocation5 + $0xc] sm:$0xf]
    %v619 = vld [vmem:[#allocation5 + $0x10] sm:$0xf]
    %v620 = vld [vmem:[#allocation5 + $0x14] sm:$0xf]
    %v621 = vld [vmem:[#allocation5 + $0x18] sm:$0xf]
    %v622 = vld [vmem:[#allocation5 + $0x1c] sm:$0xf]
    %v623 = vld [vmem:[#allocation5 + $0x20] sm:$0xf]
    %v624 = vld [vmem:[#allocation5 + $0x24] sm:$0xf]
    %v625 = vld [vmem:[#allocation5 + $0x28] sm:$0xf]
    %v626 = vld [vmem:[#allocation5 + $0x2c] sm:$0xf]
    %v627 = vld [vmem:[#allocation5 + $0x30] sm:$0xf]
    %v628 = vld [vmem:[#allocation5 + $0x34] sm:$0xf]
    %v629 = vld [vmem:[#allocation5 + $0x38] sm:$0xf]
    %v630 = vld [vmem:[#allocation5 + $0x3c] sm:$0xf]
    %v631 = vpack.c.bf16 %v70, %v69
    %v632 = vpack.c.bf16 %v72, %v71
    %v633 = vpack.c.bf16 %v74, %v73
    %v634 = vpack.c.bf16 %v76, %v75
    %v635 = vpack.c.bf16 %v78, %v77
    %v636 = vpack.c.bf16 %v80, %v79
    %v637 = vpack.c.bf16 %v82, %v81
    %v638 = vpack.c.bf16 %v84, %v83
    %v639 = vpack.c.bf16 %v86, %v85
    %v640 = vpack.c.bf16 %v88, %v87
    %v641 = vpack.c.bf16 %v90, %v89
    %v642 = vpack.c.bf16 %v92, %v91
    %v643 = vpack.c.bf16 %v94, %v93
    %v644 = vpack.c.bf16 %v96, %v95
    %v645 = vpack.c.bf16 %v98, %v97
    %v646 = vpack.c.bf16 %v100, %v99
    %v647 = vpack.c.bf16 %v102, %v101
    %v648 = vpack.c.bf16 %v104, %v103
    %v649 = vpack.c.bf16 %v106, %v105
    %v650 = vpack.c.bf16 %v108, %v107
    %v651 = vpack.c.bf16 %v110, %v109
    %v652 = vpack.c.bf16 %v112, %v111
    %v653 = vpack.c.bf16 %v114, %v113
    %v654 = vpack.c.bf16 %v116, %v115
    %v655 = vpack.c.bf16 %v118, %v117
    %v656 = vpack.c.bf16 %v120, %v119
    %v657 = vpack.c.bf16 %v122, %v121
    %v658 = vpack.c.bf16 %v124, %v123
    %v659 = vpack.c.bf16 %v126, %v125
    %v660 = vpack.c.bf16 %v128, %v127
    %v661 = vpack.c.bf16 %v130, %v129
    %v662 = vpack.c.bf16 %v132, %v131
    %s663 = scalar_lea.vmem [#allocation5], 64
    %v664 = vld [vmem:[%s663] sm:$0xf]
    %v665 = vld [vmem:[%s663 + $0x4] sm:$0xf]
    %v666 = vld [vmem:[%s663 + $0x8] sm:$0xf]
    %v667 = vld [vmem:[%s663 + $0xc] sm:$0xf]
    %v668 = vld [vmem:[%s663 + $0x10] sm:$0xf]
    %v669 = vld [vmem:[%s663 + $0x14] sm:$0xf]
    %v670 = vld [vmem:[%s663 + $0x18] sm:$0xf]
    %v671 = vld [vmem:[%s663 + $0x1c] sm:$0xf]
    %v672 = vld [vmem:[%s663 + $0x20] sm:$0xf]
    %v673 = vld [vmem:[%s663 + $0x24] sm:$0xf]
    %v674 = vld [vmem:[%s663 + $0x28] sm:$0xf]
    %v675 = vld [vmem:[%s663 + $0x2c] sm:$0xf]
    %v676 = vld [vmem:[%s663 + $0x30] sm:$0xf]
    %v677 = vld [vmem:[%s663 + $0x34] sm:$0xf]
    %v678 = vld [vmem:[%s663 + $0x38] sm:$0xf]
    %v679 = vld [vmem:[%s663 + $0x3c] sm:$0xf]
    %v696 = vunpack.c.l.b16 %v664
    %v697 = vunpack.c.l.b16 %v665
    %v698 = vunpack.c.l.b16 %v666
    %v699 = vunpack.c.l.b16 %v667
    %v700 = vunpack.c.l.b16 %v668
    %v701 = vunpack.c.l.b16 %v669
    %v702 = vunpack.c.l.b16 %v670
    %v703 = vunpack.c.l.b16 %v671
    %v704 = vunpack.c.l.b16 %v672
    %v705 = vunpack.c.l.b16 %v673
    %v706 = vunpack.c.l.b16 %v674
    %v707 = vunpack.c.l.b16 %v675
    %v708 = vunpack.c.l.b16 %v676
    %v709 = vunpack.c.l.b16 %v677
    %v710 = vunpack.c.l.b16 %v678
    %v711 = vunpack.c.l.b16 %v679
    %v712 = vpack.c.b16 %v697, %v696
    %v713 = vpack.c.b16 %v699, %v698
    %v714 = vpack.c.b16 %v701, %v700
    %v715 = vpack.c.b16 %v703, %v702
    %v716 = vpack.c.b16 %v705, %v704
    %v717 = vpack.c.b16 %v707, %v706
    %v718 = vpack.c.b16 %v709, %v708
    %v719 = vpack.c.b16 %v711, %v710
    %728 = vmatprep.subr.bf16.mxu0 0
    %729 = vmatpush1.bf16.msra.mxu0 %v712
    %730 = vmatprep.subr.bf16.mxu0 0
    %731 = vmatpush1.bf16.msra.mxu0 %v713
    %732 = vmatprep.subr.bf16.mxu0 0
    %733 = vmatpush1.bf16.msra.mxu0 %v714
    %734 = vmatprep.subr.bf16.mxu0 0
    %735 = vmatpush1.bf16.msra.mxu0 %v715
    %736 = vmatprep.subr.bf16.mxu0 0
    %737 = vmatpush1.bf16.msra.mxu0 %v716
    %738 = vmatprep.subr.bf16.mxu0 0
    %739 = vmatpush1.bf16.msra.mxu0 %v717
    %740 = vmatprep.subr.bf16.mxu0 0
    %741 = vmatpush1.bf16.msra.mxu0 %v718
    %742 = vmatprep.subr.bf16.mxu0 0
    %743 = vmatpush1.bf16.msra.mxu0 %v719
    %744 = vmatprep.subr.bf16.mxu0 0
    %745 = vmatpush1.bf16.msra.mxu0 0
    %746 = vmatprep.subr.bf16.mxu0 0
    %747 = vmatpush1.bf16.msra.mxu0 0
    %748 = vmatprep.subr.bf16.mxu0 0
    %749 = vmatpush1.bf16.msra.mxu0 0
    %750 = vmatprep.subr.bf16.mxu0 0
    %751 = vmatpush1.bf16.msra.mxu0 0
    %752 = vmatprep.subr.bf16.mxu0 0
    %753 = vmatpush1.bf16.msra.mxu0 0
    %754 = vmatprep.subr.bf16.mxu0 0
    %755 = vmatpush1.bf16.msra.mxu0 0
    %756 = vmatprep.subr.bf16.mxu0 0
    %757 = vmatpush1.bf16.msra.mxu0 0
    %758 = vmatprep.subr.bf16.mxu0 0
    %759 = vmatpush1.bf16.msra.mxu0 0
    %760 = vmatprep.mubr.bf16.mxu0 0
    %761 = vmatmul.mubr.bf16.gmra.mrb[0].mxu0 %v631
    %v762 = vpop.f32.mrb[0].mxu0
    %v763 = vadd.f32 0.0, %v762
    %v764 = vpop.f32.mrb[0].mxu0
    %v765 = vpop.f32.mrb[0].mxu0
    %v766 = vadd.f32 0.0, %v765
    %v767 = vpop.f32.mrb[0].mxu0
    %768 = vmatprep.mubr.bf16.mxu0 0
    %769 = vmatmul.mubr.bf16.gmra.mrb[0].mxu0 %v632
    %v770 = vpop.f32.mrb[0].mxu0
    %v771 = vadd.f32 0.0, %v770
    %v772 = vpop.f32.mrb[0].mxu0
    %v773 = vpop.f32.mrb[0].mxu0
    %v774 = vadd.f32 0.0, %v773
    %v775 = vpop.f32.mrb[0].mxu0
    %776 = vmatprep.mubr.bf16.mxu0 0
    %777 = vmatmul.mubr.bf16.gmra.mrb[0].mxu0 %v633
    %v778 = vpop.f32.mrb[0].mxu0
    %v779 = vadd.f32 0.0, %v778
    %v780 = vpop.f32.mrb[0].mxu0
    %v781 = vpop.f32.mrb[0].mxu0
    %v782 = vadd.f32 0.0, %v781
    %v783 = vpop.f32.mrb[0].mxu0
    %784 = vmatprep.mubr.bf16.mxu0 0
    %785 = vmatmul.mubr.bf16.gmra.mrb[0].mxu0 %v634
    %v786 = vpop.f32.mrb[0].mxu0
    %v787 = vadd.f32 0.0, %v786
    %v788 = vpop.f32.mrb[0].mxu0
    %v789 = vpop.f32.mrb[0].mxu0
    %v790 = vadd.f32 0.0, %v789
    %v791 = vpop.f32.mrb[0].mxu0
    %792 = vmatprep.mubr.bf16.mxu0 0
    %793 = vmatmul.mubr.bf16.gmra.mrb[0].mxu0 %v635
    %v794 = vpop.f32.mrb[0].mxu0
    %v795 = vadd.f32 0.0, %v794
    %v796 = vpop.f32.mrb[0].mxu0
    %v797 = vpop.f32.mrb[0].mxu0
    %v798 = vadd.f32 0.0, %v797
    %v799 = vpop.f32.mrb[0].mxu0
    %800 = vmatprep.mubr.bf16.mxu0 0
    %801 = vmatmul.mubr.bf16.gmra.mrb[0].mxu0 %v636
    %v802 = vpop.f32.mrb[0].mxu0
    %v803 = vadd.f32 0.0, %v802
    %v804 = vpop.f32.mrb[0].mxu0
    %v805 = vpop.f32.mrb[0].mxu0
    %v806 = vadd.f32 0.0, %v805
    %v807 = vpop.f32.mrb[0].mxu0
    %808 = vmatprep.mubr.bf16.mxu0 0
    %809 = vmatmul.mubr.bf16.gmra.mrb[0].mxu0 %v637
    %v810 = vpop.f32.mrb[0].mxu0
    %v811 = vadd.f32 0.0, %v810
    %v812 = vpop.f32.mrb[0].mxu0
    %v813 = vpop.f32.mrb[0].mxu0
    %v814 = vadd.f32 0.0, %v813
    %v815 = vpop.f32.mrb[0].mxu0
    %816 = vmatprep.mubr.bf16.mxu0 0
    %817 = vmatmul.mubr.bf16.gmra.mrb[0].mxu0 %v638
    %v818 = vpop.f32.mrb[0].mxu0
    %v819 = vadd.f32 0.0, %v818
    %v820 = vpop.f32.mrb[0].mxu0
    %v821 = vpop.f32.mrb[0].mxu0
    %v822 = vadd.f32 0.0, %v821
    %v823 = vpop.f32.mrb[0].mxu0
    %824 = vmatprep.mubr.bf16.mxu0 0
    %825 = vmatmul.mubr.bf16.gmra.mrb[0].mxu0 %v639
    %v826 = vpop.f32.mrb[0].mxu0
    %v827 = vadd.f32 0.0, %v826
    %v828 = vpop.f32.mrb[0].mxu0
    %v829 = vpop.f32.mrb[0].mxu0
    %v830 = vadd.f32 0.0, %v829
    %v831 = vpop.f32.mrb[0].mxu0
    %832 = vmatprep.mubr.bf16.mxu0 0
    %833 = vmatmul.mubr.bf16.gmra.mrb[0].mxu0 %v640
    %v834 = vpop.f32.mrb[0].mxu0
    %v835 = vadd.f32 0.0, %v834
    %v836 = vpop.f32.mrb[0].mxu0
    %v837 = vpop.f32.mrb[0].mxu0
    %v838 = vadd.f32 0.0, %v837
    %v839 = vpop.f32.mrb[0].mxu0
    %840 = vmatprep.mubr.bf16.mxu0 0
    %841 = vmatmul.mubr.bf16.gmra.mrb[0].mxu0 %v641
    %v842 = vpop.f32.mrb[0].mxu0
    %v843 = vadd.f32 0.0, %v842
    %v844 = vpop.f32.mrb[0].mxu0
    %v845 = vpop.f32.mrb[0].mxu0
    %v846 = vadd.f32 0.0, %v845
    %v847 = vpop.f32.mrb[0].mxu0
    %848 = vmatprep.mubr.bf16.mxu0 0
    %849 = vmatmul.mubr.bf16.gmra.mrb[0].mxu0 %v642
    %v850 = vpop.f32.mrb[0].mxu0
    %v851 = vadd.f32 0.0, %v850
    %v852 = vpop.f32.mrb[0].mxu0
    %v853 = vpop.f32.mrb[0].mxu0
    %v854 = vadd.f32 0.0, %v853
    %v855 = vpop.f32.mrb[0].mxu0
    %856 = vmatprep.mubr.bf16.mxu0 0
    %857 = vmatmul.mubr.bf16.gmra.mrb[0].mxu0 %v643
    %v858 = vpop.f32.mrb[0].mxu0
    %v859 = vadd.f32 0.0, %v858
    %v860 = vpop.f32.mrb[0].mxu0
    %v861 = vpop.f32.mrb[0].mxu0
    %v862 = vadd.f32 0.0, %v861
    %v863 = vpop.f32.mrb[0].mxu0
    %864 = vmatprep.mubr.bf16.mxu0 0
    %865 = vmatmul.mubr.bf16.gmra.mrb[0].mxu0 %v644
    %v866 = vpop.f32.mrb[0].mxu0
    %v867 = vadd.f32 0.0, %v866
    %v868 = vpop.f32.mrb[0].mxu0
    %v869 = vpop.f32.mrb[0].mxu0
    %v870 = vadd.f32 0.0, %v869
    %v871 = vpop.f32.mrb[0].mxu0
    %872 = vmatprep.mubr.bf16.mxu0 0
    %873 = vmatmul.mubr.bf16.gmra.mrb[0].mxu0 %v645
    %v874 = vpop.f32.mrb[0].mxu0
    %v875 = vadd.f32 0.0, %v874
    %v876 = vpop.f32.mrb[0].mxu0
    %v877 = vpop.f32.mrb[0].mxu0
    %v878 = vadd.f32 0.0, %v877
    %v879 = vpop.f32.mrb[0].mxu0
    %880 = vmatprep.mubr.bf16.mxu0 0
    %881 = vmatmul.mubr.bf16.gmra.mrb[0].mxu0 %v646
    %v882 = vpop.f32.mrb[0].mxu0
    %v883 = vadd.f32 0.0, %v882
    %v884 = vpop.f32.mrb[0].mxu0
    %v885 = vpop.f32.mrb[0].mxu0
    %v886 = vadd.f32 0.0, %v885
    %v887 = vpop.f32.mrb[0].mxu0
    %888 = vmatprep.mubr.bf16.mxu0 0
    %889 = vmatmul.mubr.bf16.gmra.mrb[0].mxu0 %v647
    %v890 = vpop.f32.mrb[0].mxu0
    %v891 = vadd.f32 0.0, %v890
    %v892 = vpop.f32.mrb[0].mxu0
    %v893 = vpop.f32.mrb[0].mxu0
    %v894 = vadd.f32 0.0, %v893
    %v895 = vpop.f32.mrb[0].mxu0
    %896 = vmatprep.mubr.bf16.mxu0 0
    %897 = vmatmul.mubr.bf16.gmra.mrb[0].mxu0 %v648
    %v898 = vpop.f32.mrb[0].mxu0
    %v899 = vadd.f32 0.0, %v898
    %v900 = vpop.f32.mrb[0].mxu0
    %v901 = vpop.f32.mrb[0].mxu0
    %v902 = vadd.f32 0.0, %v901
    %v903 = vpop.f32.mrb[0].mxu0
    %904 = vmatprep.mubr.bf16.mxu0 0
    %905 = vmatmul.mubr.bf16.gmra.mrb[0].mxu0 %v649
    %v906 = vpop.f32.mrb[0].mxu0
    %v907 = vadd.f32 0.0, %v906
    %v908 = vpop.f32.mrb[0].mxu0
    %v909 = vpop.f32.mrb[0].mxu0
    %v910 = vadd.f32 0.0, %v909
    %v911 = vpop.f32.mrb[0].mxu0
    %912 = vmatprep.mubr.bf16.mxu0 0
    %913 = vmatmul.mubr.bf16.gmra.mrb[0].mxu0 %v650
    %v914 = vpop.f32.mrb[0].mxu0
    %v915 = vadd.f32 0.0, %v914
    %v916 = vpop.f32.mrb[0].mxu0
    %v917 = vpop.f32.mrb[0].mxu0
    %v918 = vadd.f32 0.0, %v917
    %v919 = vpop.f32.mrb[0].mxu0
    %920 = vmatprep.mubr.bf16.mxu0 0
    %921 = vmatmul.mubr.bf16.gmra.mrb[0].mxu0 %v651
    %v922 = vpop.f32.mrb[0].mxu0
    %v923 = vadd.f32 0.0, %v922
    %v924 = vpop.f32.mrb[0].mxu0
    %v925 = vpop.f32.mrb[0].mxu0
    %v926 = vadd.f32 0.0, %v925
    %v927 = vpop.f32.mrb[0].mxu0
    %928 = vmatprep.mubr.bf16.mxu0 0
    %929 = vmatmul.mubr.bf16.gmra.mrb[0].mxu0 %v652
    %v930 = vpop.f32.mrb[0].mxu0
    %v931 = vadd.f32 0.0, %v930
    %v932 = vpop.f32.mrb[0].mxu0
    %v933 = vpop.f32.mrb[0].mxu0
    %v934 = vadd.f32 0.0, %v933
    %v935 = vpop.f32.mrb[0].mxu0
    %936 = vmatprep.mubr.bf16.mxu0 0
    %937 = vmatmul.mubr.bf16.gmra.mrb[0].mxu0 %v653
    %v938 = vpop.f32.mrb[0].mxu0
    %v939 = vadd.f32 0.0, %v938
    %v940 = vpop.f32.mrb[0].mxu0
    %v941 = vpop.f32.mrb[0].mxu0
    %v942 = vadd.f32 0.0, %v941
    %v943 = vpop.f32.mrb[0].mxu0
    %944 = vmatprep.mubr.bf16.mxu0 0
    %945 = vmatmul.mubr.bf16.gmra.mrb[0].mxu0 %v654
    %v946 = vpop.f32.mrb[0].mxu0
    %v947 = vadd.f32 0.0, %v946
    %v948 = vpop.f32.mrb[0].mxu0
    %v949 = vpop.f32.mrb[0].mxu0
    %v950 = vadd.f32 0.0, %v949
    %v951 = vpop.f32.mrb[0].mxu0
    %952 = vmatprep.mubr.bf16.mxu0 0
    %953 = vmatmul.mubr.bf16.gmra.mrb[0].mxu0 %v655
    %v954 = vpop.f32.mrb[0].mxu0
    %v955 = vadd.f32 0.0, %v954
    %v956 = vpop.f32.mrb[0].mxu0
    %v957 = vpop.f32.mrb[0].mxu0
    %v958 = vadd.f32 0.0, %v957
    %v959 = vpop.f32.mrb[0].mxu0
    %960 = vmatprep.mubr.bf16.mxu0 0
    %961 = vmatmul.mubr.bf16.gmra.mrb[0].mxu0 %v656
    %v962 = vpop.f32.mrb[0].mxu0
    %v963 = vadd.f32 0.0, %v962
    %v964 = vpop.f32.mrb[0].mxu0
    %v965 = vpop.f32.mrb[0].mxu0
    %v966 = vadd.f32 0.0, %v965
    %v967 = vpop.f32.mrb[0].mxu0
    %968 = vmatprep.mubr.bf16.mxu0 0
    %969 = vmatmul.mubr.bf16.gmra.mrb[0].mxu0 %v657
    %v970 = vpop.f32.mrb[0].mxu0
    %v971 = vadd.f32 0.0, %v970
    %v972 = vpop.f32.mrb[0].mxu0
    %v973 = vpop.f32.mrb[0].mxu0
    %v974 = vadd.f32 0.0, %v973
    %v975 = vpop.f32.mrb[0].mxu0
    %976 = vmatprep.mubr.bf16.mxu0 0
    %977 = vmatmul.mubr.bf16.gmra.mrb[0].mxu0 %v658
    %v978 = vpop.f32.mrb[0].mxu0
    %v979 = vadd.f32 0.0, %v978
    %v980 = vpop.f32.mrb[0].mxu0
    %v981 = vpop.f32.mrb[0].mxu0
    %v982 = vadd.f32 0.0, %v981
    %v983 = vpop.f32.mrb[0].mxu0
    %984 = vmatprep.mubr.bf16.mxu0 0
    %985 = vmatmul.mubr.bf16.gmra.mrb[0].mxu0 %v659
    %v986 = vpop.f32.mrb[0].mxu0
    %v987 = vadd.f32 0.0, %v986
    %v988 = vpop.f32.mrb[0].mxu0
    %v989 = vpop.f32.mrb[0].mxu0
    %v990 = vadd.f32 0.0, %v989
    %v991 = vpop.f32.mrb[0].mxu0
    %992 = vmatprep.mubr.bf16.mxu0 0
    %993 = vmatmul.mubr.bf16.gmra.mrb[0].mxu0 %v660
    %v994 = vpop.f32.mrb[0].mxu0
    %v995 = vadd.f32 0.0, %v994
    %v996 = vpop.f32.mrb[0].mxu0
    %v997 = vpop.f32.mrb[0].mxu0
    %v998 = vadd.f32 0.0, %v997
    %v999 = vpop.f32.mrb[0].mxu0
    %1000 = vmatprep.mubr.bf16.mxu0 0
    %1001 = vmatmul.mubr.bf16.gmra.mrb[0].mxu0 %v661
    %v1002 = vpop.f32.mrb[0].mxu0
    %v1003 = vadd.f32 0.0, %v1002
    %v1004 = vpop.f32.mrb[0].mxu0
    %v1005 = vpop.f32.mrb[0].mxu0
    %v1006 = vadd.f32 0.0, %v1005
    %v1007 = vpop.f32.mrb[0].mxu0
    %1008 = vmatprep.mubr.bf16.mxu0 0
    %1009 = vmatmul.mubr.bf16.gmra.mrb[0].mxu0 %v662
    %v1010 = vpop.f32.mrb[0].mxu0
    %v1011 = vadd.f32 0.0, %v1010
    %v1012 = vpop.f32.mrb[0].mxu0
    %v1013 = vpop.f32.mrb[0].mxu0
    %v1014 = vadd.f32 0.0, %v1013
    %v1015 = vpop.f32.mrb[0].mxu0
    %1016 = vdwg.mxu0
    %v1033 = vunpack.c.l.b16 %v615
    %v1034 = vunpack.c.l.b16 %v616
    %v1035 = vunpack.c.l.b16 %v617
    %v1036 = vunpack.c.l.b16 %v618
    %v1037 = vunpack.c.l.b16 %v619
    %v1038 = vunpack.c.l.b16 %v620
    %v1039 = vunpack.c.l.b16 %v621
    %v1040 = vunpack.c.l.b16 %v622
    %v1041 = vunpack.c.l.b16 %v623
    %v1042 = vunpack.c.l.b16 %v624
    %v1043 = vunpack.c.l.b16 %v625
    %v1044 = vunpack.c.l.b16 %v626
    %v1045 = vunpack.c.l.b16 %v627
    %v1046 = vunpack.c.l.b16 %v628
    %v1047 = vunpack.c.l.b16 %v629
    %v1048 = vunpack.c.l.b16 %v630
    %v1049 = vpack.c.b16 %v1034, %v1033
    %v1050 = vpack.c.b16 %v1036, %v1035
    %v1051 = vpack.c.b16 %v1038, %v1037
    %v1052 = vpack.c.b16 %v1040, %v1039
    %v1053 = vpack.c.b16 %v1042, %v1041
    %v1054 = vpack.c.b16 %v1044, %v1043
    %v1055 = vpack.c.b16 %v1046, %v1045
    %v1056 = vpack.c.b16 %v1048, %v1047
    %1065 = vmatprep.subr.bf16.mxu0 0
    %1066 = vmatpush1.bf16.msra.mxu0 %v1049
    %1067 = vmatprep.subr.bf16.mxu0 0
    %1068 = vmatpush1.bf16.msra.mxu0 %v1050
    %1069 = vmatprep.subr.bf16.mxu0 0
    %1070 = vmatpush1.bf16.msra.mxu0 %v1051
    %1071 = vmatprep.subr.bf16.mxu0 0
    %1072 = vmatpush1.bf16.msra.mxu0 %v1052
    %1073 = vmatprep.subr.bf16.mxu0 0
    %1074 = vmatpush1.bf16.msra.mxu0 %v1053
    %1075 = vmatprep.subr.bf16.mxu0 0
    %1076 = vmatpush1.bf16.msra.mxu0 %v1054
    %1077 = vmatprep.subr.bf16.mxu0 0
    %1078 = vmatpush1.bf16.msra.mxu0 %v1055
    %1079 = vmatprep.subr.bf16.mxu0 0
    %1080 = vmatpush1.bf16.msra.mxu0 %v1056
    %1081 = vmatprep.subr.bf16.mxu0 0
    %1082 = vmatpush1.bf16.msra.mxu0 0
    %1083 = vmatprep.subr.bf16.mxu0 0
    %1084 = vmatpush1.bf16.msra.mxu0 0
    %1085 = vmatprep.subr.bf16.mxu0 0
    %1086 = vmatpush1.bf16.msra.mxu0 0
    %1087 = vmatprep.subr.bf16.mxu0 0
    %1088 = vmatpush1.bf16.msra.mxu0 0
    %1089 = vmatprep.subr.bf16.mxu0 0
    %1090 = vmatpush1.bf16.msra.mxu0 0
    %1091 = vmatprep.subr.bf16.mxu0 0
    %1092 = vmatpush1.bf16.msra.mxu0 0
    %1093 = vmatprep.subr.bf16.mxu0 0
    %1094 = vmatpush1.bf16.msra.mxu0 0
    %1095 = vmatprep.subr.bf16.mxu0 0
    %1096 = vmatpush1.bf16.msra.mxu0 0
    %1097 = vmatprep.mubr.bf16.mxu0 0
    %1098 = vmatmul.mubr.bf16.gmra.mrb[0].mxu0 %v583
    %v1099 = vpop.f32.mrb[0].mxu0
    %v1100 = vadd.f32 %v763, %v1099
    %v1101 = vpop.f32.mrb[0].mxu0
    %v1102 = vpop.f32.mrb[0].mxu0
    %v1103 = vadd.f32 %v766, %v1102
    %v1104 = vpop.f32.mrb[0].mxu0
    %1105 = vmatprep.mubr.bf16.mxu0 0
    %1106 = vmatmul.mubr.bf16.gmra.mrb[0].mxu0 %v584
    %v1107 = vpop.f32.mrb[0].mxu0
    %v1108 = vadd.f32 %v771, %v1107
    %v1109 = vpop.f32.mrb[0].mxu0
    %v1110 = vpop.f32.mrb[0].mxu0
    %v1111 = vadd.f32 %v774, %v1110
    %v1112 = vpop.f32.mrb[0].mxu0
    %1113 = vmatprep.mubr.bf16.mxu0 0
    %1114 = vmatmul.mubr.bf16.gmra.mrb[0].mxu0 %v585
    %v1115 = vpop.f32.mrb[0].mxu0
    %v1116 = vadd.f32 %v779, %v1115
    %v1117 = vpop.f32.mrb[0].mxu0
    %v1118 = vpop.f32.mrb[0].mxu0
    %v1119 = vadd.f32 %v782, %v1118
    %v1120 = vpop.f32.mrb[0].mxu0
    %1121 = vmatprep.mubr.bf16.mxu0 0
    %1122 = vmatmul.mubr.bf16.gmra.mrb[0].mxu0 %v586
    %v1123 = vpop.f32.mrb[0].mxu0
    %v1124 = vadd.f32 %v787, %v1123
    %v1125 = vpop.f32.mrb[0].mxu0
    %v1126 = vpop.f32.mrb[0].mxu0
    %v1127 = vadd.f32 %v790, %v1126
    %v1128 = vpop.f32.mrb[0].mxu0
    %1129 = vmatprep.mubr.bf16.mxu0 0
    %1130 = vmatmul.mubr.bf16.gmra.mrb[0].mxu0 %v587
    %v1131 = vpop.f32.mrb[0].mxu0
    %v1132 = vadd.f32 %v795, %v1131
    %v1133 = vpop.f32.mrb[0].mxu0
    %v1134 = vpop.f32.mrb[0].mxu0
    %v1135 = vadd.f32 %v798, %v1134
    %v1136 = vpop.f32.mrb[0].mxu0
    %1137 = vmatprep.mubr.bf16.mxu0 0
    %1138 = vmatmul.mubr.bf16.gmra.mrb[0].mxu0 %v588
    %v1139 = vpop.f32.mrb[0].mxu0
    %v1140 = vadd.f32 %v803, %v1139
    %v1141 = vpop.f32.mrb[0].mxu0
    %v1142 = vpop.f32.mrb[0].mxu0
    %v1143 = vadd.f32 %v806, %v1142
    %v1144 = vpop.f32.mrb[0].mxu0
    %1145 = vmatprep.mubr.bf16.mxu0 0
    %1146 = vmatmul.mubr.bf16.gmra.mrb[0].mxu0 %v589
    %v1147 = vpop.f32.mrb[0].mxu0
    %v1148 = vadd.f32 %v811, %v1147
    %v1149 = vpop.f32.mrb[0].mxu0
    %v1150 = vpop.f32.mrb[0].mxu0
    %v1151 = vadd.f32 %v814, %v1150
    %v1152 = vpop.f32.mrb[0].mxu0
    %1153 = vmatprep.mubr.bf16.mxu0 0
    %1154 = vmatmul.mubr.bf16.gmra.mrb[0].mxu0 %v590
    %v1155 = vpop.f32.mrb[0].mxu0
    %v1156 = vadd.f32 %v819, %v1155
    %v1157 = vpop.f32.mrb[0].mxu0
    %v1158 = vpop.f32.mrb[0].mxu0
    %v1159 = vadd.f32 %v822, %v1158
    %v1160 = vpop.f32.mrb[0].mxu0
    %1161 = vmatprep.mubr.bf16.mxu0 0
    %1162 = vmatmul.mubr.bf16.gmra.mrb[0].mxu0 %v591
    %v1163 = vpop.f32.mrb[0].mxu0
    %v1164 = vadd.f32 %v827, %v1163
    %v1165 = vpop.f32.mrb[0].mxu0
    %v1166 = vpop.f32.mrb[0].mxu0
    %v1167 = vadd.f32 %v830, %v1166
    %v1168 = vpop.f32.mrb[0].mxu0
    %1169 = vmatprep.mubr.bf16.mxu0 0
    %1170 = vmatmul.mubr.bf16.gmra.mrb[0].mxu0 %v592
    %v1171 = vpop.f32.mrb[0].mxu0
    %v1172 = vadd.f32 %v835, %v1171
    %v1173 = vpop.f32.mrb[0].mxu0
    %v1174 = vpop.f32.mrb[0].mxu0
    %v1175 = vadd.f32 %v838, %v1174
    %v1176 = vpop.f32.mrb[0].mxu0
    %1177 = vmatprep.mubr.bf16.mxu0 0
    %1178 = vmatmul.mubr.bf16.gmra.mrb[0].mxu0 %v593
    %v1179 = vpop.f32.mrb[0].mxu0
    %v1180 = vadd.f32 %v843, %v1179
    %v1181 = vpop.f32.mrb[0].mxu0
    %v1182 = vpop.f32.mrb[0].mxu0
    %v1183 = vadd.f32 %v846, %v1182
    %v1184 = vpop.f32.mrb[0].mxu0
    %1185 = vmatprep.mubr.bf16.mxu0 0
    %1186 = vmatmul.mubr.bf16.gmra.mrb[0].mxu0 %v594
    %v1187 = vpop.f32.mrb[0].mxu0
    %v1188 = vadd.f32 %v851, %v1187
    %v1189 = vpop.f32.mrb[0].mxu0
    %v1190 = vpop.f32.mrb[0].mxu0
    %v1191 = vadd.f32 %v854, %v1190
    %v1192 = vpop.f32.mrb[0].mxu0
    %1193 = vmatprep.mubr.bf16.mxu0 0
    %1194 = vmatmul.mubr.bf16.gmra.mrb[0].mxu0 %v595
    %v1195 = vpop.f32.mrb[0].mxu0
    %v1196 = vadd.f32 %v859, %v1195
    %v1197 = vpop.f32.mrb[0].mxu0
    %v1198 = vpop.f32.mrb[0].mxu0
    %v1199 = vadd.f32 %v862, %v1198
    %v1200 = vpop.f32.mrb[0].mxu0
    %1201 = vmatprep.mubr.bf16.mxu0 0
    %1202 = vmatmul.mubr.bf16.gmra.mrb[0].mxu0 %v596
    %v1203 = vpop.f32.mrb[0].mxu0
    %v1204 = vadd.f32 %v867, %v1203
    %v1205 = vpop.f32.mrb[0].mxu0
    %v1206 = vpop.f32.mrb[0].mxu0
    %v1207 = vadd.f32 %v870, %v1206
    %v1208 = vpop.f32.mrb[0].mxu0
    %1209 = vmatprep.mubr.bf16.mxu0 0
    %1210 = vmatmul.mubr.bf16.gmra.mrb[0].mxu0 %v597
    %v1211 = vpop.f32.mrb[0].mxu0
    %v1212 = vadd.f32 %v875, %v1211
    %v1213 = vpop.f32.mrb[0].mxu0
    %v1214 = vpop.f32.mrb[0].mxu0
    %v1215 = vadd.f32 %v878, %v1214
    %v1216 = vpop.f32.mrb[0].mxu0
    %1217 = vmatprep.mubr.bf16.mxu0 0
    %1218 = vmatmul.mubr.bf16.gmra.mrb[0].mxu0 %v598
    %v1219 = vpop.f32.mrb[0].mxu0
    %v1220 = vadd.f32 %v883, %v1219
    %v1221 = vpop.f32.mrb[0].mxu0
    %v1222 = vpop.f32.mrb[0].mxu0
    %v1223 = vadd.f32 %v886, %v1222
    %v1224 = vpop.f32.mrb[0].mxu0
    %1225 = vmatprep.mubr.bf16.mxu0 0
    %1226 = vmatmul.mubr.bf16.gmra.mrb[0].mxu0 %v599
    %v1227 = vpop.f32.mrb[0].mxu0
    %v1228 = vadd.f32 %v891, %v1227
    %v1229 = vpop.f32.mrb[0].mxu0
    %v1230 = vpop.f32.mrb[0].mxu0
    %v1231 = vadd.f32 %v894, %v1230
    %v1232 = vpop.f32.mrb[0].mxu0
    %1233 = vmatprep.mubr.bf16.mxu0 0
    %1234 = vmatmul.mubr.bf16.gmra.mrb[0].mxu0 %v600
    %v1235 = vpop.f32.mrb[0].mxu0
    %v1236 = vadd.f32 %v899, %v1235
    %v1237 = vpop.f32.mrb[0].mxu0
    %v1238 = vpop.f32.mrb[0].mxu0
    %v1239 = vadd.f32 %v902, %v1238
    %v1240 = vpop.f32.mrb[0].mxu0
    %1241 = vmatprep.mubr.bf16.mxu0 0
    %1242 = vmatmul.mubr.bf16.gmra.mrb[0].mxu0 %v601
    %v1243 = vpop.f32.mrb[0].mxu0
    %v1244 = vadd.f32 %v907, %v1243
    %v1245 = vpop.f32.mrb[0].mxu0
    %v1246 = vpop.f32.mrb[0].mxu0
    %v1247 = vadd.f32 %v910, %v1246
    %v1248 = vpop.f32.mrb[0].mxu0
    %1249 = vmatprep.mubr.bf16.mxu0 0
    %1250 = vmatmul.mubr.bf16.gmra.mrb[0].mxu0 %v602
    %v1251 = vpop.f32.mrb[0].mxu0
    %v1252 = vadd.f32 %v915, %v1251
    %v1253 = vpop.f32.mrb[0].mxu0
    %v1254 = vpop.f32.mrb[0].mxu0
    %v1255 = vadd.f32 %v918, %v1254
    %v1256 = vpop.f32.mrb[0].mxu0
    %1257 = vmatprep.mubr.bf16.mxu0 0
    %1258 = vmatmul.mubr.bf16.gmra.mrb[0].mxu0 %v603
    %v1259 = vpop.f32.mrb[0].mxu0
    %v1260 = vadd.f32 %v923, %v1259
    %v1261 = vpop.f32.mrb[0].mxu0
    %v1262 = vpop.f32.mrb[0].mxu0
    %v1263 = vadd.f32 %v926, %v1262
    %v1264 = vpop.f32.mrb[0].mxu0
    %1265 = vmatprep.mubr.bf16.mxu0 0
    %1266 = vmatmul.mubr.bf16.gmra.mrb[0].mxu0 %v604
    %v1267 = vpop.f32.mrb[0].mxu0
    %v1268 = vadd.f32 %v931, %v1267
    %v1269 = vpop.f32.mrb[0].mxu0
    %v1270 = vpop.f32.mrb[0].mxu0
    %v1271 = vadd.f32 %v934, %v1270
    %v1272 = vpop.f32.mrb[0].mxu0
    %1273 = vmatprep.mubr.bf16.mxu0 0
    %1274 = vmatmul.mubr.bf16.gmra.mrb[0].mxu0 %v605
    %v1275 = vpop.f32.mrb[0].mxu0
    %v1276 = vadd.f32 %v939, %v1275
    %v1277 = vpop.f32.mrb[0].mxu0
    %v1278 = vpop.f32.mrb[0].mxu0
    %v1279 = vadd.f32 %v942, %v1278
    %v1280 = vpop.f32.mrb[0].mxu0
    %1281 = vmatprep.mubr.bf16.mxu0 0
    %1282 = vmatmul.mubr.bf16.gmra.mrb[0].mxu0 %v606
    %v1283 = vpop.f32.mrb[0].mxu0
    %v1284 = vadd.f32 %v947, %v1283
    %v1285 = vpop.f32.mrb[0].mxu0
    %v1286 = vpop.f32.mrb[0].mxu0
    %v1287 = vadd.f32 %v950, %v1286
    %v1288 = vpop.f32.mrb[0].mxu0
    %1289 = vmatprep.mubr.bf16.mxu0 0
    %1290 = vmatmul.mubr.bf16.gmra.mrb[0].mxu0 %v607
    %v1291 = vpop.f32.mrb[0].mxu0
    %v1292 = vadd.f32 %v955, %v1291
    %v1293 = vpop.f32.mrb[0].mxu0
    %v1294 = vpop.f32.mrb[0].mxu0
    %v1295 = vadd.f32 %v958, %v1294
    %v1296 = vpop.f32.mrb[0].mxu0
    %1297 = vmatprep.mubr.bf16.mxu0 0
    %1298 = vmatmul.mubr.bf16.gmra.mrb[0].mxu0 %v608
    %v1299 = vpop.f32.mrb[0].mxu0
    %v1300 = vadd.f32 %v963, %v1299
    %v1301 = vpop.f32.mrb[0].mxu0
    %v1302 = vpop.f32.mrb[0].mxu0
    %v1303 = vadd.f32 %v966, %v1302
    %v1304 = vpop.f32.mrb[0].mxu0
    %1305 = vmatprep.mubr.bf16.mxu0 0
    %1306 = vmatmul.mubr.bf16.gmra.mrb[0].mxu0 %v609
    %v1307 = vpop.f32.mrb[0].mxu0
    %v1308 = vadd.f32 %v971, %v1307
    %v1309 = vpop.f32.mrb[0].mxu0
    %v1310 = vpop.f32.mrb[0].mxu0
    %v1311 = vadd.f32 %v974, %v1310
    %v1312 = vpop.f32.mrb[0].mxu0
    %1313 = vmatprep.mubr.bf16.mxu0 0
    %1314 = vmatmul.mubr.bf16.gmra.mrb[0].mxu0 %v610
    %v1315 = vpop.f32.mrb[0].mxu0
    %v1316 = vadd.f32 %v979, %v1315
    %v1317 = vpop.f32.mrb[0].mxu0
    %v1318 = vpop.f32.mrb[0].mxu0
    %v1319 = vadd.f32 %v982, %v1318
    %v1320 = vpop.f32.mrb[0].mxu0
    %1321 = vmatprep.mubr.bf16.mxu0 0
    %1322 = vmatmul.mubr.bf16.gmra.mrb[0].mxu0 %v611
    %v1323 = vpop.f32.mrb[0].mxu0
    %v1324 = vadd.f32 %v987, %v1323
    %v1325 = vpop.f32.mrb[0].mxu0
    %v1326 = vpop.f32.mrb[0].mxu0
    %v1327 = vadd.f32 %v990, %v1326
    %v1328 = vpop.f32.mrb[0].mxu0
    %1329 = vmatprep.mubr.bf16.mxu0 0
    %1330 = vmatmul.mubr.bf16.gmra.mrb[0].mxu0 %v612
    %v1331 = vpop.f32.mrb[0].mxu0
    %v1332 = vadd.f32 %v995, %v1331
    %v1333 = vpop.f32.mrb[0].mxu0
    %v1334 = vpop.f32.mrb[0].mxu0
    %v1335 = vadd.f32 %v998, %v1334
    %v1336 = vpop.f32.mrb[0].mxu0
    %1337 = vmatprep.mubr.bf16.mxu0 0
    %1338 = vmatmul.mubr.bf16.gmra.mrb[0].mxu0 %v613
    %v1339 = vpop.f32.mrb[0].mxu0
    %v1340 = vadd.f32 %v1003, %v1339
    %v1341 = vpop.f32.mrb[0].mxu0
    %v1342 = vpop.f32.mrb[0].mxu0
    %v1343 = vadd.f32 %v1006, %v1342
    %v1344 = vpop.f32.mrb[0].mxu0
    %1345 = vmatprep.mubr.bf16.mxu0 0
    %1346 = vmatmul.mubr.bf16.gmra.mrb[0].mxu0 %v614
    %v1347 = vpop.f32.mrb[0].mxu0
    %v1348 = vadd.f32 %v1011, %v1347
    %v1349 = vpop.f32.mrb[0].mxu0
    %v1350 = vpop.f32.mrb[0].mxu0
    %v1351 = vadd.f32 %v1014, %v1350
    %v1352 = vpop.f32.mrb[0].mxu0
    %1353 = vdwg.mxu0
    %v1354 = vpack.c.bf16 %v395, %v393
    %v1355 = vpack.c.bf16 %v399, %v397
    %v1356 = vpack.c.bf16 %v403, %v401
    %v1357 = vpack.c.bf16 %v407, %v405
    %v1358 = vpack.c.bf16 %v411, %v409
    %v1359 = vpack.c.bf16 %v415, %v413
    %v1360 = vpack.c.bf16 %v419, %v417
    %v1361 = vpack.c.bf16 %v423, %v421
    %v1362 = vpack.c.bf16 %v427, %v425
    %v1363 = vpack.c.bf16 %v431, %v429
    %v1364 = vpack.c.bf16 %v435, %v433
    %v1365 = vpack.c.bf16 %v439, %v437
    %v1366 = vpack.c.bf16 %v443, %v441
    %v1367 = vpack.c.bf16 %v447, %v445
    %v1368 = vpack.c.bf16 %v451, %v449
    %v1369 = vpack.c.bf16 %v581, %v453
    %v1370 = vpack.c.bf16 %v458, %v456
    %v1371 = vpack.c.bf16 %v462, %v460
    %v1372 = vpack.c.bf16 %v466, %v464
    %v1373 = vpack.c.bf16 %v470, %v468
    %v1374 = vpack.c.bf16 %v474, %v472
    %v1375 = vpack.c.bf16 %v478, %v476
    %v1376 = vpack.c.bf16 %v482, %v480
    %v1377 = vpack.c.bf16 %v486, %v484
    %v1378 = vpack.c.bf16 %v490, %v488
    %v1379 = vpack.c.bf16 %v494, %v492
    %v1380 = vpack.c.bf16 %v498, %v496
    %v1381 = vpack.c.bf16 %v502, %v500
    %v1382 = vpack.c.bf16 %v506, %v504
    %v1383 = vpack.c.bf16 %v510, %v508
    %v1384 = vpack.c.bf16 %v514, %v512
    %v1385 = vpack.c.bf16 %v582, %v516
    %s1386 = scalar_lea.vmem [#allocation5], 128
    %v1387 = vld [vmem:[%s1386] sm:$0xf]
    %v1388 = vld [vmem:[%s1386 + $0x4] sm:$0xf]
    %v1389 = vld [vmem:[%s1386 + $0x8] sm:$0xf]
    %v1390 = vld [vmem:[%s1386 + $0xc] sm:$0xf]
    %v1391 = vld [vmem:[%s1386 + $0x10] sm:$0xf]
    %v1392 = vld [vmem:[%s1386 + $0x14] sm:$0xf]
    %v1393 = vld [vmem:[%s1386 + $0x18] sm:$0xf]
    %v1394 = vld [vmem:[%s1386 + $0x1c] sm:$0xf]
    %v1395 = vld [vmem:[%s1386 + $0x20] sm:$0xf]
    %v1396 = vld [vmem:[%s1386 + $0x24] sm:$0xf]
    %v1397 = vld [vmem:[%s1386 + $0x28] sm:$0xf]
    %v1398 = vld [vmem:[%s1386 + $0x2c] sm:$0xf]
    %v1399 = vld [vmem:[%s1386 + $0x30] sm:$0xf]
    %v1400 = vld [vmem:[%s1386 + $0x34] sm:$0xf]
    %v1401 = vld [vmem:[%s1386 + $0x38] sm:$0xf]
    %v1402 = vld [vmem:[%s1386 + $0x3c] sm:$0xf]
    %v1419 = vunpack.c.l.b16 %v1387
    %v1420 = vunpack.c.l.b16 %v1388
    %v1421 = vunpack.c.l.b16 %v1389
    %v1422 = vunpack.c.l.b16 %v1390
    %v1423 = vunpack.c.l.b16 %v1391
    %v1424 = vunpack.c.l.b16 %v1392
    %v1425 = vunpack.c.l.b16 %v1393
    %v1426 = vunpack.c.l.b16 %v1394
    %v1427 = vunpack.c.l.b16 %v1395
    %v1428 = vunpack.c.l.b16 %v1396
    %v1429 = vunpack.c.l.b16 %v1397
    %v1430 = vunpack.c.l.b16 %v1398
    %v1431 = vunpack.c.l.b16 %v1399
    %v1432 = vunpack.c.l.b16 %v1400
    %v1433 = vunpack.c.l.b16 %v1401
    %v1434 = vunpack.c.l.b16 %v1402
    %v1435 = vpack.c.b16 %v1420, %v1419
    %v1436 = vpack.c.b16 %v1422, %v1421
    %v1437 = vpack.c.b16 %v1424, %v1423
    %v1438 = vpack.c.b16 %v1426, %v1425
    %v1439 = vpack.c.b16 %v1428, %v1427
    %v1440 = vpack.c.b16 %v1430, %v1429
    %v1441 = vpack.c.b16 %v1432, %v1431
    %v1442 = vpack.c.b16 %v1434, %v1433
    %1451 = vmatprep.subr.bf16.mxu0 0
    %1452 = vmatpush1.bf16.msra.mxu0 %v1435
    %1453 = vmatprep.subr.bf16.mxu0 0
    %1454 = vmatpush1.bf16.msra.mxu0 %v1436
    %1455 = vmatprep.subr.bf16.mxu0 0
    %1456 = vmatpush1.bf16.msra.mxu0 %v1437
    %1457 = vmatprep.subr.bf16.mxu0 0
    %1458 = vmatpush1.bf16.msra.mxu0 %v1438
    %1459 = vmatprep.subr.bf16.mxu0 0
    %1460 = vmatpush1.bf16.msra.mxu0 %v1439
    %1461 = vmatprep.subr.bf16.mxu0 0
    %1462 = vmatpush1.bf16.msra.mxu0 %v1440
    %1463 = vmatprep.subr.bf16.mxu0 0
    %1464 = vmatpush1.bf16.msra.mxu0 %v1441
    %1465 = vmatprep.subr.bf16.mxu0 0
    %1466 = vmatpush1.bf16.msra.mxu0 %v1442
    %1467 = vmatprep.subr.bf16.mxu0 0
    %1468 = vmatpush1.bf16.msra.mxu0 0
    %1469 = vmatprep.subr.bf16.mxu0 0
    %1470 = vmatpush1.bf16.msra.mxu0 0
    %1471 = vmatprep.subr.bf16.mxu0 0
    %1472 = vmatpush1.bf16.msra.mxu0 0
    %1473 = vmatprep.subr.bf16.mxu0 0
    %1474 = vmatpush1.bf16.msra.mxu0 0
    %1475 = vmatprep.subr.bf16.mxu0 0
    %1476 = vmatpush1.bf16.msra.mxu0 0
    %1477 = vmatprep.subr.bf16.mxu0 0
    %1478 = vmatpush1.bf16.msra.mxu0 0
    %1479 = vmatprep.subr.bf16.mxu0 0
    %1480 = vmatpush1.bf16.msra.mxu0 0
    %1481 = vmatprep.subr.bf16.mxu0 0
    %1482 = vmatpush1.bf16.msra.mxu0 0
    %1483 = vmatprep.mubr.bf16.mxu0 0
    %1484 = vmatmul.mubr.bf16.gmra.mrb[0].mxu0 %v1354
    %v1485 = vpop.f32.mrb[0].mxu0
    %v1486 = vadd.f32 0.0, %v1485
    %v1487 = vpop.f32.mrb[0].mxu0
    %v1488 = vpop.f32.mrb[0].mxu0
    %v1489 = vadd.f32 0.0, %v1488
    %v1490 = vpop.f32.mrb[0].mxu0
    %1491 = vmatprep.mubr.bf16.mxu0 0
    %1492 = vmatmul.mubr.bf16.gmra.mrb[0].mxu0 %v1355
    %v1493 = vpop.f32.mrb[0].mxu0
    %v1494 = vadd.f32 0.0, %v1493
    %v1495 = vpop.f32.mrb[0].mxu0
    %v1496 = vpop.f32.mrb[0].mxu0
    %v1497 = vadd.f32 0.0, %v1496
    %v1498 = vpop.f32.mrb[0].mxu0
    %1499 = vmatprep.mubr.bf16.mxu0 0
    %1500 = vmatmul.mubr.bf16.gmra.mrb[0].mxu0 %v1356
    %v1501 = vpop.f32.mrb[0].mxu0
    %v1502 = vadd.f32 0.0, %v1501
    %v1503 = vpop.f32.mrb[0].mxu0
    %v1504 = vpop.f32.mrb[0].mxu0
    %v1505 = vadd.f32 0.0, %v1504
    %v1506 = vpop.f32.mrb[0].mxu0
    %1507 = vmatprep.mubr.bf16.mxu0 0
    %1508 = vmatmul.mubr.bf16.gmra.mrb[0].mxu0 %v1357
    %v1509 = vpop.f32.mrb[0].mxu0
    %v1510 = vadd.f32 0.0, %v1509
    %v1511 = vpop.f32.mrb[0].mxu0
    %v1512 = vpop.f32.mrb[0].mxu0
    %v1513 = vadd.f32 0.0, %v1512
    %v1514 = vpop.f32.mrb[0].mxu0
    %1515 = vmatprep.mubr.bf16.mxu0 0
    %1516 = vmatmul.mubr.bf16.gmra.mrb[0].mxu0 %v1358
    %v1517 = vpop.f32.mrb[0].mxu0
    %v1518 = vadd.f32 0.0, %v1517
    %v1519 = vpop.f32.mrb[0].mxu0
    %v1520 = vpop.f32.mrb[0].mxu0
    %v1521 = vadd.f32 0.0, %v1520
    %v1522 = vpop.f32.mrb[0].mxu0
    %1523 = vmatprep.mubr.bf16.mxu0 0
    %1524 = vmatmul.mubr.bf16.gmra.mrb[0].mxu0 %v1359
    %v1525 = vpop.f32.mrb[0].mxu0
    %v1526 = vadd.f32 0.0, %v1525
    %v1527 = vpop.f32.mrb[0].mxu0
    %v1528 = vpop.f32.mrb[0].mxu0
    %v1529 = vadd.f32 0.0, %v1528
    %v1530 = vpop.f32.mrb[0].mxu0
    %1531 = vmatprep.mubr.bf16.mxu0 0
    %1532 = vmatmul.mubr.bf16.gmra.mrb[0].mxu0 %v1360
    %v1533 = vpop.f32.mrb[0].mxu0
    %v1534 = vadd.f32 0.0, %v1533
    %v1535 = vpop.f32.mrb[0].mxu0
    %v1536 = vpop.f32.mrb[0].mxu0
    %v1537 = vadd.f32 0.0, %v1536
    %v1538 = vpop.f32.mrb[0].mxu0
    %1539 = vmatprep.mubr.bf16.mxu0 0
    %1540 = vmatmul.mubr.bf16.gmra.mrb[0].mxu0 %v1361
    %v1541 = vpop.f32.mrb[0].mxu0
    %v1542 = vadd.f32 0.0, %v1541
    %v1543 = vpop.f32.mrb[0].mxu0
    %v1544 = vpop.f32.mrb[0].mxu0
    %v1545 = vadd.f32 0.0, %v1544
    %v1546 = vpop.f32.mrb[0].mxu0
    %1547 = vmatprep.mubr.bf16.mxu0 0
    %1548 = vmatmul.mubr.bf16.gmra.mrb[0].mxu0 %v1362
    %v1549 = vpop.f32.mrb[0].mxu0
    %v1550 = vadd.f32 0.0, %v1549
    %v1551 = vpop.f32.mrb[0].mxu0
    %v1552 = vpop.f32.mrb[0].mxu0
    %v1553 = vadd.f32 0.0, %v1552
    %v1554 = vpop.f32.mrb[0].mxu0
    %1555 = vmatprep.mubr.bf16.mxu0 0
    %1556 = vmatmul.mubr.bf16.gmra.mrb[0].mxu0 %v1363
    %v1557 = vpop.f32.mrb[0].mxu0
    %v1558 = vadd.f32 0.0, %v1557
    %v1559 = vpop.f32.mrb[0].mxu0
    %v1560 = vpop.f32.mrb[0].mxu0
    %v1561 = vadd.f32 0.0, %v1560
    %v1562 = vpop.f32.mrb[0].mxu0
    %1563 = vmatprep.mubr.bf16.mxu0 0
    %1564 = vmatmul.mubr.bf16.gmra.mrb[0].mxu0 %v1364
    %v1565 = vpop.f32.mrb[0].mxu0
    %v1566 = vadd.f32 0.0, %v1565
    %v1567 = vpop.f32.mrb[0].mxu0
    %v1568 = vpop.f32.mrb[0].mxu0
    %v1569 = vadd.f32 0.0, %v1568
    %v1570 = vpop.f32.mrb[0].mxu0
    %1571 = vmatprep.mubr.bf16.mxu0 0
    %1572 = vmatmul.mubr.bf16.gmra.mrb[0].mxu0 %v1365
    %v1573 = vpop.f32.mrb[0].mxu0
    %v1574 = vadd.f32 0.0, %v1573
    %v1575 = vpop.f32.mrb[0].mxu0
    %v1576 = vpop.f32.mrb[0].mxu0
    %v1577 = vadd.f32 0.0, %v1576
    %v1578 = vpop.f32.mrb[0].mxu0
    %1579 = vmatprep.mubr.bf16.mxu0 0
    %1580 = vmatmul.mubr.bf16.gmra.mrb[0].mxu0 %v1366
    %v1581 = vpop.f32.mrb[0].mxu0
    %v1582 = vadd.f32 0.0, %v1581
    %v1583 = vpop.f32.mrb[0].mxu0
    %v1584 = vpop.f32.mrb[0].mxu0
    %v1585 = vadd.f32 0.0, %v1584
    %v1586 = vpop.f32.mrb[0].mxu0
    %1587 = vmatprep.mubr.bf16.mxu0 0
    %1588 = vmatmul.mubr.bf16.gmra.mrb[0].mxu0 %v1367
    %v1589 = vpop.f32.mrb[0].mxu0
    %v1590 = vadd.f32 0.0, %v1589
    %v1591 = vpop.f32.mrb[0].mxu0
    %v1592 = vpop.f32.mrb[0].mxu0
    %v1593 = vadd.f32 0.0, %v1592
    %v1594 = vpop.f32.mrb[0].mxu0
    %1595 = vmatprep.mubr.bf16.mxu0 0
    %1596 = vmatmul.mubr.bf16.gmra.mrb[0].mxu0 %v1368
    %v1597 = vpop.f32.mrb[0].mxu0
    %v1598 = vadd.f32 0.0, %v1597
    %v1599 = vpop.f32.mrb[0].mxu0
    %v1600 = vpop.f32.mrb[0].mxu0
    %v1601 = vadd.f32 0.0, %v1600
    %v1602 = vpop.f32.mrb[0].mxu0
    %1603 = vmatprep.mubr.bf16.mxu0 0
    %1604 = vmatmul.mubr.bf16.gmra.mrb[0].mxu0 %v1369
    %v1605 = vpop.f32.mrb[0].mxu0
    %v1606 = vadd.f32 0.0, %v1605
    %v1607 = vpop.f32.mrb[0].mxu0
    %v1608 = vpop.f32.mrb[0].mxu0
    %v1609 = vadd.f32 0.0, %v1608
    %v1610 = vpop.f32.mrb[0].mxu0
    %1611 = vmatprep.mubr.bf16.mxu0 0
    %1612 = vmatmul.mubr.bf16.gmra.mrb[0].mxu0 %v1370
    %v1613 = vpop.f32.mrb[0].mxu0
    %v1614 = vadd.f32 0.0, %v1613
    %v1615 = vpop.f32.mrb[0].mxu0
    %v1616 = vpop.f32.mrb[0].mxu0
    %v1617 = vadd.f32 0.0, %v1616
    %v1618 = vpop.f32.mrb[0].mxu0
    %1619 = vmatprep.mubr.bf16.mxu0 0
    %1620 = vmatmul.mubr.bf16.gmra.mrb[0].mxu0 %v1371
    %v1621 = vpop.f32.mrb[0].mxu0
    %v1622 = vadd.f32 0.0, %v1621
    %v1623 = vpop.f32.mrb[0].mxu0
    %v1624 = vpop.f32.mrb[0].mxu0
    %v1625 = vadd.f32 0.0, %v1624
    %v1626 = vpop.f32.mrb[0].mxu0
    %1627 = vmatprep.mubr.bf16.mxu0 0
    %1628 = vmatmul.mubr.bf16.gmra.mrb[0].mxu0 %v1372
    %v1629 = vpop.f32.mrb[0].mxu0
    %v1630 = vadd.f32 0.0, %v1629
    %v1631 = vpop.f32.mrb[0].mxu0
    %v1632 = vpop.f32.mrb[0].mxu0
    %v1633 = vadd.f32 0.0, %v1632
    %v1634 = vpop.f32.mrb[0].mxu0
    %1635 = vmatprep.mubr.bf16.mxu0 0
    %1636 = vmatmul.mubr.bf16.gmra.mrb[0].mxu0 %v1373
    %v1637 = vpop.f32.mrb[0].mxu0
    %v1638 = vadd.f32 0.0, %v1637
    %v1639 = vpop.f32.mrb[0].mxu0
    %v1640 = vpop.f32.mrb[0].mxu0
    %v1641 = vadd.f32 0.0, %v1640
    %v1642 = vpop.f32.mrb[0].mxu0
    %1643 = vmatprep.mubr.bf16.mxu0 0
    %1644 = vmatmul.mubr.bf16.gmra.mrb[0].mxu0 %v1374
    %v1645 = vpop.f32.mrb[0].mxu0
    %v1646 = vadd.f32 0.0, %v1645
    %v1647 = vpop.f32.mrb[0].mxu0
    %v1648 = vpop.f32.mrb[0].mxu0
    %v1649 = vadd.f32 0.0, %v1648
    %v1650 = vpop.f32.mrb[0].mxu0
    %1651 = vmatprep.mubr.bf16.mxu0 0
    %1652 = vmatmul.mubr.bf16.gmra.mrb[0].mxu0 %v1375
    %v1653 = vpop.f32.mrb[0].mxu0
    %v1654 = vadd.f32 0.0, %v1653
    %v1655 = vpop.f32.mrb[0].mxu0
    %v1656 = vpop.f32.mrb[0].mxu0
    %v1657 = vadd.f32 0.0, %v1656
    %v1658 = vpop.f32.mrb[0].mxu0
    %1659 = vmatprep.mubr.bf16.mxu0 0
    %1660 = vmatmul.mubr.bf16.gmra.mrb[0].mxu0 %v1376
    %v1661 = vpop.f32.mrb[0].mxu0
    %v1662 = vadd.f32 0.0, %v1661
    %v1663 = vpop.f32.mrb[0].mxu0
    %v1664 = vpop.f32.mrb[0].mxu0
    %v1665 = vadd.f32 0.0, %v1664
    %v1666 = vpop.f32.mrb[0].mxu0
    %1667 = vmatprep.mubr.bf16.mxu0 0
    %1668 = vmatmul.mubr.bf16.gmra.mrb[0].mxu0 %v1377
    %v1669 = vpop.f32.mrb[0].mxu0
    %v1670 = vadd.f32 0.0, %v1669
    %v1671 = vpop.f32.mrb[0].mxu0
    %v1672 = vpop.f32.mrb[0].mxu0
    %v1673 = vadd.f32 0.0, %v1672
    %v1674 = vpop.f32.mrb[0].mxu0
    %1675 = vmatprep.mubr.bf16.mxu0 0
    %1676 = vmatmul.mubr.bf16.gmra.mrb[0].mxu0 %v1378
    %v1677 = vpop.f32.mrb[0].mxu0
    %v1678 = vadd.f32 0.0, %v1677
    %v1679 = vpop.f32.mrb[0].mxu0
    %v1680 = vpop.f32.mrb[0].mxu0
    %v1681 = vadd.f32 0.0, %v1680
    %v1682 = vpop.f32.mrb[0].mxu0
    %1683 = vmatprep.mubr.bf16.mxu0 0
    %1684 = vmatmul.mubr.bf16.gmra.mrb[0].mxu0 %v1379
    %v1685 = vpop.f32.mrb[0].mxu0
    %v1686 = vadd.f32 0.0, %v1685
    %v1687 = vpop.f32.mrb[0].mxu0
    %v1688 = vpop.f32.mrb[0].mxu0
    %v1689 = vadd.f32 0.0, %v1688
    %v1690 = vpop.f32.mrb[0].mxu0
    %1691 = vmatprep.mubr.bf16.mxu0 0
    %1692 = vmatmul.mubr.bf16.gmra.mrb[0].mxu0 %v1380
    %v1693 = vpop.f32.mrb[0].mxu0
    %v1694 = vadd.f32 0.0, %v1693
    %v1695 = vpop.f32.mrb[0].mxu0
    %v1696 = vpop.f32.mrb[0].mxu0
    %v1697 = vadd.f32 0.0, %v1696
    %v1698 = vpop.f32.mrb[0].mxu0
    %1699 = vmatprep.mubr.bf16.mxu0 0
    %1700 = vmatmul.mubr.bf16.gmra.mrb[0].mxu0 %v1381
    %v1701 = vpop.f32.mrb[0].mxu0
    %v1702 = vadd.f32 0.0, %v1701
    %v1703 = vpop.f32.mrb[0].mxu0
    %v1704 = vpop.f32.mrb[0].mxu0
    %v1705 = vadd.f32 0.0, %v1704
    %v1706 = vpop.f32.mrb[0].mxu0
    %1707 = vmatprep.mubr.bf16.mxu0 0
    %1708 = vmatmul.mubr.bf16.gmra.mrb[0].mxu0 %v1382
    %v1709 = vpop.f32.mrb[0].mxu0
    %v1710 = vadd.f32 0.0, %v1709
    %v1711 = vpop.f32.mrb[0].mxu0
    %v1712 = vpop.f32.mrb[0].mxu0
    %v1713 = vadd.f32 0.0, %v1712
    %v1714 = vpop.f32.mrb[0].mxu0
    %1715 = vmatprep.mubr.bf16.mxu0 0
    %1716 = vmatmul.mubr.bf16.gmra.mrb[0].mxu0 %v1383
    %v1717 = vpop.f32.mrb[0].mxu0
    %v1718 = vadd.f32 0.0, %v1717
    %v1719 = vpop.f32.mrb[0].mxu0
    %v1720 = vpop.f32.mrb[0].mxu0
    %v1721 = vadd.f32 0.0, %v1720
    %v1722 = vpop.f32.mrb[0].mxu0
    %1723 = vmatprep.mubr.bf16.mxu0 0
    %1724 = vmatmul.mubr.bf16.gmra.mrb[0].mxu0 %v1384
    %v1725 = vpop.f32.mrb[0].mxu0
    %v1726 = vadd.f32 0.0, %v1725
    %v1727 = vpop.f32.mrb[0].mxu0
    %v1728 = vpop.f32.mrb[0].mxu0
    %v1729 = vadd.f32 0.0, %v1728
    %v1730 = vpop.f32.mrb[0].mxu0
    %1731 = vmatprep.mubr.bf16.mxu0 0
    %1732 = vmatmul.mubr.bf16.gmra.mrb[0].mxu0 %v1385
    %v1733 = vpop.f32.mrb[0].mxu0
    %v1734 = vadd.f32 0.0, %v1733
    %v1735 = vpop.f32.mrb[0].mxu0
    %v1736 = vpop.f32.mrb[0].mxu0
    %v1737 = vadd.f32 0.0, %v1736
    %v1738 = vpop.f32.mrb[0].mxu0
    %1739 = vdwg.mxu0
    %v1740 = vadd.f32 %v1100, %v1486
    %v1741 = vadd.f32 %v1103, %v1489
    %v1742 = vadd.f32 %v1108, %v1494
    %v1743 = vadd.f32 %v1111, %v1497
    %v1744 = vadd.f32 %v1116, %v1502
    %v1745 = vadd.f32 %v1119, %v1505
    %v1746 = vadd.f32 %v1124, %v1510
    %v1747 = vadd.f32 %v1127, %v1513
    %v1748 = vadd.f32 %v1132, %v1518
    %v1749 = vadd.f32 %v1135, %v1521
    %v1750 = vadd.f32 %v1140, %v1526
    %v1751 = vadd.f32 %v1143, %v1529
    %v1752 = vadd.f32 %v1148, %v1534
    %v1753 = vadd.f32 %v1151, %v1537
    %v1754 = vadd.f32 %v1156, %v1542
    %v1755 = vadd.f32 %v1159, %v1545
    %v1756 = vadd.f32 %v1164, %v1550
    %v1757 = vadd.f32 %v1167, %v1553
    %v1758 = vadd.f32 %v1172, %v1558
    %v1759 = vadd.f32 %v1175, %v1561
    %v1760 = vadd.f32 %v1180, %v1566
    %v1761 = vadd.f32 %v1183, %v1569
    %v1762 = vadd.f32 %v1188, %v1574
    %v1763 = vadd.f32 %v1191, %v1577
    %v1764 = vadd.f32 %v1196, %v1582
    %v1765 = vadd.f32 %v1199, %v1585
    %v1766 = vadd.f32 %v1204, %v1590
    %v1767 = vadd.f32 %v1207, %v1593
    %v1768 = vadd.f32 %v1212, %v1598
    %v1769 = vadd.f32 %v1215, %v1601
    %v1770 = vadd.f32 %v1220, %v1606
    %v1771 = vadd.f32 %v1223, %v1609
    %v1772 = vadd.f32 %v1228, %v1614
    %v1773 = vadd.f32 %v1231, %v1617
    %v1774 = vadd.f32 %v1236, %v1622
    %v1775 = vadd.f32 %v1239, %v1625
    %v1776 = vadd.f32 %v1244, %v1630
    %v1777 = vadd.f32 %v1247, %v1633
    %v1778 = vadd.f32 %v1252, %v1638
    %v1779 = vadd.f32 %v1255, %v1641
    %v1780 = vadd.f32 %v1260, %v1646
    %v1781 = vadd.f32 %v1263, %v1649
    %v1782 = vadd.f32 %v1268, %v1654
    %v1783 = vadd.f32 %v1271, %v1657
    %v1784 = vadd.f32 %v1276, %v1662
    %v1785 = vadd.f32 %v1279, %v1665
    %v1786 = vadd.f32 %v1284, %v1670
    %v1787 = vadd.f32 %v1287, %v1673
    %v1788 = vadd.f32 %v1292, %v1678
    %v1789 = vadd.f32 %v1295, %v1681
    %v1790 = vadd.f32 %v1300, %v1686
    %v1791 = vadd.f32 %v1303, %v1689
    %v1792 = vadd.f32 %v1308, %v1694
    %v1793 = vadd.f32 %v1311, %v1697
    %v1794 = vadd.f32 %v1316, %v1702
    %v1795 = vadd.f32 %v1319, %v1705
    %v1796 = vadd.f32 %v1324, %v1710
    %v1797 = vadd.f32 %v1327, %v1713
    %v1798 = vadd.f32 %v1332, %v1718
    %v1799 = vadd.f32 %v1335, %v1721
    %v1800 = vadd.f32 %v1340, %v1726
    %v1801 = vadd.f32 %v1343, %v1729
    %v1802 = vadd.f32 %v1348, %v1734
    %v1803 = vadd.f32 %v1351, %v1737
    %v1804 = vld [vmem:[%s3] sm:$0x1]
    %v1805 = vld [vmem:[%s4] sm:$0x1]
    %v1806 = vadd.f32 %v1740, %v1741
    %v1807 = vadd.f32 %v1806, %v1742
    %v1808 = vadd.f32 %v1807, %v1743
    %v1809 = vadd.f32 %v1808, %v1744
    %v1810 = vadd.f32 %v1809, %v1745
    %v1811 = vadd.f32 %v1810, %v1746
    %v1812 = vadd.f32 %v1811, %v1747
    %v1813 = vadd.f32 %v1812, %v1748
    %v1814 = vadd.f32 %v1813, %v1749
    %v1815 = vadd.f32 %v1814, %v1750
    %v1816 = vadd.f32 %v1815, %v1751
    %v1817 = vadd.f32 %v1816, %v1752
    %v1818 = vadd.f32 %v1817, %v1753
    %v1819 = vadd.f32 %v1818, %v1754
    %v1820 = vadd.f32 %v1819, %v1755
    %v1821 = vadd.f32 %v1820, %v1756
    %v1822 = vadd.f32 %v1821, %v1757
    %v1823 = vadd.f32 %v1822, %v1758
    %v1824 = vadd.f32 %v1823, %v1759
    %v1825 = vadd.f32 %v1824, %v1760
    %v1826 = vadd.f32 %v1825, %v1761
    %v1827 = vadd.f32 %v1826, %v1762
    %v1828 = vadd.f32 %v1827, %v1763
    %v1829 = vadd.f32 %v1828, %v1764
    %v1830 = vadd.f32 %v1829, %v1765
    %v1831 = vadd.f32 %v1830, %v1766
    %v1832 = vadd.f32 %v1831, %v1767
    %v1833 = vadd.f32 %v1832, %v1768
    %v1834 = vadd.f32 %v1833, %v1769
    %v1835 = vadd.f32 %v1834, %v1770
    %v1836 = vadd.f32 %v1835, %v1771
    %v1837 = vadd.f32 %v1836, %v1772
    %v1838 = vadd.f32 %v1837, %v1773
    %v1839 = vadd.f32 %v1838, %v1774
    %v1840 = vadd.f32 %v1839, %v1775
    %v1841 = vadd.f32 %v1840, %v1776
    %v1842 = vadd.f32 %v1841, %v1777
    %v1843 = vadd.f32 %v1842, %v1778
    %v1844 = vadd.f32 %v1843, %v1779
    %v1845 = vadd.f32 %v1844, %v1780
    %v1846 = vadd.f32 %v1845, %v1781
    %v1847 = vadd.f32 %v1846, %v1782
    %v1848 = vadd.f32 %v1847, %v1783
    %v1849 = vadd.f32 %v1848, %v1784
    %v1850 = vadd.f32 %v1849, %v1785
    %v1851 = vadd.f32 %v1850, %v1786
    %v1852 = vadd.f32 %v1851, %v1787
    %v1853 = vadd.f32 %v1852, %v1788
    %v1854 = vadd.f32 %v1853, %v1789
    %v1855 = vadd.f32 %v1854, %v1790
    %v1856 = vadd.f32 %v1855, %v1791
    %v1857 = vadd.f32 %v1856, %v1792
    %v1858 = vadd.f32 %v1857, %v1793
    %v1859 = vadd.f32 %v1858, %v1794
    %v1860 = vadd.f32 %v1859, %v1795
    %v1861 = vadd.f32 %v1860, %v1796
    %v1862 = vadd.f32 %v1861, %v1797
    %v1863 = vadd.f32 %v1862, %v1798
    %v1864 = vadd.f32 %v1863, %v1799
    %v1865 = vadd.f32 %v1864, %v1800
    %v1866 = vadd.f32 %v1865, %v1801
    %v1867 = vadd.f32 %v1866, %v1802
    %v1868 = vadd.f32 %v1867, %v1803
    %v1869 = vrot.slane %v1868, 4
    %v1870 = vadd.f32 %v1868, %v1869
    %v1871 = vrot.slane %v1870, 2
    %v1872 = vadd.f32 %v1870, %v1871
    %v1873 = vrot.slane %v1872, 1
    %v1874 = vadd.f32 %v1872, %v1873
    %v1875 = vrcp.pop 512.0
    %v1876 = vmul.f32 %v1874, %v1875
    %v1877 = vmul.f32 %v1740, %v1740
    %v1878 = vmul.f32 %v1741, %v1741
    %v1879 = vmul.f32 %v1742, %v1742
    %v1880 = vmul.f32 %v1743, %v1743
    %v1881 = vmul.f32 %v1744, %v1744
    %v1882 = vmul.f32 %v1745, %v1745
    %v1883 = vmul.f32 %v1746, %v1746
    %v1884 = vmul.f32 %v1747, %v1747
    %v1885 = vmul.f32 %v1748, %v1748
    %v1886 = vmul.f32 %v1749, %v1749
    %v1887 = vmul.f32 %v1750, %v1750
    %v1888 = vmul.f32 %v1751, %v1751
    %v1889 = vmul.f32 %v1752, %v1752
    %v1890 = vmul.f32 %v1753, %v1753
    %v1891 = vmul.f32 %v1754, %v1754
    %v1892 = vmul.f32 %v1755, %v1755
    %v1893 = vmul.f32 %v1756, %v1756
    %v1894 = vmul.f32 %v1757, %v1757
    %v1895 = vmul.f32 %v1758, %v1758
    %v1896 = vmul.f32 %v1759, %v1759
    %v1897 = vmul.f32 %v1760, %v1760
    %v1898 = vmul.f32 %v1761, %v1761
    %v1899 = vmul.f32 %v1762, %v1762
    %v1900 = vmul.f32 %v1763, %v1763
    %v1901 = vmul.f32 %v1764, %v1764
    %v1902 = vmul.f32 %v1765, %v1765
    %v1903 = vmul.f32 %v1766, %v1766
    %v1904 = vmul.f32 %v1767, %v1767
    %v1905 = vmul.f32 %v1768, %v1768
    %v1906 = vmul.f32 %v1769, %v1769
    %v1907 = vmul.f32 %v1770, %v1770
    %v1908 = vmul.f32 %v1771, %v1771
    %v1909 = vmul.f32 %v1772, %v1772
    %v1910 = vmul.f32 %v1773, %v1773
    %v1911 = vmul.f32 %v1774, %v1774
    %v1912 = vmul.f32 %v1775, %v1775
    %v1913 = vmul.f32 %v1776, %v1776
    %v1914 = vmul.f32 %v1777, %v1777
    %v1915 = vmul.f32 %v1778, %v1778
    %v1916 = vmul.f32 %v1779, %v1779
    %v1917 = vmul.f32 %v1780, %v1780
    %v1918 = vmul.f32 %v1781, %v1781
    %v1919 = vmul.f32 %v1782, %v1782
    %v1920 = vmul.f32 %v1783, %v1783
    %v1921 = vmul.f32 %v1784, %v1784
    %v1922 = vmul.f32 %v1785, %v1785
    %v1923 = vmul.f32 %v1786, %v1786
    %v1924 = vmul.f32 %v1787, %v1787
    %v1925 = vmul.f32 %v1788, %v1788
    %v1926 = vmul.f32 %v1789, %v1789
    %v1927 = vmul.f32 %v1790, %v1790
    %v1928 = vmul.f32 %v1791, %v1791
    %v1929 = vmul.f32 %v1792, %v1792
    %v1930 = vmul.f32 %v1793, %v1793
    %v1931 = vmul.f32 %v1794, %v1794
    %v1932 = vmul.f32 %v1795, %v1795
    %v1933 = vmul.f32 %v1796, %v1796
    %v1934 = vmul.f32 %v1797, %v1797
    %v1935 = vmul.f32 %v1798, %v1798
    %v1936 = vmul.f32 %v1799, %v1799
    %v1937 = vmul.f32 %v1800, %v1800
    %v1938 = vmul.f32 %v1801, %v1801
    %v1939 = vmul.f32 %v1802, %v1802
    %v1940 = vmul.f32 %v1803, %v1803
    %v1941 = vadd.f32 %v1877, %v1878
    %v1942 = vadd.f32 %v1941, %v1879
    %v1943 = vadd.f32 %v1942, %v1880
    %v1944 = vadd.f32 %v1943, %v1881
    %v1945 = vadd.f32 %v1944, %v1882
    %v1946 = vadd.f32 %v1945, %v1883
    %v1947 = vadd.f32 %v1946, %v1884
    %v1948 = vadd.f32 %v1947, %v1885
    %v1949 = vadd.f32 %v1948, %v1886
    %v1950 = vadd.f32 %v1949, %v1887
    %v1951 = vadd.f32 %v1950, %v1888
    %v1952 = vadd.f32 %v1951, %v1889
    %v1953 = vadd.f32 %v1952, %v1890
    %v1954 = vadd.f32 %v1953, %v1891
    %v1955 = vadd.f32 %v1954, %v1892
    %v1956 = vadd.f32 %v1955, %v1893
    %v1957 = vadd.f32 %v1956, %v1894
    %v1958 = vadd.f32 %v1957, %v1895
    %v1959 = vadd.f32 %v1958, %v1896
    %v1960 = vadd.f32 %v1959, %v1897
    %v1961 = vadd.f32 %v1960, %v1898
    %v1962 = vadd.f32 %v1961, %v1899
    %v1963 = vadd.f32 %v1962, %v1900
    %v1964 = vadd.f32 %v1963, %v1901
    %v1965 = vadd.f32 %v1964, %v1902
    %v1966 = vadd.f32 %v1965, %v1903
    %v1967 = vadd.f32 %v1966, %v1904
    %v1968 = vadd.f32 %v1967, %v1905
    %v1969 = vadd.f32 %v1968, %v1906
    %v1970 = vadd.f32 %v1969, %v1907
    %v1971 = vadd.f32 %v1970, %v1908
    %v1972 = vadd.f32 %v1971, %v1909
    %v1973 = vadd.f32 %v1972, %v1910
    %v1974 = vadd.f32 %v1973, %v1911
    %v1975 = vadd.f32 %v1974, %v1912
    %v1976 = vadd.f32 %v1975, %v1913
    %v1977 = vadd.f32 %v1976, %v1914
    %v1978 = vadd.f32 %v1977, %v1915
    %v1979 = vadd.f32 %v1978, %v1916
    %v1980 = vadd.f32 %v1979, %v1917
    %v1981 = vadd.f32 %v1980, %v1918
    %v1982 = vadd.f32 %v1981, %v1919
    %v1983 = vadd.f32 %v1982, %v1920
    %v1984 = vadd.f32 %v1983, %v1921
    %v1985 = vadd.f32 %v1984, %v1922
    %v1986 = vadd.f32 %v1985, %v1923
    %v1987 = vadd.f32 %v1986, %v1924
    %v1988 = vadd.f32 %v1987, %v1925
    %v1989 = vadd.f32 %v1988, %v1926
    %v1990 = vadd.f32 %v1989, %v1927
    %v1991 = vadd.f32 %v1990, %v1928
    %v1992 = vadd.f32 %v1991, %v1929
    %v1993 = vadd.f32 %v1992, %v1930
    %v1994 = vadd.f32 %v1993, %v1931
    %v1995 = vadd.f32 %v1994, %v1932
    %v1996 = vadd.f32 %v1995, %v1933
    %v1997 = vadd.f32 %v1996, %v1934
    %v1998 = vadd.f32 %v1997, %v1935
    %v1999 = vadd.f32 %v1998, %v1936
    %v2000 = vadd.f32 %v1999, %v1937
    %v2001 = vadd.f32 %v2000, %v1938
    %v2002 = vadd.f32 %v2001, %v1939
    %v2003 = vadd.f32 %v2002, %v1940
    %v2004 = vrot.slane %v2003, 4
    %v2005 = vadd.f32 %v2003, %v2004
    %v2006 = vrot.slane %v2005, 2
    %v2007 = vadd.f32 %v2005, %v2006
    %v2008 = vrot.slane %v2007, 1
    %v2009 = vadd.f32 %v2007, %v2008
    %v2010 = vmul.f32 %v2009, %v1875
    %v2011 = vmul.f32 %v1876, %v1876
    %v2012 = vsub.f32 %v2010, %v2011
    %v2013 = vadd.f32 %v2012, 1e-05
    %v2014 = vrsqrt.pop %v2013
    %v2015 = vmul.f32 %v1804, %v2014
    %v2017 = vlaneseq
    %v2018 = vshrl.u32 %v2017, 7
    %v2019 = vsub.s32 0, %v2018
    %v2020 = vrot.slane %v2015, %v2019
    %v2022 = vmul.f32 %v1740, %v2020
    %v2023 = vmul.f32 %v1741, %v2020
    %v2024 = vmul.f32 %v1742, %v2020
    %v2025 = vmul.f32 %v1743, %v2020
    %v2026 = vmul.f32 %v1744, %v2020
    %v2027 = vmul.f32 %v1745, %v2020
    %v2028 = vmul.f32 %v1746, %v2020
    %v2029 = vmul.f32 %v1747, %v2020
    %v2030 = vmul.f32 %v1748, %v2020
    %v2031 = vmul.f32 %v1749, %v2020
    %v2032 = vmul.f32 %v1750, %v2020
    %v2033 = vmul.f32 %v1751, %v2020
    %v2034 = vmul.f32 %v1752, %v2020
    %v2035 = vmul.f32 %v1753, %v2020
    %v2036 = vmul.f32 %v1754, %v2020
    %v2037 = vmul.f32 %v1755, %v2020
    %v2038 = vmul.f32 %v1756, %v2020
    %v2039 = vmul.f32 %v1757, %v2020
    %v2040 = vmul.f32 %v1758, %v2020
    %v2041 = vmul.f32 %v1759, %v2020
    %v2042 = vmul.f32 %v1760, %v2020
    %v2043 = vmul.f32 %v1761, %v2020
    %v2044 = vmul.f32 %v1762, %v2020
    %v2045 = vmul.f32 %v1763, %v2020
    %v2046 = vmul.f32 %v1764, %v2020
    %v2047 = vmul.f32 %v1765, %v2020
    %v2048 = vmul.f32 %v1766, %v2020
    %v2049 = vmul.f32 %v1767, %v2020
    %v2050 = vmul.f32 %v1768, %v2020
    %v2051 = vmul.f32 %v1769, %v2020
    %v2052 = vmul.f32 %v1770, %v2020
    %v2053 = vmul.f32 %v1771, %v2020
    %v2054 = vmul.f32 %v1772, %v2020
    %v2055 = vmul.f32 %v1773, %v2020
    %v2056 = vmul.f32 %v1774, %v2020
    %v2057 = vmul.f32 %v1775, %v2020
    %v2058 = vmul.f32 %v1776, %v2020
    %v2059 = vmul.f32 %v1777, %v2020
    %v2060 = vmul.f32 %v1778, %v2020
    %v2061 = vmul.f32 %v1779, %v2020
    %v2062 = vmul.f32 %v1780, %v2020
    %v2063 = vmul.f32 %v1781, %v2020
    %v2064 = vmul.f32 %v1782, %v2020
    %v2065 = vmul.f32 %v1783, %v2020
    %v2066 = vmul.f32 %v1784, %v2020
    %v2067 = vmul.f32 %v1785, %v2020
    %v2068 = vmul.f32 %v1786, %v2020
    %v2069 = vmul.f32 %v1787, %v2020
    %v2070 = vmul.f32 %v1788, %v2020
    %v2071 = vmul.f32 %v1789, %v2020
    %v2072 = vmul.f32 %v1790, %v2020
    %v2073 = vmul.f32 %v1791, %v2020
    %v2074 = vmul.f32 %v1792, %v2020
    %v2075 = vmul.f32 %v1793, %v2020
    %v2076 = vmul.f32 %v1794, %v2020
    %v2077 = vmul.f32 %v1795, %v2020
    %v2078 = vmul.f32 %v1796, %v2020
    %v2079 = vmul.f32 %v1797, %v2020
    %v2080 = vmul.f32 %v1798, %v2020
    %v2081 = vmul.f32 %v1799, %v2020
    %v2082 = vmul.f32 %v1800, %v2020
    %v2083 = vmul.f32 %v1801, %v2020
    %v2084 = vmul.f32 %v1802, %v2020
    %v2085 = vmul.f32 %v1803, %v2020
    %v2086 = vmul.f32 %v1876, %v2015
    %v2087 = vsub.f32 %v1805, %v2086
    %v2089 = vlaneseq
    %v2090 = vshrl.u32 %v2089, 7
    %v2091 = vsub.s32 0, %v2090
    %v2092 = vrot.slane %v2087, %v2091
    %v2094 = vadd.f32 %v2022, %v2092
    %v2095 = vadd.f32 %v2023, %v2092
    %v2096 = vadd.f32 %v2024, %v2092
    %v2097 = vadd.f32 %v2025, %v2092
    %v2098 = vadd.f32 %v2026, %v2092
    %v2099 = vadd.f32 %v2027, %v2092
    %v2100 = vadd.f32 %v2028, %v2092
    %v2101 = vadd.f32 %v2029, %v2092
    %v2102 = vadd.f32 %v2030, %v2092
    %v2103 = vadd.f32 %v2031, %v2092
    %v2104 = vadd.f32 %v2032, %v2092
    %v2105 = vadd.f32 %v2033, %v2092
    %v2106 = vadd.f32 %v2034, %v2092
    %v2107 = vadd.f32 %v2035, %v2092
    %v2108 = vadd.f32 %v2036, %v2092
    %v2109 = vadd.f32 %v2037, %v2092
    %v2110 = vadd.f32 %v2038, %v2092
    %v2111 = vadd.f32 %v2039, %v2092
    %v2112 = vadd.f32 %v2040, %v2092
    %v2113 = vadd.f32 %v2041, %v2092
    %v2114 = vadd.f32 %v2042, %v2092
    %v2115 = vadd.f32 %v2043, %v2092
    %v2116 = vadd.f32 %v2044, %v2092
    %v2117 = vadd.f32 %v2045, %v2092
    %v2118 = vadd.f32 %v2046, %v2092
    %v2119 = vadd.f32 %v2047, %v2092
    %v2120 = vadd.f32 %v2048, %v2092
    %v2121 = vadd.f32 %v2049, %v2092
    %v2122 = vadd.f32 %v2050, %v2092
    %v2123 = vadd.f32 %v2051, %v2092
    %v2124 = vadd.f32 %v2052, %v2092
    %v2125 = vadd.f32 %v2053, %v2092
    %v2126 = vadd.f32 %v2054, %v2092
    %v2127 = vadd.f32 %v2055, %v2092
    %v2128 = vadd.f32 %v2056, %v2092
    %v2129 = vadd.f32 %v2057, %v2092
    %v2130 = vadd.f32 %v2058, %v2092
    %v2131 = vadd.f32 %v2059, %v2092
    %v2132 = vadd.f32 %v2060, %v2092
    %v2133 = vadd.f32 %v2061, %v2092
    %v2134 = vadd.f32 %v2062, %v2092
    %v2135 = vadd.f32 %v2063, %v2092
    %v2136 = vadd.f32 %v2064, %v2092
    %v2137 = vadd.f32 %v2065, %v2092
    %v2138 = vadd.f32 %v2066, %v2092
    %v2139 = vadd.f32 %v2067, %v2092
    %v2140 = vadd.f32 %v2068, %v2092
    %v2141 = vadd.f32 %v2069, %v2092
    %v2142 = vadd.f32 %v2070, %v2092
    %v2143 = vadd.f32 %v2071, %v2092
    %v2144 = vadd.f32 %v2072, %v2092
    %v2145 = vadd.f32 %v2073, %v2092
    %v2146 = vadd.f32 %v2074, %v2092
    %v2147 = vadd.f32 %v2075, %v2092
    %v2148 = vadd.f32 %v2076, %v2092
    %v2149 = vadd.f32 %v2077, %v2092
    %v2150 = vadd.f32 %v2078, %v2092
    %v2151 = vadd.f32 %v2079, %v2092
    %v2152 = vadd.f32 %v2080, %v2092
    %v2153 = vadd.f32 %v2081, %v2092
    %v2154 = vadd.f32 %v2082, %v2092
    %v2155 = vadd.f32 %v2083, %v2092
    %v2156 = vadd.f32 %v2084, %v2092
    %v2157 = vadd.f32 %v2085, %v2092
    %v2158 = vmax.f32 %v2094, 0.0
    %v2159 = vmax.f32 %v2095, 0.0
    %v2160 = vmax.f32 %v2096, 0.0
    %v2161 = vmax.f32 %v2097, 0.0
    %v2162 = vmax.f32 %v2098, 0.0
    %v2163 = vmax.f32 %v2099, 0.0
    %v2164 = vmax.f32 %v2100, 0.0
    %v2165 = vmax.f32 %v2101, 0.0
    %v2166 = vmax.f32 %v2102, 0.0
    %v2167 = vmax.f32 %v2103, 0.0
    %v2168 = vmax.f32 %v2104, 0.0
    %v2169 = vmax.f32 %v2105, 0.0
    %v2170 = vmax.f32 %v2106, 0.0
    %v2171 = vmax.f32 %v2107, 0.0
    %v2172 = vmax.f32 %v2108, 0.0
    %v2173 = vmax.f32 %v2109, 0.0
    %v2174 = vmax.f32 %v2110, 0.0
    %v2175 = vmax.f32 %v2111, 0.0
    %v2176 = vmax.f32 %v2112, 0.0
    %v2177 = vmax.f32 %v2113, 0.0
    %v2178 = vmax.f32 %v2114, 0.0
    %v2179 = vmax.f32 %v2115, 0.0
    %v2180 = vmax.f32 %v2116, 0.0
    %v2181 = vmax.f32 %v2117, 0.0
    %v2182 = vmax.f32 %v2118, 0.0
    %v2183 = vmax.f32 %v2119, 0.0
    %v2184 = vmax.f32 %v2120, 0.0
    %v2185 = vmax.f32 %v2121, 0.0
    %v2186 = vmax.f32 %v2122, 0.0
    %v2187 = vmax.f32 %v2123, 0.0
    %v2188 = vmax.f32 %v2124, 0.0
    %v2189 = vmax.f32 %v2125, 0.0
    %v2190 = vmax.f32 %v2126, 0.0
    %v2191 = vmax.f32 %v2127, 0.0
    %v2192 = vmax.f32 %v2128, 0.0
    %v2193 = vmax.f32 %v2129, 0.0
    %v2194 = vmax.f32 %v2130, 0.0
    %v2195 = vmax.f32 %v2131, 0.0
    %v2196 = vmax.f32 %v2132, 0.0
    %v2197 = vmax.f32 %v2133, 0.0
    %v2198 = vmax.f32 %v2134, 0.0
    %v2199 = vmax.f32 %v2135, 0.0
    %v2200 = vmax.f32 %v2136, 0.0
    %v2201 = vmax.f32 %v2137, 0.0
    %v2202 = vmax.f32 %v2138, 0.0
    %v2203 = vmax.f32 %v2139, 0.0
    %v2204 = vmax.f32 %v2140, 0.0
    %v2205 = vmax.f32 %v2141, 0.0
    %v2206 = vmax.f32 %v2142, 0.0
    %v2207 = vmax.f32 %v2143, 0.0
    %v2208 = vmax.f32 %v2144, 0.0
    %v2209 = vmax.f32 %v2145, 0.0
    %v2210 = vmax.f32 %v2146, 0.0
    %v2211 = vmax.f32 %v2147, 0.0
    %v2212 = vmax.f32 %v2148, 0.0
    %v2213 = vmax.f32 %v2149, 0.0
    %v2214 = vmax.f32 %v2150, 0.0
    %v2215 = vmax.f32 %v2151, 0.0
    %v2216 = vmax.f32 %v2152, 0.0
    %v2217 = vmax.f32 %v2153, 0.0
    %v2218 = vmax.f32 %v2154, 0.0
    %v2219 = vmax.f32 %v2155, 0.0
    %v2220 = vmax.f32 %v2156, 0.0
    %v2221 = vmax.f32 %v2157, 0.0
    %v2286 = vrot.slane %v2158, 7
    %v2287 = vrot.slane %v2159, 7
    %v2288 = vsel %vm197, %v2286, %v2287
    %v2289 = vrot.slane %v2160, 7
    %v2290 = vsel %vm197, %v2287, %v2289
    %v2291 = vrot.slane %v2161, 7
    %v2292 = vsel %vm197, %v2289, %v2291
    %v2293 = vrot.slane %v2162, 7
    %v2294 = vsel %vm197, %v2291, %v2293
    %v2295 = vrot.slane %v2163, 7
    %v2296 = vsel %vm197, %v2293, %v2295
    %v2297 = vrot.slane %v2164, 7
    %v2298 = vsel %vm197, %v2295, %v2297
    %v2299 = vrot.slane %v2165, 7
    %v2300 = vsel %vm197, %v2297, %v2299
    %v2301 = vrot.slane %v2166, 7
    %v2302 = vsel %vm197, %v2299, %v2301
    %v2303 = vrot.slane %v2167, 7
    %v2304 = vsel %vm197, %v2301, %v2303
    %v2305 = vrot.slane %v2168, 7
    %v2306 = vsel %vm197, %v2303, %v2305
    %v2307 = vrot.slane %v2169, 7
    %v2308 = vsel %vm197, %v2305, %v2307
    %v2309 = vrot.slane %v2170, 7
    %v2310 = vsel %vm197, %v2307, %v2309
    %v2311 = vrot.slane %v2171, 7
    %v2312 = vsel %vm197, %v2309, %v2311
    %v2313 = vrot.slane %v2172, 7
    %v2314 = vsel %vm197, %v2311, %v2313
    %v2315 = vrot.slane %v2173, 7
    %v2316 = vsel %vm197, %v2313, %v2315
    %v2317 = vrot.slane %v2174, 7
    %v2318 = vsel %vm197, %v2315, %v2317
    %v2319 = vrot.slane %v2175, 7
    %v2320 = vsel %vm197, %v2317, %v2319
    %v2321 = vrot.slane %v2176, 7
    %v2322 = vsel %vm197, %v2319, %v2321
    %v2323 = vrot.slane %v2177, 7
    %v2324 = vsel %vm197, %v2321, %v2323
    %v2325 = vrot.slane %v2178, 7
    %v2326 = vsel %vm197, %v2323, %v2325
    %v2327 = vrot.slane %v2179, 7
    %v2328 = vsel %vm197, %v2325, %v2327
    %v2329 = vrot.slane %v2180, 7
    %v2330 = vsel %vm197, %v2327, %v2329
    %v2331 = vrot.slane %v2181, 7
    %v2332 = vsel %vm197, %v2329, %v2331
    %v2333 = vrot.slane %v2182, 7
    %v2334 = vsel %vm197, %v2331, %v2333
    %v2335 = vrot.slane %v2183, 7
    %v2336 = vsel %vm197, %v2333, %v2335
    %v2337 = vrot.slane %v2184, 7
    %v2338 = vsel %vm197, %v2335, %v2337
    %v2339 = vrot.slane %v2185, 7
    %v2340 = vsel %vm197, %v2337, %v2339
    %v2341 = vrot.slane %v2186, 7
    %v2342 = vsel %vm197, %v2339, %v2341
    %v2343 = vrot.slane %v2187, 7
    %v2344 = vsel %vm197, %v2341, %v2343
    %v2345 = vrot.slane %v2188, 7
    %v2346 = vsel %vm197, %v2343, %v2345
    %v2347 = vrot.slane %v2189, 7
    %v2348 = vsel %vm197, %v2345, %v2347
    %v2349 = vrot.slane %v2190, 7
    %v2350 = vrot.slane %v2191, 7
    %v2351 = vsel %vm197, %v2349, %v2350
    %v2352 = vrot.slane %v2192, 7
    %v2353 = vsel %vm197, %v2350, %v2352
    %v2354 = vrot.slane %v2193, 7
    %v2355 = vsel %vm197, %v2352, %v2354
    %v2356 = vrot.slane %v2194, 7
    %v2357 = vsel %vm197, %v2354, %v2356
    %v2358 = vrot.slane %v2195, 7
    %v2359 = vsel %vm197, %v2356, %v2358
    %v2360 = vrot.slane %v2196, 7
    %v2361 = vsel %vm197, %v2358, %v2360
    %v2362 = vrot.slane %v2197, 7
    %v2363 = vsel %vm197, %v2360, %v2362
    %v2364 = vrot.slane %v2198, 7
    %v2365 = vsel %vm197, %v2362, %v2364
    %v2366 = vrot.slane %v2199, 7
    %v2367 = vsel %vm197, %v2364, %v2366
    %v2368 = vrot.slane %v2200, 7
    %v2369 = vsel %vm197, %v2366, %v2368
    %v2370 = vrot.slane %v2201, 7
    %v2371 = vsel %vm197, %v2368, %v2370
    %v2372 = vrot.slane %v2202, 7
    %v2373 = vsel %vm197, %v2370, %v2372
    %v2374 = vrot.slane %v2203, 7
    %v2375 = vsel %vm197, %v2372, %v2374
    %v2376 = vrot.slane %v2204, 7
    %v2377 = vsel %vm197, %v2374, %v2376
    %v2378 = vrot.slane %v2205, 7
    %v2379 = vsel %vm197, %v2376, %v2378
    %v2380 = vrot.slane %v2206, 7
    %v2381 = vsel %vm197, %v2378, %v2380
    %v2382 = vrot.slane %v2207, 7
    %v2383 = vsel %vm197, %v2380, %v2382
    %v2384 = vrot.slane %v2208, 7
    %v2385 = vsel %vm197, %v2382, %v2384
    %v2386 = vrot.slane %v2209, 7
    %v2387 = vsel %vm197, %v2384, %v2386
    %v2388 = vrot.slane %v2210, 7
    %v2389 = vsel %vm197, %v2386, %v2388
    %v2390 = vrot.slane %v2211, 7
    %v2391 = vsel %vm197, %v2388, %v2390
    %v2392 = vrot.slane %v2212, 7
    %v2393 = vsel %vm197, %v2390, %v2392
    %v2394 = vrot.slane %v2213, 7
    %v2395 = vsel %vm197, %v2392, %v2394
    %v2396 = vrot.slane %v2214, 7
    %v2397 = vsel %vm197, %v2394, %v2396
    %v2398 = vrot.slane %v2215, 7
    %v2399 = vsel %vm197, %v2396, %v2398
    %v2400 = vrot.slane %v2216, 7
    %v2401 = vsel %vm197, %v2398, %v2400
    %v2402 = vrot.slane %v2217, 7
    %v2403 = vsel %vm197, %v2400, %v2402
    %v2404 = vrot.slane %v2218, 7
    %v2405 = vsel %vm197, %v2402, %v2404
    %v2406 = vrot.slane %v2219, 7
    %v2407 = vsel %vm197, %v2404, %v2406
    %v2408 = vrot.slane %v2220, 7
    %v2409 = vsel %vm197, %v2406, %v2408
    %v2410 = vrot.slane %v2221, 7
    %v2411 = vsel %vm197, %v2408, %v2410
    %v2476 = vsel %vm197, 0.0, %v2286
    %v2477 = vsel %vm197, 0.0, %v2349
    %v2478 = vrot.slane %v2158, 1
    %v2479 = vrot.slane %v2159, 1
    %v2480 = vsel %vm390, %v2478, %v2479
    %v2481 = vrot.slane %v2160, 1
    %v2482 = vsel %vm390, %v2479, %v2481
    %v2483 = vrot.slane %v2161, 1
    %v2484 = vsel %vm390, %v2481, %v2483
    %v2485 = vrot.slane %v2162, 1
    %v2486 = vsel %vm390, %v2483, %v2485
    %v2487 = vrot.slane %v2163, 1
    %v2488 = vsel %vm390, %v2485, %v2487
    %v2489 = vrot.slane %v2164, 1
    %v2490 = vsel %vm390, %v2487, %v2489
    %v2491 = vrot.slane %v2165, 1
    %v2492 = vsel %vm390, %v2489, %v2491
    %v2493 = vrot.slane %v2166, 1
    %v2494 = vsel %vm390, %v2491, %v2493
    %v2495 = vrot.slane %v2167, 1
    %v2496 = vsel %vm390, %v2493, %v2495
    %v2497 = vrot.slane %v2168, 1
    %v2498 = vsel %vm390, %v2495, %v2497
    %v2499 = vrot.slane %v2169, 1
    %v2500 = vsel %vm390, %v2497, %v2499
    %v2501 = vrot.slane %v2170, 1
    %v2502 = vsel %vm390, %v2499, %v2501
    %v2503 = vrot.slane %v2171, 1
    %v2504 = vsel %vm390, %v2501, %v2503
    %v2505 = vrot.slane %v2172, 1
    %v2506 = vsel %vm390, %v2503, %v2505
    %v2507 = vrot.slane %v2173, 1
    %v2508 = vsel %vm390, %v2505, %v2507
    %v2509 = vrot.slane %v2174, 1
    %v2510 = vsel %vm390, %v2507, %v2509
    %v2511 = vrot.slane %v2175, 1
    %v2512 = vsel %vm390, %v2509, %v2511
    %v2513 = vrot.slane %v2176, 1
    %v2514 = vsel %vm390, %v2511, %v2513
    %v2515 = vrot.slane %v2177, 1
    %v2516 = vsel %vm390, %v2513, %v2515
    %v2517 = vrot.slane %v2178, 1
    %v2518 = vsel %vm390, %v2515, %v2517
    %v2519 = vrot.slane %v2179, 1
    %v2520 = vsel %vm390, %v2517, %v2519
    %v2521 = vrot.slane %v2180, 1
    %v2522 = vsel %vm390, %v2519, %v2521
    %v2523 = vrot.slane %v2181, 1
    %v2524 = vsel %vm390, %v2521, %v2523
    %v2525 = vrot.slane %v2182, 1
    %v2526 = vsel %vm390, %v2523, %v2525
    %v2527 = vrot.slane %v2183, 1
    %v2528 = vsel %vm390, %v2525, %v2527
    %v2529 = vrot.slane %v2184, 1
    %v2530 = vsel %vm390, %v2527, %v2529
    %v2531 = vrot.slane %v2185, 1
    %v2532 = vsel %vm390, %v2529, %v2531
    %v2533 = vrot.slane %v2186, 1
    %v2534 = vsel %vm390, %v2531, %v2533
    %v2535 = vrot.slane %v2187, 1
    %v2536 = vsel %vm390, %v2533, %v2535
    %v2537 = vrot.slane %v2188, 1
    %v2538 = vsel %vm390, %v2535, %v2537
    %v2539 = vrot.slane %v2189, 1
    %v2540 = vsel %vm390, %v2537, %v2539
    %v2541 = vrot.slane %v2190, 1
    %v2542 = vrot.slane %v2191, 1
    %v2543 = vsel %vm390, %v2541, %v2542
    %v2544 = vrot.slane %v2192, 1
    %v2545 = vsel %vm390, %v2542, %v2544
    %v2546 = vrot.slane %v2193, 1
    %v2547 = vsel %vm390, %v2544, %v2546
    %v2548 = vrot.slane %v2194, 1
    %v2549 = vsel %vm390, %v2546, %v2548
    %v2550 = vrot.slane %v2195, 1
    %v2551 = vsel %vm390, %v2548, %v2550
    %v2552 = vrot.slane %v2196, 1
    %v2553 = vsel %vm390, %v2550, %v2552
    %v2554 = vrot.slane %v2197, 1
    %v2555 = vsel %vm390, %v2552, %v2554
    %v2556 = vrot.slane %v2198, 1
    %v2557 = vsel %vm390, %v2554, %v2556
    %v2558 = vrot.slane %v2199, 1
    %v2559 = vsel %vm390, %v2556, %v2558
    %v2560 = vrot.slane %v2200, 1
    %v2561 = vsel %vm390, %v2558, %v2560
    %v2562 = vrot.slane %v2201, 1
    %v2563 = vsel %vm390, %v2560, %v2562
    %v2564 = vrot.slane %v2202, 1
    %v2565 = vsel %vm390, %v2562, %v2564
    %v2566 = vrot.slane %v2203, 1
    %v2567 = vsel %vm390, %v2564, %v2566
    %v2568 = vrot.slane %v2204, 1
    %v2569 = vsel %vm390, %v2566, %v2568
    %v2570 = vrot.slane %v2205, 1
    %v2571 = vsel %vm390, %v2568, %v2570
    %v2572 = vrot.slane %v2206, 1
    %v2573 = vsel %vm390, %v2570, %v2572
    %v2574 = vrot.slane %v2207, 1
    %v2575 = vsel %vm390, %v2572, %v2574
    %v2576 = vrot.slane %v2208, 1
    %v2577 = vsel %vm390, %v2574, %v2576
    %v2578 = vrot.slane %v2209, 1
    %v2579 = vsel %vm390, %v2576, %v2578
    %v2580 = vrot.slane %v2210, 1
    %v2581 = vsel %vm390, %v2578, %v2580
    %v2582 = vrot.slane %v2211, 1
    %v2583 = vsel %vm390, %v2580, %v2582
    %v2584 = vrot.slane %v2212, 1
    %v2585 = vsel %vm390, %v2582, %v2584
    %v2586 = vrot.slane %v2213, 1
    %v2587 = vsel %vm390, %v2584, %v2586
    %v2588 = vrot.slane %v2214, 1
    %v2589 = vsel %vm390, %v2586, %v2588
    %v2590 = vrot.slane %v2215, 1
    %v2591 = vsel %vm390, %v2588, %v2590
    %v2592 = vrot.slane %v2216, 1
    %v2593 = vsel %vm390, %v2590, %v2592
    %v2594 = vrot.slane %v2217, 1
    %v2595 = vsel %vm390, %v2592, %v2594
    %v2596 = vrot.slane %v2218, 1
    %v2597 = vsel %vm390, %v2594, %v2596
    %v2598 = vrot.slane %v2219, 1
    %v2599 = vsel %vm390, %v2596, %v2598
    %v2600 = vrot.slane %v2220, 1
    %v2601 = vsel %vm390, %v2598, %v2600
    %v2602 = vrot.slane %v2221, 1
    %v2603 = vsel %vm390, %v2600, %v2602
    %v2668 = vsel %vm390, %v2539, 0.0
    %v2669 = vsel %vm390, %v2602, 0.0
    %v2670 = vpack.c.bf16 %v2288, %v2476
    %v2671 = vpack.c.bf16 %v2292, %v2290
    %v2672 = vpack.c.bf16 %v2296, %v2294
    %v2673 = vpack.c.bf16 %v2300, %v2298
    %v2674 = vpack.c.bf16 %v2304, %v2302
    %v2675 = vpack.c.bf16 %v2308, %v2306
    %v2676 = vpack.c.bf16 %v2312, %v2310
    %v2677 = vpack.c.bf16 %v2316, %v2314
    %v2678 = vpack.c.bf16 %v2320, %v2318
    %v2679 = vpack.c.bf16 %v2324, %v2322
    %v2680 = vpack.c.bf16 %v2328, %v2326
    %v2681 = vpack.c.bf16 %v2332, %v2330
    %v2682 = vpack.c.bf16 %v2336, %v2334
    %v2683 = vpack.c.bf16 %v2340, %v2338
    %v2684 = vpack.c.bf16 %v2344, %v2342
    %v2685 = vpack.c.bf16 %v2348, %v2346
    %v2686 = vpack.c.bf16 %v2351, %v2477
    %v2687 = vpack.c.bf16 %v2355, %v2353
    %v2688 = vpack.c.bf16 %v2359, %v2357
    %v2689 = vpack.c.bf16 %v2363, %v2361
    %v2690 = vpack.c.bf16 %v2367, %v2365
    %v2691 = vpack.c.bf16 %v2371, %v2369
    %v2692 = vpack.c.bf16 %v2375, %v2373
    %v2693 = vpack.c.bf16 %v2379, %v2377
    %v2694 = vpack.c.bf16 %v2383, %v2381
    %v2695 = vpack.c.bf16 %v2387, %v2385
    %v2696 = vpack.c.bf16 %v2391, %v2389
    %v2697 = vpack.c.bf16 %v2395, %v2393
    %v2698 = vpack.c.bf16 %v2399, %v2397
    %v2699 = vpack.c.bf16 %v2403, %v2401
    %v2700 = vpack.c.bf16 %v2407, %v2405
    %v2701 = vpack.c.bf16 %v2411, %v2409
    %v2702 = vld [vmem:[#allocation7] sm:$0xf]
    %v2703 = vld [vmem:[#allocation7 + $0x4] sm:$0xf]
    %v2704 = vld [vmem:[#allocation7 + $0x8] sm:$0xf]
    %v2705 = vld [vmem:[#allocation7 + $0xc] sm:$0xf]
    %v2706 = vld [vmem:[#allocation7 + $0x10] sm:$0xf]
    %v2707 = vld [vmem:[#allocation7 + $0x14] sm:$0xf]
    %v2708 = vld [vmem:[#allocation7 + $0x18] sm:$0xf]
    %v2709 = vld [vmem:[#allocation7 + $0x1c] sm:$0xf]
    %v2710 = vld [vmem:[#allocation7 + $0x20] sm:$0xf]
    %v2711 = vld [vmem:[#allocation7 + $0x24] sm:$0xf]
    %v2712 = vld [vmem:[#allocation7 + $0x28] sm:$0xf]
    %v2713 = vld [vmem:[#allocation7 + $0x2c] sm:$0xf]
    %v2714 = vld [vmem:[#allocation7 + $0x30] sm:$0xf]
    %v2715 = vld [vmem:[#allocation7 + $0x34] sm:$0xf]
    %v2716 = vld [vmem:[#allocation7 + $0x38] sm:$0xf]
    %v2717 = vld [vmem:[#allocation7 + $0x3c] sm:$0xf]
    %v2718 = vpack.c.bf16 %v2159, %v2158
    %v2719 = vpack.c.bf16 %v2161, %v2160
    %v2720 = vpack.c.bf16 %v2163, %v2162
    %v2721 = vpack.c.bf16 %v2165, %v2164
    %v2722 = vpack.c.bf16 %v2167, %v2166
    %v2723 = vpack.c.bf16 %v2169, %v2168
    %v2724 = vpack.c.bf16 %v2171, %v2170
    %v2725 = vpack.c.bf16 %v2173, %v2172
    %v2726 = vpack.c.bf16 %v2175, %v2174
    %v2727 = vpack.c.bf16 %v2177, %v2176
    %v2728 = vpack.c.bf16 %v2179, %v2178
    %v2729 = vpack.c.bf16 %v2181, %v2180
    %v2730 = vpack.c.bf16 %v2183, %v2182
    %v2731 = vpack.c.bf16 %v2185, %v2184
    %v2732 = vpack.c.bf16 %v2187, %v2186
    %v2733 = vpack.c.bf16 %v2189, %v2188
    %v2734 = vpack.c.bf16 %v2191, %v2190
    %v2735 = vpack.c.bf16 %v2193, %v2192
    %v2736 = vpack.c.bf16 %v2195, %v2194
    %v2737 = vpack.c.bf16 %v2197, %v2196
    %v2738 = vpack.c.bf16 %v2199, %v2198
    %v2739 = vpack.c.bf16 %v2201, %v2200
    %v2740 = vpack.c.bf16 %v2203, %v2202
    %v2741 = vpack.c.bf16 %v2205, %v2204
    %v2742 = vpack.c.bf16 %v2207, %v2206
    %v2743 = vpack.c.bf16 %v2209, %v2208
    %v2744 = vpack.c.bf16 %v2211, %v2210
    %v2745 = vpack.c.bf16 %v2213, %v2212
    %v2746 = vpack.c.bf16 %v2215, %v2214
    %v2747 = vpack.c.bf16 %v2217, %v2216
    %v2748 = vpack.c.bf16 %v2219, %v2218
    %v2749 = vpack.c.bf16 %v2221, %v2220
    %s2750 = scalar_lea.vmem [#allocation7], 64
    %v2751 = vld [vmem:[%s2750] sm:$0xf]
    %v2752 = vld [vmem:[%s2750 + $0x4] sm:$0xf]
    %v2753 = vld [vmem:[%s2750 + $0x8] sm:$0xf]
    %v2754 = vld [vmem:[%s2750 + $0xc] sm:$0xf]
    %v2755 = vld [vmem:[%s2750 + $0x10] sm:$0xf]
    %v2756 = vld [vmem:[%s2750 + $0x14] sm:$0xf]
    %v2757 = vld [vmem:[%s2750 + $0x18] sm:$0xf]
    %v2758 = vld [vmem:[%s2750 + $0x1c] sm:$0xf]
    %v2759 = vld [vmem:[%s2750 + $0x20] sm:$0xf]
    %v2760 = vld [vmem:[%s2750 + $0x24] sm:$0xf]
    %v2761 = vld [vmem:[%s2750 + $0x28] sm:$0xf]
    %v2762 = vld [vmem:[%s2750 + $0x2c] sm:$0xf]
    %v2763 = vld [vmem:[%s2750 + $0x30] sm:$0xf]
    %v2764 = vld [vmem:[%s2750 + $0x34] sm:$0xf]
    %v2765 = vld [vmem:[%s2750 + $0x38] sm:$0xf]
    %v2766 = vld [vmem:[%s2750 + $0x3c] sm:$0xf]
    %v2783 = vunpack.c.l.b16 %v2751
    %v2784 = vunpack.c.l.b16 %v2752
    %v2785 = vunpack.c.l.b16 %v2753
    %v2786 = vunpack.c.l.b16 %v2754
    %v2787 = vunpack.c.l.b16 %v2755
    %v2788 = vunpack.c.l.b16 %v2756
    %v2789 = vunpack.c.l.b16 %v2757
    %v2790 = vunpack.c.l.b16 %v2758
    %v2791 = vunpack.c.l.b16 %v2759
    %v2792 = vunpack.c.l.b16 %v2760
    %v2793 = vunpack.c.l.b16 %v2761
    %v2794 = vunpack.c.l.b16 %v2762
    %v2795 = vunpack.c.l.b16 %v2763
    %v2796 = vunpack.c.l.b16 %v2764
    %v2797 = vunpack.c.l.b16 %v2765
    %v2798 = vunpack.c.l.b16 %v2766
    %v2799 = vpack.c.b16 %v2784, %v2783
    %v2800 = vpack.c.b16 %v2786, %v2785
    %v2801 = vpack.c.b16 %v2788, %v2787
    %v2802 = vpack.c.b16 %v2790, %v2789
    %v2803 = vpack.c.b16 %v2792, %v2791
    %v2804 = vpack.c.b16 %v2794, %v2793
    %v2805 = vpack.c.b16 %v2796, %v2795
    %v2806 = vpack.c.b16 %v2798, %v2797
    %2815 = vmatprep.subr.bf16.mxu0 0
    %2816 = vmatpush1.bf16.msra.mxu0 %v2799
    %2817 = vmatprep.subr.bf16.mxu0 0
    %2818 = vmatpush1.bf16.msra.mxu0 %v2800
    %2819 = vmatprep.subr.bf16.mxu0 0
    %2820 = vmatpush1.bf16.msra.mxu0 %v2801
    %2821 = vmatprep.subr.bf16.mxu0 0
    %2822 = vmatpush1.bf16.msra.mxu0 %v2802
    %2823 = vmatprep.subr.bf16.mxu0 0
    %2824 = vmatpush1.bf16.msra.mxu0 %v2803
    %2825 = vmatprep.subr.bf16.mxu0 0
    %2826 = vmatpush1.bf16.msra.mxu0 %v2804
    %2827 = vmatprep.subr.bf16.mxu0 0
    %2828 = vmatpush1.bf16.msra.mxu0 %v2805
    %2829 = vmatprep.subr.bf16.mxu0 0
    %2830 = vmatpush1.bf16.msra.mxu0 %v2806
    %2831 = vmatprep.subr.bf16.mxu0 0
    %2832 = vmatpush1.bf16.msra.mxu0 0
    %2833 = vmatprep.subr.bf16.mxu0 0
    %2834 = vmatpush1.bf16.msra.mxu0 0
    %2835 = vmatprep.subr.bf16.mxu0 0
    %2836 = vmatpush1.bf16.msra.mxu0 0
    %2837 = vmatprep.subr.bf16.mxu0 0
    %2838 = vmatpush1.bf16.msra.mxu0 0
    %2839 = vmatprep.subr.bf16.mxu0 0
    %2840 = vmatpush1.bf16.msra.mxu0 0
    %2841 = vmatprep.subr.bf16.mxu0 0
    %2842 = vmatpush1.bf16.msra.mxu0 0
    %2843 = vmatprep.subr.bf16.mxu0 0
    %2844 = vmatpush1.bf16.msra.mxu0 0
    %2845 = vmatprep.subr.bf16.mxu0 0
    %2846 = vmatpush1.bf16.msra.mxu0 0
    %2847 = vmatprep.mubr.bf16.mxu0 0
    %2848 = vmatmul.mubr.bf16.gmra.mrb[0].mxu0 %v2718
    %v2849 = vpop.f32.mrb[0].mxu0
    %v2850 = vadd.f32 0.0, %v2849
    %v2851 = vpop.f32.mrb[0].mxu0
    %v2852 = vpop.f32.mrb[0].mxu0
    %v2853 = vadd.f32 0.0, %v2852
    %v2854 = vpop.f32.mrb[0].mxu0
    %2855 = vmatprep.mubr.bf16.mxu0 0
    %2856 = vmatmul.mubr.bf16.gmra.mrb[0].mxu0 %v2719
    %v2857 = vpop.f32.mrb[0].mxu0
    %v2858 = vadd.f32 0.0, %v2857
    %v2859 = vpop.f32.mrb[0].mxu0
    %v2860 = vpop.f32.mrb[0].mxu0
    %v2861 = vadd.f32 0.0, %v2860
    %v2862 = vpop.f32.mrb[0].mxu0
    %2863 = vmatprep.mubr.bf16.mxu0 0
    %2864 = vmatmul.mubr.bf16.gmra.mrb[0].mxu0 %v2720
    %v2865 = vpop.f32.mrb[0].mxu0
    %v2866 = vadd.f32 0.0, %v2865
    %v2867 = vpop.f32.mrb[0].mxu0
    %v2868 = vpop.f32.mrb[0].mxu0
    %v2869 = vadd.f32 0.0, %v2868
    %v2870 = vpop.f32.mrb[0].mxu0
    %2871 = vmatprep.mubr.bf16.mxu0 0
    %2872 = vmatmul.mubr.bf16.gmra.mrb[0].mxu0 %v2721
    %v2873 = vpop.f32.mrb[0].mxu0
    %v2874 = vadd.f32 0.0, %v2873
    %v2875 = vpop.f32.mrb[0].mxu0
    %v2876 = vpop.f32.mrb[0].mxu0
    %v2877 = vadd.f32 0.0, %v2876
    %v2878 = vpop.f32.mrb[0].mxu0
    %2879 = vmatprep.mubr.bf16.mxu0 0
    %2880 = vmatmul.mubr.bf16.gmra.mrb[0].mxu0 %v2722
    %v2881 = vpop.f32.mrb[0].mxu0
    %v2882 = vadd.f32 0.0, %v2881
    %v2883 = vpop.f32.mrb[0].mxu0
    %v2884 = vpop.f32.mrb[0].mxu0
    %v2885 = vadd.f32 0.0, %v2884
    %v2886 = vpop.f32.mrb[0].mxu0
    %2887 = vmatprep.mubr.bf16.mxu0 0
    %2888 = vmatmul.mubr.bf16.gmra.mrb[0].mxu0 %v2723
    %v2889 = vpop.f32.mrb[0].mxu0
    %v2890 = vadd.f32 0.0, %v2889
    %v2891 = vpop.f32.mrb[0].mxu0
    %v2892 = vpop.f32.mrb[0].mxu0
    %v2893 = vadd.f32 0.0, %v2892
    %v2894 = vpop.f32.mrb[0].mxu0
    %2895 = vmatprep.mubr.bf16.mxu0 0
    %2896 = vmatmul.mubr.bf16.gmra.mrb[0].mxu0 %v2724
    %v2897 = vpop.f32.mrb[0].mxu0
    %v2898 = vadd.f32 0.0, %v2897
    %v2899 = vpop.f32.mrb[0].mxu0
    %v2900 = vpop.f32.mrb[0].mxu0
    %v2901 = vadd.f32 0.0, %v2900
    %v2902 = vpop.f32.mrb[0].mxu0
    %2903 = vmatprep.mubr.bf16.mxu0 0
    %2904 = vmatmul.mubr.bf16.gmra.mrb[0].mxu0 %v2725
    %v2905 = vpop.f32.mrb[0].mxu0
    %v2906 = vadd.f32 0.0, %v2905
    %v2907 = vpop.f32.mrb[0].mxu0
    %v2908 = vpop.f32.mrb[0].mxu0
    %v2909 = vadd.f32 0.0, %v2908
    %v2910 = vpop.f32.mrb[0].mxu0
    %2911 = vmatprep.mubr.bf16.mxu0 0
    %2912 = vmatmul.mubr.bf16.gmra.mrb[0].mxu0 %v2726
    %v2913 = vpop.f32.mrb[0].mxu0
    %v2914 = vadd.f32 0.0, %v2913
    %v2915 = vpop.f32.mrb[0].mxu0
    %v2916 = vpop.f32.mrb[0].mxu0
    %v2917 = vadd.f32 0.0, %v2916
    %v2918 = vpop.f32.mrb[0].mxu0
    %2919 = vmatprep.mubr.bf16.mxu0 0
    %2920 = vmatmul.mubr.bf16.gmra.mrb[0].mxu0 %v2727
    %v2921 = vpop.f32.mrb[0].mxu0
    %v2922 = vadd.f32 0.0, %v2921
    %v2923 = vpop.f32.mrb[0].mxu0
    %v2924 = vpop.f32.mrb[0].mxu0
    %v2925 = vadd.f32 0.0, %v2924
    %v2926 = vpop.f32.mrb[0].mxu0
    %2927 = vmatprep.mubr.bf16.mxu0 0
    %2928 = vmatmul.mubr.bf16.gmra.mrb[0].mxu0 %v2728
    %v2929 = vpop.f32.mrb[0].mxu0
    %v2930 = vadd.f32 0.0, %v2929
    %v2931 = vpop.f32.mrb[0].mxu0
    %v2932 = vpop.f32.mrb[0].mxu0
    %v2933 = vadd.f32 0.0, %v2932
    %v2934 = vpop.f32.mrb[0].mxu0
    %2935 = vmatprep.mubr.bf16.mxu0 0
    %2936 = vmatmul.mubr.bf16.gmra.mrb[0].mxu0 %v2729
    %v2937 = vpop.f32.mrb[0].mxu0
    %v2938 = vadd.f32 0.0, %v2937
    %v2939 = vpop.f32.mrb[0].mxu0
    %v2940 = vpop.f32.mrb[0].mxu0
    %v2941 = vadd.f32 0.0, %v2940
    %v2942 = vpop.f32.mrb[0].mxu0
    %2943 = vmatprep.mubr.bf16.mxu0 0
    %2944 = vmatmul.mubr.bf16.gmra.mrb[0].mxu0 %v2730
    %v2945 = vpop.f32.mrb[0].mxu0
    %v2946 = vadd.f32 0.0, %v2945
    %v2947 = vpop.f32.mrb[0].mxu0
    %v2948 = vpop.f32.mrb[0].mxu0
    %v2949 = vadd.f32 0.0, %v2948
    %v2950 = vpop.f32.mrb[0].mxu0
    %2951 = vmatprep.mubr.bf16.mxu0 0
    %2952 = vmatmul.mubr.bf16.gmra.mrb[0].mxu0 %v2731
    %v2953 = vpop.f32.mrb[0].mxu0
    %v2954 = vadd.f32 0.0, %v2953
    %v2955 = vpop.f32.mrb[0].mxu0
    %v2956 = vpop.f32.mrb[0].mxu0
    %v2957 = vadd.f32 0.0, %v2956
    %v2958 = vpop.f32.mrb[0].mxu0
    %2959 = vmatprep.mubr.bf16.mxu0 0
    %2960 = vmatmul.mubr.bf16.gmra.mrb[0].mxu0 %v2732
    %v2961 = vpop.f32.mrb[0].mxu0
    %v2962 = vadd.f32 0.0, %v2961
    %v2963 = vpop.f32.mrb[0].mxu0
    %v2964 = vpop.f32.mrb[0].mxu0
    %v2965 = vadd.f32 0.0, %v2964
    %v2966 = vpop.f32.mrb[0].mxu0
    %2967 = vmatprep.mubr.bf16.mxu0 0
    %2968 = vmatmul.mubr.bf16.gmra.mrb[0].mxu0 %v2733
    %v2969 = vpop.f32.mrb[0].mxu0
    %v2970 = vadd.f32 0.0, %v2969
    %v2971 = vpop.f32.mrb[0].mxu0
    %v2972 = vpop.f32.mrb[0].mxu0
    %v2973 = vadd.f32 0.0, %v2972
    %v2974 = vpop.f32.mrb[0].mxu0
    %2975 = vmatprep.mubr.bf16.mxu0 0
    %2976 = vmatmul.mubr.bf16.gmra.mrb[0].mxu0 %v2734
    %v2977 = vpop.f32.mrb[0].mxu0
    %v2978 = vadd.f32 0.0, %v2977
    %v2979 = vpop.f32.mrb[0].mxu0
    %v2980 = vpop.f32.mrb[0].mxu0
    %v2981 = vadd.f32 0.0, %v2980
    %v2982 = vpop.f32.mrb[0].mxu0
    %2983 = vmatprep.mubr.bf16.mxu0 0
    %2984 = vmatmul.mubr.bf16.gmra.mrb[0].mxu0 %v2735
    %v2985 = vpop.f32.mrb[0].mxu0
    %v2986 = vadd.f32 0.0, %v2985
    %v2987 = vpop.f32.mrb[0].mxu0
    %v2988 = vpop.f32.mrb[0].mxu0
    %v2989 = vadd.f32 0.0, %v2988
    %v2990 = vpop.f32.mrb[0].mxu0
    %2991 = vmatprep.mubr.bf16.mxu0 0
    %2992 = vmatmul.mubr.bf16.gmra.mrb[0].mxu0 %v2736
    %v2993 = vpop.f32.mrb[0].mxu0
    %v2994 = vadd.f32 0.0, %v2993
    %v2995 = vpop.f32.mrb[0].mxu0
    %v2996 = vpop.f32.mrb[0].mxu0
    %v2997 = vadd.f32 0.0, %v2996
    %v2998 = vpop.f32.mrb[0].mxu0
    %2999 = vmatprep.mubr.bf16.mxu0 0
    %3000 = vmatmul.mubr.bf16.gmra.mrb[0].mxu0 %v2737
    %v3001 = vpop.f32.mrb[0].mxu0
    %v3002 = vadd.f32 0.0, %v3001
    %v3003 = vpop.f32.mrb[0].mxu0
    %v3004 = vpop.f32.mrb[0].mxu0
    %v3005 = vadd.f32 0.0, %v3004
    %v3006 = vpop.f32.mrb[0].mxu0
    %3007 = vmatprep.mubr.bf16.mxu0 0
    %3008 = vmatmul.mubr.bf16.gmra.mrb[0].mxu0 %v2738
    %v3009 = vpop.f32.mrb[0].mxu0
    %v3010 = vadd.f32 0.0, %v3009
    %v3011 = vpop.f32.mrb[0].mxu0
    %v3012 = vpop.f32.mrb[0].mxu0
    %v3013 = vadd.f32 0.0, %v3012
    %v3014 = vpop.f32.mrb[0].mxu0
    %3015 = vmatprep.mubr.bf16.mxu0 0
    %3016 = vmatmul.mubr.bf16.gmra.mrb[0].mxu0 %v2739
    %v3017 = vpop.f32.mrb[0].mxu0
    %v3018 = vadd.f32 0.0, %v3017
    %v3019 = vpop.f32.mrb[0].mxu0
    %v3020 = vpop.f32.mrb[0].mxu0
    %v3021 = vadd.f32 0.0, %v3020
    %v3022 = vpop.f32.mrb[0].mxu0
    %3023 = vmatprep.mubr.bf16.mxu0 0
    %3024 = vmatmul.mubr.bf16.gmra.mrb[0].mxu0 %v2740
    %v3025 = vpop.f32.mrb[0].mxu0
    %v3026 = vadd.f32 0.0, %v3025
    %v3027 = vpop.f32.mrb[0].mxu0
    %v3028 = vpop.f32.mrb[0].mxu0
    %v3029 = vadd.f32 0.0, %v3028
    %v3030 = vpop.f32.mrb[0].mxu0
    %3031 = vmatprep.mubr.bf16.mxu0 0
    %3032 = vmatmul.mubr.bf16.gmra.mrb[0].mxu0 %v2741
    %v3033 = vpop.f32.mrb[0].mxu0
    %v3034 = vadd.f32 0.0, %v3033
    %v3035 = vpop.f32.mrb[0].mxu0
    %v3036 = vpop.f32.mrb[0].mxu0
    %v3037 = vadd.f32 0.0, %v3036
    %v3038 = vpop.f32.mrb[0].mxu0
    %3039 = vmatprep.mubr.bf16.mxu0 0
    %3040 = vmatmul.mubr.bf16.gmra.mrb[0].mxu0 %v2742
    %v3041 = vpop.f32.mrb[0].mxu0
    %v3042 = vadd.f32 0.0, %v3041
    %v3043 = vpop.f32.mrb[0].mxu0
    %v3044 = vpop.f32.mrb[0].mxu0
    %v3045 = vadd.f32 0.0, %v3044
    %v3046 = vpop.f32.mrb[0].mxu0
    %3047 = vmatprep.mubr.bf16.mxu0 0
    %3048 = vmatmul.mubr.bf16.gmra.mrb[0].mxu0 %v2743
    %v3049 = vpop.f32.mrb[0].mxu0
    %v3050 = vadd.f32 0.0, %v3049
    %v3051 = vpop.f32.mrb[0].mxu0
    %v3052 = vpop.f32.mrb[0].mxu0
    %v3053 = vadd.f32 0.0, %v3052
    %v3054 = vpop.f32.mrb[0].mxu0
    %3055 = vmatprep.mubr.bf16.mxu0 0
    %3056 = vmatmul.mubr.bf16.gmra.mrb[0].mxu0 %v2744
    %v3057 = vpop.f32.mrb[0].mxu0
    %v3058 = vadd.f32 0.0, %v3057
    %v3059 = vpop.f32.mrb[0].mxu0
    %v3060 = vpop.f32.mrb[0].mxu0
    %v3061 = vadd.f32 0.0, %v3060
    %v3062 = vpop.f32.mrb[0].mxu0
    %3063 = vmatprep.mubr.bf16.mxu0 0
    %3064 = vmatmul.mubr.bf16.gmra.mrb[0].mxu0 %v2745
    %v3065 = vpop.f32.mrb[0].mxu0
    %v3066 = vadd.f32 0.0, %v3065
    %v3067 = vpop.f32.mrb[0].mxu0
    %v3068 = vpop.f32.mrb[0].mxu0
    %v3069 = vadd.f32 0.0, %v3068
    %v3070 = vpop.f32.mrb[0].mxu0
    %3071 = vmatprep.mubr.bf16.mxu0 0
    %3072 = vmatmul.mubr.bf16.gmra.mrb[0].mxu0 %v2746
    %v3073 = vpop.f32.mrb[0].mxu0
    %v3074 = vadd.f32 0.0, %v3073
    %v3075 = vpop.f32.mrb[0].mxu0
    %v3076 = vpop.f32.mrb[0].mxu0
    %v3077 = vadd.f32 0.0, %v3076
    %v3078 = vpop.f32.mrb[0].mxu0
    %3079 = vmatprep.mubr.bf16.mxu0 0
    %3080 = vmatmul.mubr.bf16.gmra.mrb[0].mxu0 %v2747
    %v3081 = vpop.f32.mrb[0].mxu0
    %v3082 = vadd.f32 0.0, %v3081
    %v3083 = vpop.f32.mrb[0].mxu0
    %v3084 = vpop.f32.mrb[0].mxu0
    %v3085 = vadd.f32 0.0, %v3084
    %v3086 = vpop.f32.mrb[0].mxu0
    %3087 = vmatprep.mubr.bf16.mxu0 0
    %3088 = vmatmul.mubr.bf16.gmra.mrb[0].mxu0 %v2748
    %v3089 = vpop.f32.mrb[0].mxu0
    %v3090 = vadd.f32 0.0, %v3089
    %v3091 = vpop.f32.mrb[0].mxu0
    %v3092 = vpop.f32.mrb[0].mxu0
    %v3093 = vadd.f32 0.0, %v3092
    %v3094 = vpop.f32.mrb[0].mxu0
    %3095 = vmatprep.mubr.bf16.mxu0 0
    %3096 = vmatmul.mubr.bf16.gmra.mrb[0].mxu0 %v2749
    %v3097 = vpop.f32.mrb[0].mxu0
    %v3098 = vadd.f32 0.0, %v3097
    %v3099 = vpop.f32.mrb[0].mxu0
    %v3100 = vpop.f32.mrb[0].mxu0
    %v3101 = vadd.f32 0.0, %v3100
    %v3102 = vpop.f32.mrb[0].mxu0
    %3103 = vdwg.mxu0
    %v3120 = vunpack.c.l.b16 %v2702
    %v3121 = vunpack.c.l.b16 %v2703
    %v3122 = vunpack.c.l.b16 %v2704
    %v3123 = vunpack.c.l.b16 %v2705
    %v3124 = vunpack.c.l.b16 %v2706
    %v3125 = vunpack.c.l.b16 %v2707
    %v3126 = vunpack.c.l.b16 %v2708
    %v3127 = vunpack.c.l.b16 %v2709
    %v3128 = vunpack.c.l.b16 %v2710
    %v3129 = vunpack.c.l.b16 %v2711
    %v3130 = vunpack.c.l.b16 %v2712
    %v3131 = vunpack.c.l.b16 %v2713
    %v3132 = vunpack.c.l.b16 %v2714
    %v3133 = vunpack.c.l.b16 %v2715
    %v3134 = vunpack.c.l.b16 %v2716
    %v3135 = vunpack.c.l.b16 %v2717
    %v3136 = vpack.c.b16 %v3121, %v3120
    %v3137 = vpack.c.b16 %v3123, %v3122
    %v3138 = vpack.c.b16 %v3125, %v3124
    %v3139 = vpack.c.b16 %v3127, %v3126
    %v3140 = vpack.c.b16 %v3129, %v3128
    %v3141 = vpack.c.b16 %v3131, %v3130
    %v3142 = vpack.c.b16 %v3133, %v3132
    %v3143 = vpack.c.b16 %v3135, %v3134
    %3152 = vmatprep.subr.bf16.mxu0 0
    %3153 = vmatpush1.bf16.msra.mxu0 %v3136
    %3154 = vmatprep.subr.bf16.mxu0 0
    %3155 = vmatpush1.bf16.msra.mxu0 %v3137
    %3156 = vmatprep.subr.bf16.mxu0 0
    %3157 = vmatpush1.bf16.msra.mxu0 %v3138
    %3158 = vmatprep.subr.bf16.mxu0 0
    %3159 = vmatpush1.bf16.msra.mxu0 %v3139
    %3160 = vmatprep.subr.bf16.mxu0 0
    %3161 = vmatpush1.bf16.msra.mxu0 %v3140
    %3162 = vmatprep.subr.bf16.mxu0 0
    %3163 = vmatpush1.bf16.msra.mxu0 %v3141
    %3164 = vmatprep.subr.bf16.mxu0 0
    %3165 = vmatpush1.bf16.msra.mxu0 %v3142
    %3166 = vmatprep.subr.bf16.mxu0 0
    %3167 = vmatpush1.bf16.msra.mxu0 %v3143
    %3168 = vmatprep.subr.bf16.mxu0 0
    %3169 = vmatpush1.bf16.msra.mxu0 0
    %3170 = vmatprep.subr.bf16.mxu0 0
    %3171 = vmatpush1.bf16.msra.mxu0 0
    %3172 = vmatprep.subr.bf16.mxu0 0
    %3173 = vmatpush1.bf16.msra.mxu0 0
    %3174 = vmatprep.subr.bf16.mxu0 0
    %3175 = vmatpush1.bf16.msra.mxu0 0
    %3176 = vmatprep.subr.bf16.mxu0 0
    %3177 = vmatpush1.bf16.msra.mxu0 0
    %3178 = vmatprep.subr.bf16.mxu0 0
    %3179 = vmatpush1.bf16.msra.mxu0 0
    %3180 = vmatprep.subr.bf16.mxu0 0
    %3181 = vmatpush1.bf16.msra.mxu0 0
    %3182 = vmatprep.subr.bf16.mxu0 0
    %3183 = vmatpush1.bf16.msra.mxu0 0
    %3184 = vmatprep.mubr.bf16.mxu0 0
    %3185 = vmatmul.mubr.bf16.gmra.mrb[0].mxu0 %v2670
    %v3186 = vpop.f32.mrb[0].mxu0
    %v3187 = vadd.f32 %v2850, %v3186
    %v3188 = vpop.f32.mrb[0].mxu0
    %v3189 = vpop.f32.mrb[0].mxu0
    %v3190 = vadd.f32 %v2853, %v3189
    %v3191 = vpop.f32.mrb[0].mxu0
    %3192 = vmatprep.mubr.bf16.mxu0 0
    %3193 = vmatmul.mubr.bf16.gmra.mrb[0].mxu0 %v2671
    %v3194 = vpop.f32.mrb[0].mxu0
    %v3195 = vadd.f32 %v2858, %v3194
    %v3196 = vpop.f32.mrb[0].mxu0
    %v3197 = vpop.f32.mrb[0].mxu0
    %v3198 = vadd.f32 %v2861, %v3197
    %v3199 = vpop.f32.mrb[0].mxu0
    %3200 = vmatprep.mubr.bf16.mxu0 0
    %3201 = vmatmul.mubr.bf16.gmra.mrb[0].mxu0 %v2672
    %v3202 = vpop.f32.mrb[0].mxu0
    %v3203 = vadd.f32 %v2866, %v3202
    %v3204 = vpop.f32.mrb[0].mxu0
    %v3205 = vpop.f32.mrb[0].mxu0
    %v3206 = vadd.f32 %v2869, %v3205
    %v3207 = vpop.f32.mrb[0].mxu0
    %3208 = vmatprep.mubr.bf16.mxu0 0
    %3209 = vmatmul.mubr.bf16.gmra.mrb[0].mxu0 %v2673
    %v3210 = vpop.f32.mrb[0].mxu0
    %v3211 = vadd.f32 %v2874, %v3210
    %v3212 = vpop.f32.mrb[0].mxu0
    %v3213 = vpop.f32.mrb[0].mxu0
    %v3214 = vadd.f32 %v2877, %v3213
    %v3215 = vpop.f32.mrb[0].mxu0
    %3216 = vmatprep.mubr.bf16.mxu0 0
    %3217 = vmatmul.mubr.bf16.gmra.mrb[0].mxu0 %v2674
    %v3218 = vpop.f32.mrb[0].mxu0
    %v3219 = vadd.f32 %v2882, %v3218
    %v3220 = vpop.f32.mrb[0].mxu0
    %v3221 = vpop.f32.mrb[0].mxu0
    %v3222 = vadd.f32 %v2885, %v3221
    %v3223 = vpop.f32.mrb[0].mxu0
    %3224 = vmatprep.mubr.bf16.mxu0 0
    %3225 = vmatmul.mubr.bf16.gmra.mrb[0].mxu0 %v2675
    %v3226 = vpop.f32.mrb[0].mxu0
    %v3227 = vadd.f32 %v2890, %v3226
    %v3228 = vpop.f32.mrb[0].mxu0
    %v3229 = vpop.f32.mrb[0].mxu0
    %v3230 = vadd.f32 %v2893, %v3229
    %v3231 = vpop.f32.mrb[0].mxu0
    %3232 = vmatprep.mubr.bf16.mxu0 0
    %3233 = vmatmul.mubr.bf16.gmra.mrb[0].mxu0 %v2676
    %v3234 = vpop.f32.mrb[0].mxu0
    %v3235 = vadd.f32 %v2898, %v3234
    %v3236 = vpop.f32.mrb[0].mxu0
    %v3237 = vpop.f32.mrb[0].mxu0
    %v3238 = vadd.f32 %v2901, %v3237
    %v3239 = vpop.f32.mrb[0].mxu0
    %3240 = vmatprep.mubr.bf16.mxu0 0
    %3241 = vmatmul.mubr.bf16.gmra.mrb[0].mxu0 %v2677
    %v3242 = vpop.f32.mrb[0].mxu0
    %v3243 = vadd.f32 %v2906, %v3242
    %v3244 = vpop.f32.mrb[0].mxu0
    %v3245 = vpop.f32.mrb[0].mxu0
    %v3246 = vadd.f32 %v2909, %v3245
    %v3247 = vpop.f32.mrb[0].mxu0
    %3248 = vmatprep.mubr.bf16.mxu0 0
    %3249 = vmatmul.mubr.bf16.gmra.mrb[0].mxu0 %v2678
    %v3250 = vpop.f32.mrb[0].mxu0
    %v3251 = vadd.f32 %v2914, %v3250
    %v3252 = vpop.f32.mrb[0].mxu0
    %v3253 = vpop.f32.mrb[0].mxu0
    %v3254 = vadd.f32 %v2917, %v3253
    %v3255 = vpop.f32.mrb[0].mxu0
    %3256 = vmatprep.mubr.bf16.mxu0 0
    %3257 = vmatmul.mubr.bf16.gmra.mrb[0].mxu0 %v2679
    %v3258 = vpop.f32.mrb[0].mxu0
    %v3259 = vadd.f32 %v2922, %v3258
    %v3260 = vpop.f32.mrb[0].mxu0
    %v3261 = vpop.f32.mrb[0].mxu0
    %v3262 = vadd.f32 %v2925, %v3261
    %v3263 = vpop.f32.mrb[0].mxu0
    %3264 = vmatprep.mubr.bf16.mxu0 0
    %3265 = vmatmul.mubr.bf16.gmra.mrb[0].mxu0 %v2680
    %v3266 = vpop.f32.mrb[0].mxu0
    %v3267 = vadd.f32 %v2930, %v3266
    %v3268 = vpop.f32.mrb[0].mxu0
    %v3269 = vpop.f32.mrb[0].mxu0
    %v3270 = vadd.f32 %v2933, %v3269
    %v3271 = vpop.f32.mrb[0].mxu0
    %3272 = vmatprep.mubr.bf16.mxu0 0
    %3273 = vmatmul.mubr.bf16.gmra.mrb[0].mxu0 %v2681
    %v3274 = vpop.f32.mrb[0].mxu0
    %v3275 = vadd.f32 %v2938, %v3274
    %v3276 = vpop.f32.mrb[0].mxu0
    %v3277 = vpop.f32.mrb[0].mxu0
    %v3278 = vadd.f32 %v2941, %v3277
    %v3279 = vpop.f32.mrb[0].mxu0
    %3280 = vmatprep.mubr.bf16.mxu0 0
    %3281 = vmatmul.mubr.bf16.gmra.mrb[0].mxu0 %v2682
    %v3282 = vpop.f32.mrb[0].mxu0
    %v3283 = vadd.f32 %v2946, %v3282
    %v3284 = vpop.f32.mrb[0].mxu0
    %v3285 = vpop.f32.mrb[0].mxu0
    %v3286 = vadd.f32 %v2949, %v3285
    %v3287 = vpop.f32.mrb[0].mxu0
    %3288 = vmatprep.mubr.bf16.mxu0 0
    %3289 = vmatmul.mubr.bf16.gmra.mrb[0].mxu0 %v2683
    %v3290 = vpop.f32.mrb[0].mxu0
    %v3291 = vadd.f32 %v2954, %v3290
    %v3292 = vpop.f32.mrb[0].mxu0
    %v3293 = vpop.f32.mrb[0].mxu0
    %v3294 = vadd.f32 %v2957, %v3293
    %v3295 = vpop.f32.mrb[0].mxu0
    %3296 = vmatprep.mubr.bf16.mxu0 0
    %3297 = vmatmul.mubr.bf16.gmra.mrb[0].mxu0 %v2684
    %v3298 = vpop.f32.mrb[0].mxu0
    %v3299 = vadd.f32 %v2962, %v3298
    %v3300 = vpop.f32.mrb[0].mxu0
    %v3301 = vpop.f32.mrb[0].mxu0
    %v3302 = vadd.f32 %v2965, %v3301
    %v3303 = vpop.f32.mrb[0].mxu0
    %3304 = vmatprep.mubr.bf16.mxu0 0
    %3305 = vmatmul.mubr.bf16.gmra.mrb[0].mxu0 %v2685
    %v3306 = vpop.f32.mrb[0].mxu0
    %v3307 = vadd.f32 %v2970, %v3306
    %v3308 = vpop.f32.mrb[0].mxu0
    %v3309 = vpop.f32.mrb[0].mxu0
    %v3310 = vadd.f32 %v2973, %v3309
    %v3311 = vpop.f32.mrb[0].mxu0
    %3312 = vmatprep.mubr.bf16.mxu0 0
    %3313 = vmatmul.mubr.bf16.gmra.mrb[0].mxu0 %v2686
    %v3314 = vpop.f32.mrb[0].mxu0
    %v3315 = vadd.f32 %v2978, %v3314
    %v3316 = vpop.f32.mrb[0].mxu0
    %v3317 = vpop.f32.mrb[0].mxu0
    %v3318 = vadd.f32 %v2981, %v3317
    %v3319 = vpop.f32.mrb[0].mxu0
    %3320 = vmatprep.mubr.bf16.mxu0 0
    %3321 = vmatmul.mubr.bf16.gmra.mrb[0].mxu0 %v2687
    %v3322 = vpop.f32.mrb[0].mxu0
    %v3323 = vadd.f32 %v2986, %v3322
    %v3324 = vpop.f32.mrb[0].mxu0
    %v3325 = vpop.f32.mrb[0].mxu0
    %v3326 = vadd.f32 %v2989, %v3325
    %v3327 = vpop.f32.mrb[0].mxu0
    %3328 = vmatprep.mubr.bf16.mxu0 0
    %3329 = vmatmul.mubr.bf16.gmra.mrb[0].mxu0 %v2688
    %v3330 = vpop.f32.mrb[0].mxu0
    %v3331 = vadd.f32 %v2994, %v3330
    %v3332 = vpop.f32.mrb[0].mxu0
    %v3333 = vpop.f32.mrb[0].mxu0
    %v3334 = vadd.f32 %v2997, %v3333
    %v3335 = vpop.f32.mrb[0].mxu0
    %3336 = vmatprep.mubr.bf16.mxu0 0
    %3337 = vmatmul.mubr.bf16.gmra.mrb[0].mxu0 %v2689
    %v3338 = vpop.f32.mrb[0].mxu0
    %v3339 = vadd.f32 %v3002, %v3338
    %v3340 = vpop.f32.mrb[0].mxu0
    %v3341 = vpop.f32.mrb[0].mxu0
    %v3342 = vadd.f32 %v3005, %v3341
    %v3343 = vpop.f32.mrb[0].mxu0
    %3344 = vmatprep.mubr.bf16.mxu0 0
    %3345 = vmatmul.mubr.bf16.gmra.mrb[0].mxu0 %v2690
    %v3346 = vpop.f32.mrb[0].mxu0
    %v3347 = vadd.f32 %v3010, %v3346
    %v3348 = vpop.f32.mrb[0].mxu0
    %v3349 = vpop.f32.mrb[0].mxu0
    %v3350 = vadd.f32 %v3013, %v3349
    %v3351 = vpop.f32.mrb[0].mxu0
    %3352 = vmatprep.mubr.bf16.mxu0 0
    %3353 = vmatmul.mubr.bf16.gmra.mrb[0].mxu0 %v2691
    %v3354 = vpop.f32.mrb[0].mxu0
    %v3355 = vadd.f32 %v3018, %v3354
    %v3356 = vpop.f32.mrb[0].mxu0
    %v3357 = vpop.f32.mrb[0].mxu0
    %v3358 = vadd.f32 %v3021, %v3357
    %v3359 = vpop.f32.mrb[0].mxu0
    %3360 = vmatprep.mubr.bf16.mxu0 0
    %3361 = vmatmul.mubr.bf16.gmra.mrb[0].mxu0 %v2692
    %v3362 = vpop.f32.mrb[0].mxu0
    %v3363 = vadd.f32 %v3026, %v3362
    %v3364 = vpop.f32.mrb[0].mxu0
    %v3365 = vpop.f32.mrb[0].mxu0
    %v3366 = vadd.f32 %v3029, %v3365
    %v3367 = vpop.f32.mrb[0].mxu0
    %3368 = vmatprep.mubr.bf16.mxu0 0
    %3369 = vmatmul.mubr.bf16.gmra.mrb[0].mxu0 %v2693
    %v3370 = vpop.f32.mrb[0].mxu0
    %v3371 = vadd.f32 %v3034, %v3370
    %v3372 = vpop.f32.mrb[0].mxu0
    %v3373 = vpop.f32.mrb[0].mxu0
    %v3374 = vadd.f32 %v3037, %v3373
    %v3375 = vpop.f32.mrb[0].mxu0
    %3376 = vmatprep.mubr.bf16.mxu0 0
    %3377 = vmatmul.mubr.bf16.gmra.mrb[0].mxu0 %v2694
    %v3378 = vpop.f32.mrb[0].mxu0
    %v3379 = vadd.f32 %v3042, %v3378
    %v3380 = vpop.f32.mrb[0].mxu0
    %v3381 = vpop.f32.mrb[0].mxu0
    %v3382 = vadd.f32 %v3045, %v3381
    %v3383 = vpop.f32.mrb[0].mxu0
    %3384 = vmatprep.mubr.bf16.mxu0 0
    %3385 = vmatmul.mubr.bf16.gmra.mrb[0].mxu0 %v2695
    %v3386 = vpop.f32.mrb[0].mxu0
    %v3387 = vadd.f32 %v3050, %v3386
    %v3388 = vpop.f32.mrb[0].mxu0
    %v3389 = vpop.f32.mrb[0].mxu0
    %v3390 = vadd.f32 %v3053, %v3389
    %v3391 = vpop.f32.mrb[0].mxu0
    %3392 = vmatprep.mubr.bf16.mxu0 0
    %3393 = vmatmul.mubr.bf16.gmra.mrb[0].mxu0 %v2696
    %v3394 = vpop.f32.mrb[0].mxu0
    %v3395 = vadd.f32 %v3058, %v3394
    %v3396 = vpop.f32.mrb[0].mxu0
    %v3397 = vpop.f32.mrb[0].mxu0
    %v3398 = vadd.f32 %v3061, %v3397
    %v3399 = vpop.f32.mrb[0].mxu0
    %3400 = vmatprep.mubr.bf16.mxu0 0
    %3401 = vmatmul.mubr.bf16.gmra.mrb[0].mxu0 %v2697
    %v3402 = vpop.f32.mrb[0].mxu0
    %v3403 = vadd.f32 %v3066, %v3402
    %v3404 = vpop.f32.mrb[0].mxu0
    %v3405 = vpop.f32.mrb[0].mxu0
    %v3406 = vadd.f32 %v3069, %v3405
    %v3407 = vpop.f32.mrb[0].mxu0
    %3408 = vmatprep.mubr.bf16.mxu0 0
    %3409 = vmatmul.mubr.bf16.gmra.mrb[0].mxu0 %v2698
    %v3410 = vpop.f32.mrb[0].mxu0
    %v3411 = vadd.f32 %v3074, %v3410
    %v3412 = vpop.f32.mrb[0].mxu0
    %v3413 = vpop.f32.mrb[0].mxu0
    %v3414 = vadd.f32 %v3077, %v3413
    %v3415 = vpop.f32.mrb[0].mxu0
    %3416 = vmatprep.mubr.bf16.mxu0 0
    %3417 = vmatmul.mubr.bf16.gmra.mrb[0].mxu0 %v2699
    %v3418 = vpop.f32.mrb[0].mxu0
    %v3419 = vadd.f32 %v3082, %v3418
    %v3420 = vpop.f32.mrb[0].mxu0
    %v3421 = vpop.f32.mrb[0].mxu0
    %v3422 = vadd.f32 %v3085, %v3421
    %v3423 = vpop.f32.mrb[0].mxu0
    %3424 = vmatprep.mubr.bf16.mxu0 0
    %3425 = vmatmul.mubr.bf16.gmra.mrb[0].mxu0 %v2700
    %v3426 = vpop.f32.mrb[0].mxu0
    %v3427 = vadd.f32 %v3090, %v3426
    %v3428 = vpop.f32.mrb[0].mxu0
    %v3429 = vpop.f32.mrb[0].mxu0
    %v3430 = vadd.f32 %v3093, %v3429
    %v3431 = vpop.f32.mrb[0].mxu0
    %3432 = vmatprep.mubr.bf16.mxu0 0
    %3433 = vmatmul.mubr.bf16.gmra.mrb[0].mxu0 %v2701
    %v3434 = vpop.f32.mrb[0].mxu0
    %v3435 = vadd.f32 %v3098, %v3434
    %v3436 = vpop.f32.mrb[0].mxu0
    %v3437 = vpop.f32.mrb[0].mxu0
    %v3438 = vadd.f32 %v3101, %v3437
    %v3439 = vpop.f32.mrb[0].mxu0
    %3440 = vdwg.mxu0
    %v3441 = vpack.c.bf16 %v2482, %v2480
    %v3442 = vpack.c.bf16 %v2486, %v2484
    %v3443 = vpack.c.bf16 %v2490, %v2488
    %v3444 = vpack.c.bf16 %v2494, %v2492
    %v3445 = vpack.c.bf16 %v2498, %v2496
    %v3446 = vpack.c.bf16 %v2502, %v2500
    %v3447 = vpack.c.bf16 %v2506, %v2504
    %v3448 = vpack.c.bf16 %v2510, %v2508
    %v3449 = vpack.c.bf16 %v2514, %v2512
    %v3450 = vpack.c.bf16 %v2518, %v2516
    %v3451 = vpack.c.bf16 %v2522, %v2520
    %v3452 = vpack.c.bf16 %v2526, %v2524
    %v3453 = vpack.c.bf16 %v2530, %v2528
    %v3454 = vpack.c.bf16 %v2534, %v2532
    %v3455 = vpack.c.bf16 %v2538, %v2536
    %v3456 = vpack.c.bf16 %v2668, %v2540
    %v3457 = vpack.c.bf16 %v2545, %v2543
    %v3458 = vpack.c.bf16 %v2549, %v2547
    %v3459 = vpack.c.bf16 %v2553, %v2551
    %v3460 = vpack.c.bf16 %v2557, %v2555
    %v3461 = vpack.c.bf16 %v2561, %v2559
    %v3462 = vpack.c.bf16 %v2565, %v2563
    %v3463 = vpack.c.bf16 %v2569, %v2567
    %v3464 = vpack.c.bf16 %v2573, %v2571
    %v3465 = vpack.c.bf16 %v2577, %v2575
    %v3466 = vpack.c.bf16 %v2581, %v2579
    %v3467 = vpack.c.bf16 %v2585, %v2583
    %v3468 = vpack.c.bf16 %v2589, %v2587
    %v3469 = vpack.c.bf16 %v2593, %v2591
    %v3470 = vpack.c.bf16 %v2597, %v2595
    %v3471 = vpack.c.bf16 %v2601, %v2599
    %v3472 = vpack.c.bf16 %v2669, %v2603
    %s3473 = scalar_lea.vmem [#allocation7], 128
    %v3474 = vld [vmem:[%s3473] sm:$0xf]
    %v3475 = vld [vmem:[%s3473 + $0x4] sm:$0xf]
    %v3476 = vld [vmem:[%s3473 + $0x8] sm:$0xf]
    %v3477 = vld [vmem:[%s3473 + $0xc] sm:$0xf]
    %v3478 = vld [vmem:[%s3473 + $0x10] sm:$0xf]
    %v3479 = vld [vmem:[%s3473 + $0x14] sm:$0xf]
    %v3480 = vld [vmem:[%s3473 + $0x18] sm:$0xf]
    %v3481 = vld [vmem:[%s3473 + $0x1c] sm:$0xf]
    %v3482 = vld [vmem:[%s3473 + $0x20] sm:$0xf]
    %v3483 = vld [vmem:[%s3473 + $0x24] sm:$0xf]
    %v3484 = vld [vmem:[%s3473 + $0x28] sm:$0xf]
    %v3485 = vld [vmem:[%s3473 + $0x2c] sm:$0xf]
    %v3486 = vld [vmem:[%s3473 + $0x30] sm:$0xf]
    %v3487 = vld [vmem:[%s3473 + $0x34] sm:$0xf]
    %v3488 = vld [vmem:[%s3473 + $0x38] sm:$0xf]
    %v3489 = vld [vmem:[%s3473 + $0x3c] sm:$0xf]
    %v3506 = vunpack.c.l.b16 %v3474
    %v3507 = vunpack.c.l.b16 %v3475
    %v3508 = vunpack.c.l.b16 %v3476
    %v3509 = vunpack.c.l.b16 %v3477
    %v3510 = vunpack.c.l.b16 %v3478
    %v3511 = vunpack.c.l.b16 %v3479
    %v3512 = vunpack.c.l.b16 %v3480
    %v3513 = vunpack.c.l.b16 %v3481
    %v3514 = vunpack.c.l.b16 %v3482
    %v3515 = vunpack.c.l.b16 %v3483
    %v3516 = vunpack.c.l.b16 %v3484
    %v3517 = vunpack.c.l.b16 %v3485
    %v3518 = vunpack.c.l.b16 %v3486
    %v3519 = vunpack.c.l.b16 %v3487
    %v3520 = vunpack.c.l.b16 %v3488
    %v3521 = vunpack.c.l.b16 %v3489
    %v3522 = vpack.c.b16 %v3507, %v3506
    %v3523 = vpack.c.b16 %v3509, %v3508
    %v3524 = vpack.c.b16 %v3511, %v3510
    %v3525 = vpack.c.b16 %v3513, %v3512
    %v3526 = vpack.c.b16 %v3515, %v3514
    %v3527 = vpack.c.b16 %v3517, %v3516
    %v3528 = vpack.c.b16 %v3519, %v3518
    %v3529 = vpack.c.b16 %v3521, %v3520
    %3538 = vmatprep.subr.bf16.mxu0 0
    %3539 = vmatpush1.bf16.msra.mxu0 %v3522
    %3540 = vmatprep.subr.bf16.mxu0 0
    %3541 = vmatpush1.bf16.msra.mxu0 %v3523
    %3542 = vmatprep.subr.bf16.mxu0 0
    %3543 = vmatpush1.bf16.msra.mxu0 %v3524
    %3544 = vmatprep.subr.bf16.mxu0 0
    %3545 = vmatpush1.bf16.msra.mxu0 %v3525
    %3546 = vmatprep.subr.bf16.mxu0 0
    %3547 = vmatpush1.bf16.msra.mxu0 %v3526
    %3548 = vmatprep.subr.bf16.mxu0 0
    %3549 = vmatpush1.bf16.msra.mxu0 %v3527
    %3550 = vmatprep.subr.bf16.mxu0 0
    %3551 = vmatpush1.bf16.msra.mxu0 %v3528
    %3552 = vmatprep.subr.bf16.mxu0 0
    %3553 = vmatpush1.bf16.msra.mxu0 %v3529
    %3554 = vmatprep.subr.bf16.mxu0 0
    %3555 = vmatpush1.bf16.msra.mxu0 0
    %3556 = vmatprep.subr.bf16.mxu0 0
    %3557 = vmatpush1.bf16.msra.mxu0 0
    %3558 = vmatprep.subr.bf16.mxu0 0
    %3559 = vmatpush1.bf16.msra.mxu0 0
    %3560 = vmatprep.subr.bf16.mxu0 0
    %3561 = vmatpush1.bf16.msra.mxu0 0
    %3562 = vmatprep.subr.bf16.mxu0 0
    %3563 = vmatpush1.bf16.msra.mxu0 0
    %3564 = vmatprep.subr.bf16.mxu0 0
    %3565 = vmatpush1.bf16.msra.mxu0 0
    %3566 = vmatprep.subr.bf16.mxu0 0
    %3567 = vmatpush1.bf16.msra.mxu0 0
    %3568 = vmatprep.subr.bf16.mxu0 0
    %3569 = vmatpush1.bf16.msra.mxu0 0
    %3570 = vmatprep.mubr.bf16.mxu0 0
    %3571 = vmatmul.mubr.bf16.gmra.mrb[0].mxu0 %v3441
    %v3572 = vpop.f32.mrb[0].mxu0
    %v3573 = vadd.f32 0.0, %v3572
    %v3574 = vpop.f32.mrb[0].mxu0
    %v3575 = vpop.f32.mrb[0].mxu0
    %v3576 = vadd.f32 0.0, %v3575
    %v3577 = vpop.f32.mrb[0].mxu0
    %3578 = vmatprep.mubr.bf16.mxu0 0
    %3579 = vmatmul.mubr.bf16.gmra.mrb[0].mxu0 %v3442
    %v3580 = vpop.f32.mrb[0].mxu0
    %v3581 = vadd.f32 0.0, %v3580
    %v3582 = vpop.f32.mrb[0].mxu0
    %v3583 = vpop.f32.mrb[0].mxu0
    %v3584 = vadd.f32 0.0, %v3583
    %v3585 = vpop.f32.mrb[0].mxu0
    %3586 = vmatprep.mubr.bf16.mxu0 0
    %3587 = vmatmul.mubr.bf16.gmra.mrb[0].mxu0 %v3443
    %v3588 = vpop.f32.mrb[0].mxu0
    %v3589 = vadd.f32 0.0, %v3588
    %v3590 = vpop.f32.mrb[0].mxu0
    %v3591 = vpop.f32.mrb[0].mxu0
    %v3592 = vadd.f32 0.0, %v3591
    %v3593 = vpop.f32.mrb[0].mxu0
    %3594 = vmatprep.mubr.bf16.mxu0 0
    %3595 = vmatmul.mubr.bf16.gmra.mrb[0].mxu0 %v3444
    %v3596 = vpop.f32.mrb[0].mxu0
    %v3597 = vadd.f32 0.0, %v3596
    %v3598 = vpop.f32.mrb[0].mxu0
    %v3599 = vpop.f32.mrb[0].mxu0
    %v3600 = vadd.f32 0.0, %v3599
    %v3601 = vpop.f32.mrb[0].mxu0
    %3602 = vmatprep.mubr.bf16.mxu0 0
    %3603 = vmatmul.mubr.bf16.gmra.mrb[0].mxu0 %v3445
    %v3604 = vpop.f32.mrb[0].mxu0
    %v3605 = vadd.f32 0.0, %v3604
    %v3606 = vpop.f32.mrb[0].mxu0
    %v3607 = vpop.f32.mrb[0].mxu0
    %v3608 = vadd.f32 0.0, %v3607
    %v3609 = vpop.f32.mrb[0].mxu0
    %3610 = vmatprep.mubr.bf16.mxu0 0
    %3611 = vmatmul.mubr.bf16.gmra.mrb[0].mxu0 %v3446
    %v3612 = vpop.f32.mrb[0].mxu0
    %v3613 = vadd.f32 0.0, %v3612
    %v3614 = vpop.f32.mrb[0].mxu0
    %v3615 = vpop.f32.mrb[0].mxu0
    %v3616 = vadd.f32 0.0, %v3615
    %v3617 = vpop.f32.mrb[0].mxu0
    %3618 = vmatprep.mubr.bf16.mxu0 0
    %3619 = vmatmul.mubr.bf16.gmra.mrb[0].mxu0 %v3447
    %v3620 = vpop.f32.mrb[0].mxu0
    %v3621 = vadd.f32 0.0, %v3620
    %v3622 = vpop.f32.mrb[0].mxu0
    %v3623 = vpop.f32.mrb[0].mxu0
    %v3624 = vadd.f32 0.0, %v3623
    %v3625 = vpop.f32.mrb[0].mxu0
    %3626 = vmatprep.mubr.bf16.mxu0 0
    %3627 = vmatmul.mubr.bf16.gmra.mrb[0].mxu0 %v3448
    %v3628 = vpop.f32.mrb[0].mxu0
    %v3629 = vadd.f32 0.0, %v3628
    %v3630 = vpop.f32.mrb[0].mxu0
    %v3631 = vpop.f32.mrb[0].mxu0
    %v3632 = vadd.f32 0.0, %v3631
    %v3633 = vpop.f32.mrb[0].mxu0
    %3634 = vmatprep.mubr.bf16.mxu0 0
    %3635 = vmatmul.mubr.bf16.gmra.mrb[0].mxu0 %v3449
    %v3636 = vpop.f32.mrb[0].mxu0
    %v3637 = vadd.f32 0.0, %v3636
    %v3638 = vpop.f32.mrb[0].mxu0
    %v3639 = vpop.f32.mrb[0].mxu0
    %v3640 = vadd.f32 0.0, %v3639
    %v3641 = vpop.f32.mrb[0].mxu0
    %3642 = vmatprep.mubr.bf16.mxu0 0
    %3643 = vmatmul.mubr.bf16.gmra.mrb[0].mxu0 %v3450
    %v3644 = vpop.f32.mrb[0].mxu0
    %v3645 = vadd.f32 0.0, %v3644
    %v3646 = vpop.f32.mrb[0].mxu0
    %v3647 = vpop.f32.mrb[0].mxu0
    %v3648 = vadd.f32 0.0, %v3647
    %v3649 = vpop.f32.mrb[0].mxu0
    %3650 = vmatprep.mubr.bf16.mxu0 0
    %3651 = vmatmul.mubr.bf16.gmra.mrb[0].mxu0 %v3451
    %v3652 = vpop.f32.mrb[0].mxu0
    %v3653 = vadd.f32 0.0, %v3652
    %v3654 = vpop.f32.mrb[0].mxu0
    %v3655 = vpop.f32.mrb[0].mxu0
    %v3656 = vadd.f32 0.0, %v3655
    %v3657 = vpop.f32.mrb[0].mxu0
    %3658 = vmatprep.mubr.bf16.mxu0 0
    %3659 = vmatmul.mubr.bf16.gmra.mrb[0].mxu0 %v3452
    %v3660 = vpop.f32.mrb[0].mxu0
    %v3661 = vadd.f32 0.0, %v3660
    %v3662 = vpop.f32.mrb[0].mxu0
    %v3663 = vpop.f32.mrb[0].mxu0
    %v3664 = vadd.f32 0.0, %v3663
    %v3665 = vpop.f32.mrb[0].mxu0
    %3666 = vmatprep.mubr.bf16.mxu0 0
    %3667 = vmatmul.mubr.bf16.gmra.mrb[0].mxu0 %v3453
    %v3668 = vpop.f32.mrb[0].mxu0
    %v3669 = vadd.f32 0.0, %v3668
    %v3670 = vpop.f32.mrb[0].mxu0
    %v3671 = vpop.f32.mrb[0].mxu0
    %v3672 = vadd.f32 0.0, %v3671
    %v3673 = vpop.f32.mrb[0].mxu0
    %3674 = vmatprep.mubr.bf16.mxu0 0
    %3675 = vmatmul.mubr.bf16.gmra.mrb[0].mxu0 %v3454
    %v3676 = vpop.f32.mrb[0].mxu0
    %v3677 = vadd.f32 0.0, %v3676
    %v3678 = vpop.f32.mrb[0].mxu0
    %v3679 = vpop.f32.mrb[0].mxu0
    %v3680 = vadd.f32 0.0, %v3679
    %v3681 = vpop.f32.mrb[0].mxu0
    %3682 = vmatprep.mubr.bf16.mxu0 0
    %3683 = vmatmul.mubr.bf16.gmra.mrb[0].mxu0 %v3455
    %v3684 = vpop.f32.mrb[0].mxu0
    %v3685 = vadd.f32 0.0, %v3684
    %v3686 = vpop.f32.mrb[0].mxu0
    %v3687 = vpop.f32.mrb[0].mxu0
    %v3688 = vadd.f32 0.0, %v3687
    %v3689 = vpop.f32.mrb[0].mxu0
    %3690 = vmatprep.mubr.bf16.mxu0 0
    %3691 = vmatmul.mubr.bf16.gmra.mrb[0].mxu0 %v3456
    %v3692 = vpop.f32.mrb[0].mxu0
    %v3693 = vadd.f32 0.0, %v3692
    %v3694 = vpop.f32.mrb[0].mxu0
    %v3695 = vpop.f32.mrb[0].mxu0
    %v3696 = vadd.f32 0.0, %v3695
    %v3697 = vpop.f32.mrb[0].mxu0
    %3698 = vmatprep.mubr.bf16.mxu0 0
    %3699 = vmatmul.mubr.bf16.gmra.mrb[0].mxu0 %v3457
    %v3700 = vpop.f32.mrb[0].mxu0
    %v3701 = vadd.f32 0.0, %v3700
    %v3702 = vpop.f32.mrb[0].mxu0
    %v3703 = vpop.f32.mrb[0].mxu0
    %v3704 = vadd.f32 0.0, %v3703
    %v3705 = vpop.f32.mrb[0].mxu0
    %3706 = vmatprep.mubr.bf16.mxu0 0
    %3707 = vmatmul.mubr.bf16.gmra.mrb[0].mxu0 %v3458
    %v3708 = vpop.f32.mrb[0].mxu0
    %v3709 = vadd.f32 0.0, %v3708
    %v3710 = vpop.f32.mrb[0].mxu0
    %v3711 = vpop.f32.mrb[0].mxu0
    %v3712 = vadd.f32 0.0, %v3711
    %v3713 = vpop.f32.mrb[0].mxu0
    %3714 = vmatprep.mubr.bf16.mxu0 0
    %3715 = vmatmul.mubr.bf16.gmra.mrb[0].mxu0 %v3459
    %v3716 = vpop.f32.mrb[0].mxu0
    %v3717 = vadd.f32 0.0, %v3716
    %v3718 = vpop.f32.mrb[0].mxu0
    %v3719 = vpop.f32.mrb[0].mxu0
    %v3720 = vadd.f32 0.0, %v3719
    %v3721 = vpop.f32.mrb[0].mxu0
    %3722 = vmatprep.mubr.bf16.mxu0 0
    %3723 = vmatmul.mubr.bf16.gmra.mrb[0].mxu0 %v3460
    %v3724 = vpop.f32.mrb[0].mxu0
    %v3725 = vadd.f32 0.0, %v3724
    %v3726 = vpop.f32.mrb[0].mxu0
    %v3727 = vpop.f32.mrb[0].mxu0
    %v3728 = vadd.f32 0.0, %v3727
    %v3729 = vpop.f32.mrb[0].mxu0
    %3730 = vmatprep.mubr.bf16.mxu0 0
    %3731 = vmatmul.mubr.bf16.gmra.mrb[0].mxu0 %v3461
    %v3732 = vpop.f32.mrb[0].mxu0
    %v3733 = vadd.f32 0.0, %v3732
    %v3734 = vpop.f32.mrb[0].mxu0
    %v3735 = vpop.f32.mrb[0].mxu0
    %v3736 = vadd.f32 0.0, %v3735
    %v3737 = vpop.f32.mrb[0].mxu0
    %3738 = vmatprep.mubr.bf16.mxu0 0
    %3739 = vmatmul.mubr.bf16.gmra.mrb[0].mxu0 %v3462
    %v3740 = vpop.f32.mrb[0].mxu0
    %v3741 = vadd.f32 0.0, %v3740
    %v3742 = vpop.f32.mrb[0].mxu0
    %v3743 = vpop.f32.mrb[0].mxu0
    %v3744 = vadd.f32 0.0, %v3743
    %v3745 = vpop.f32.mrb[0].mxu0
    %3746 = vmatprep.mubr.bf16.mxu0 0
    %3747 = vmatmul.mubr.bf16.gmra.mrb[0].mxu0 %v3463
    %v3748 = vpop.f32.mrb[0].mxu0
    %v3749 = vadd.f32 0.0, %v3748
    %v3750 = vpop.f32.mrb[0].mxu0
    %v3751 = vpop.f32.mrb[0].mxu0
    %v3752 = vadd.f32 0.0, %v3751
    %v3753 = vpop.f32.mrb[0].mxu0
    %3754 = vmatprep.mubr.bf16.mxu0 0
    %3755 = vmatmul.mubr.bf16.gmra.mrb[0].mxu0 %v3464
    %v3756 = vpop.f32.mrb[0].mxu0
    %v3757 = vadd.f32 0.0, %v3756
    %v3758 = vpop.f32.mrb[0].mxu0
    %v3759 = vpop.f32.mrb[0].mxu0
    %v3760 = vadd.f32 0.0, %v3759
    %v3761 = vpop.f32.mrb[0].mxu0
    %3762 = vmatprep.mubr.bf16.mxu0 0
    %3763 = vmatmul.mubr.bf16.gmra.mrb[0].mxu0 %v3465
    %v3764 = vpop.f32.mrb[0].mxu0
    %v3765 = vadd.f32 0.0, %v3764
    %v3766 = vpop.f32.mrb[0].mxu0
    %v3767 = vpop.f32.mrb[0].mxu0
    %v3768 = vadd.f32 0.0, %v3767
    %v3769 = vpop.f32.mrb[0].mxu0
    %3770 = vmatprep.mubr.bf16.mxu0 0
    %3771 = vmatmul.mubr.bf16.gmra.mrb[0].mxu0 %v3466
    %v3772 = vpop.f32.mrb[0].mxu0
    %v3773 = vadd.f32 0.0, %v3772
    %v3774 = vpop.f32.mrb[0].mxu0
    %v3775 = vpop.f32.mrb[0].mxu0
    %v3776 = vadd.f32 0.0, %v3775
    %v3777 = vpop.f32.mrb[0].mxu0
    %3778 = vmatprep.mubr.bf16.mxu0 0
    %3779 = vmatmul.mubr.bf16.gmra.mrb[0].mxu0 %v3467
    %v3780 = vpop.f32.mrb[0].mxu0
    %v3781 = vadd.f32 0.0, %v3780
    %v3782 = vpop.f32.mrb[0].mxu0
    %v3783 = vpop.f32.mrb[0].mxu0
    %v3784 = vadd.f32 0.0, %v3783
    %v3785 = vpop.f32.mrb[0].mxu0
    %3786 = vmatprep.mubr.bf16.mxu0 0
    %3787 = vmatmul.mubr.bf16.gmra.mrb[0].mxu0 %v3468
    %v3788 = vpop.f32.mrb[0].mxu0
    %v3789 = vadd.f32 0.0, %v3788
    %v3790 = vpop.f32.mrb[0].mxu0
    %v3791 = vpop.f32.mrb[0].mxu0
    %v3792 = vadd.f32 0.0, %v3791
    %v3793 = vpop.f32.mrb[0].mxu0
    %3794 = vmatprep.mubr.bf16.mxu0 0
    %3795 = vmatmul.mubr.bf16.gmra.mrb[0].mxu0 %v3469
    %v3796 = vpop.f32.mrb[0].mxu0
    %v3797 = vadd.f32 0.0, %v3796
    %v3798 = vpop.f32.mrb[0].mxu0
    %v3799 = vpop.f32.mrb[0].mxu0
    %v3800 = vadd.f32 0.0, %v3799
    %v3801 = vpop.f32.mrb[0].mxu0
    %3802 = vmatprep.mubr.bf16.mxu0 0
    %3803 = vmatmul.mubr.bf16.gmra.mrb[0].mxu0 %v3470
    %v3804 = vpop.f32.mrb[0].mxu0
    %v3805 = vadd.f32 0.0, %v3804
    %v3806 = vpop.f32.mrb[0].mxu0
    %v3807 = vpop.f32.mrb[0].mxu0
    %v3808 = vadd.f32 0.0, %v3807
    %v3809 = vpop.f32.mrb[0].mxu0
    %3810 = vmatprep.mubr.bf16.mxu0 0
    %3811 = vmatmul.mubr.bf16.gmra.mrb[0].mxu0 %v3471
    %v3812 = vpop.f32.mrb[0].mxu0
    %v3813 = vadd.f32 0.0, %v3812
    %v3814 = vpop.f32.mrb[0].mxu0
    %v3815 = vpop.f32.mrb[0].mxu0
    %v3816 = vadd.f32 0.0, %v3815
    %v3817 = vpop.f32.mrb[0].mxu0
    %3818 = vmatprep.mubr.bf16.mxu0 0
    %3819 = vmatmul.mubr.bf16.gmra.mrb[0].mxu0 %v3472
    %v3820 = vpop.f32.mrb[0].mxu0
    %v3821 = vadd.f32 0.0, %v3820
    %v3822 = vpop.f32.mrb[0].mxu0
    %v3823 = vpop.f32.mrb[0].mxu0
    %v3824 = vadd.f32 0.0, %v3823
    %v3825 = vpop.f32.mrb[0].mxu0
    %3826 = vdwg.mxu0
    %v3827 = vadd.f32 %v3187, %v3573
    %v3828 = vadd.f32 %v3190, %v3576
    %v3829 = vadd.f32 %v3195, %v3581
    %v3830 = vadd.f32 %v3198, %v3584
    %v3831 = vadd.f32 %v3203, %v3589
    %v3832 = vadd.f32 %v3206, %v3592
    %v3833 = vadd.f32 %v3211, %v3597
    %v3834 = vadd.f32 %v3214, %v3600
    %v3835 = vadd.f32 %v3219, %v3605
    %v3836 = vadd.f32 %v3222, %v3608
    %v3837 = vadd.f32 %v3227, %v3613
    %v3838 = vadd.f32 %v3230, %v3616
    %v3839 = vadd.f32 %v3235, %v3621
    %v3840 = vadd.f32 %v3238, %v3624
    %v3841 = vadd.f32 %v3243, %v3629
    %v3842 = vadd.f32 %v3246, %v3632
    %v3843 = vadd.f32 %v3251, %v3637
    %v3844 = vadd.f32 %v3254, %v3640
    %v3845 = vadd.f32 %v3259, %v3645
    %v3846 = vadd.f32 %v3262, %v3648
    %v3847 = vadd.f32 %v3267, %v3653
    %v3848 = vadd.f32 %v3270, %v3656
    %v3849 = vadd.f32 %v3275, %v3661
    %v3850 = vadd.f32 %v3278, %v3664
    %v3851 = vadd.f32 %v3283, %v3669
    %v3852 = vadd.f32 %v3286, %v3672
    %v3853 = vadd.f32 %v3291, %v3677
    %v3854 = vadd.f32 %v3294, %v3680
    %v3855 = vadd.f32 %v3299, %v3685
    %v3856 = vadd.f32 %v3302, %v3688
    %v3857 = vadd.f32 %v3307, %v3693
    %v3858 = vadd.f32 %v3310, %v3696
    %v3859 = vadd.f32 %v3315, %v3701
    %v3860 = vadd.f32 %v3318, %v3704
    %v3861 = vadd.f32 %v3323, %v3709
    %v3862 = vadd.f32 %v3326, %v3712
    %v3863 = vadd.f32 %v3331, %v3717
    %v3864 = vadd.f32 %v3334, %v3720
    %v3865 = vadd.f32 %v3339, %v3725
    %v3866 = vadd.f32 %v3342, %v3728
    %v3867 = vadd.f32 %v3347, %v3733
    %v3868 = vadd.f32 %v3350, %v3736
    %v3869 = vadd.f32 %v3355, %v3741
    %v3870 = vadd.f32 %v3358, %v3744
    %v3871 = vadd.f32 %v3363, %v3749
    %v3872 = vadd.f32 %v3366, %v3752
    %v3873 = vadd.f32 %v3371, %v3757
    %v3874 = vadd.f32 %v3374, %v3760
    %v3875 = vadd.f32 %v3379, %v3765
    %v3876 = vadd.f32 %v3382, %v3768
    %v3877 = vadd.f32 %v3387, %v3773
    %v3878 = vadd.f32 %v3390, %v3776
    %v3879 = vadd.f32 %v3395, %v3781
    %v3880 = vadd.f32 %v3398, %v3784
    %v3881 = vadd.f32 %v3403, %v3789
    %v3882 = vadd.f32 %v3406, %v3792
    %v3883 = vadd.f32 %v3411, %v3797
    %v3884 = vadd.f32 %v3414, %v3800
    %v3885 = vadd.f32 %v3419, %v3805
    %v3886 = vadd.f32 %v3422, %v3808
    %v3887 = vadd.f32 %v3427, %v3813
    %v3888 = vadd.f32 %v3430, %v3816
    %v3889 = vadd.f32 %v3435, %v3821
    %v3890 = vadd.f32 %v3438, %v3824
    %v3891 = vld [vmem:[%s5] sm:$0x1]
    %v3892 = vld [vmem:[%s6] sm:$0x1]
    %v3893 = vadd.f32 %v3827, %v3828
    %v3894 = vadd.f32 %v3893, %v3829
    %v3895 = vadd.f32 %v3894, %v3830
    %v3896 = vadd.f32 %v3895, %v3831
    %v3897 = vadd.f32 %v3896, %v3832
    %v3898 = vadd.f32 %v3897, %v3833
    %v3899 = vadd.f32 %v3898, %v3834
    %v3900 = vadd.f32 %v3899, %v3835
    %v3901 = vadd.f32 %v3900, %v3836
    %v3902 = vadd.f32 %v3901, %v3837
    %v3903 = vadd.f32 %v3902, %v3838
    %v3904 = vadd.f32 %v3903, %v3839
    %v3905 = vadd.f32 %v3904, %v3840
    %v3906 = vadd.f32 %v3905, %v3841
    %v3907 = vadd.f32 %v3906, %v3842
    %v3908 = vadd.f32 %v3907, %v3843
    %v3909 = vadd.f32 %v3908, %v3844
    %v3910 = vadd.f32 %v3909, %v3845
    %v3911 = vadd.f32 %v3910, %v3846
    %v3912 = vadd.f32 %v3911, %v3847
    %v3913 = vadd.f32 %v3912, %v3848
    %v3914 = vadd.f32 %v3913, %v3849
    %v3915 = vadd.f32 %v3914, %v3850
    %v3916 = vadd.f32 %v3915, %v3851
    %v3917 = vadd.f32 %v3916, %v3852
    %v3918 = vadd.f32 %v3917, %v3853
    %v3919 = vadd.f32 %v3918, %v3854
    %v3920 = vadd.f32 %v3919, %v3855
    %v3921 = vadd.f32 %v3920, %v3856
    %v3922 = vadd.f32 %v3921, %v3857
    %v3923 = vadd.f32 %v3922, %v3858
    %v3924 = vadd.f32 %v3923, %v3859
    %v3925 = vadd.f32 %v3924, %v3860
    %v3926 = vadd.f32 %v3925, %v3861
    %v3927 = vadd.f32 %v3926, %v3862
    %v3928 = vadd.f32 %v3927, %v3863
    %v3929 = vadd.f32 %v3928, %v3864
    %v3930 = vadd.f32 %v3929, %v3865
    %v3931 = vadd.f32 %v3930, %v3866
    %v3932 = vadd.f32 %v3931, %v3867
    %v3933 = vadd.f32 %v3932, %v3868
    %v3934 = vadd.f32 %v3933, %v3869
    %v3935 = vadd.f32 %v3934, %v3870
    %v3936 = vadd.f32 %v3935, %v3871
    %v3937 = vadd.f32 %v3936, %v3872
    %v3938 = vadd.f32 %v3937, %v3873
    %v3939 = vadd.f32 %v3938, %v3874
    %v3940 = vadd.f32 %v3939, %v3875
    %v3941 = vadd.f32 %v3940, %v3876
    %v3942 = vadd.f32 %v3941, %v3877
    %v3943 = vadd.f32 %v3942, %v3878
    %v3944 = vadd.f32 %v3943, %v3879
    %v3945 = vadd.f32 %v3944, %v3880
    %v3946 = vadd.f32 %v3945, %v3881
    %v3947 = vadd.f32 %v3946, %v3882
    %v3948 = vadd.f32 %v3947, %v3883
    %v3949 = vadd.f32 %v3948, %v3884
    %v3950 = vadd.f32 %v3949, %v3885
    %v3951 = vadd.f32 %v3950, %v3886
    %v3952 = vadd.f32 %v3951, %v3887
    %v3953 = vadd.f32 %v3952, %v3888
    %v3954 = vadd.f32 %v3953, %v3889
    %v3955 = vadd.f32 %v3954, %v3890
    %v3956 = vrot.slane %v3955, 4
    %v3957 = vadd.f32 %v3955, %v3956
    %v3958 = vrot.slane %v3957, 2
    %v3959 = vadd.f32 %v3957, %v3958
    %v3960 = vrot.slane %v3959, 1
    %v3961 = vadd.f32 %v3959, %v3960
    %v3962 = vmul.f32 %v3961, %v1875
    %v3963 = vmul.f32 %v3827, %v3827
    %v3964 = vmul.f32 %v3828, %v3828
    %v3965 = vmul.f32 %v3829, %v3829
    %v3966 = vmul.f32 %v3830, %v3830
    %v3967 = vmul.f32 %v3831, %v3831
    %v3968 = vmul.f32 %v3832, %v3832
    %v3969 = vmul.f32 %v3833, %v3833
    %v3970 = vmul.f32 %v3834, %v3834
    %v3971 = vmul.f32 %v3835, %v3835
    %v3972 = vmul.f32 %v3836, %v3836
    %v3973 = vmul.f32 %v3837, %v3837
    %v3974 = vmul.f32 %v3838, %v3838
    %v3975 = vmul.f32 %v3839, %v3839
    %v3976 = vmul.f32 %v3840, %v3840
    %v3977 = vmul.f32 %v3841, %v3841
    %v3978 = vmul.f32 %v3842, %v3842
    %v3979 = vmul.f32 %v3843, %v3843
    %v3980 = vmul.f32 %v3844, %v3844
    %v3981 = vmul.f32 %v3845, %v3845
    %v3982 = vmul.f32 %v3846, %v3846
    %v3983 = vmul.f32 %v3847, %v3847
    %v3984 = vmul.f32 %v3848, %v3848
    %v3985 = vmul.f32 %v3849, %v3849
    %v3986 = vmul.f32 %v3850, %v3850
    %v3987 = vmul.f32 %v3851, %v3851
    %v3988 = vmul.f32 %v3852, %v3852
    %v3989 = vmul.f32 %v3853, %v3853
    %v3990 = vmul.f32 %v3854, %v3854
    %v3991 = vmul.f32 %v3855, %v3855
    %v3992 = vmul.f32 %v3856, %v3856
    %v3993 = vmul.f32 %v3857, %v3857
    %v3994 = vmul.f32 %v3858, %v3858
    %v3995 = vmul.f32 %v3859, %v3859
    %v3996 = vmul.f32 %v3860, %v3860
    %v3997 = vmul.f32 %v3861, %v3861
    %v3998 = vmul.f32 %v3862, %v3862
    %v3999 = vmul.f32 %v3863, %v3863
    %v4000 = vmul.f32 %v3864, %v3864
    %v4001 = vmul.f32 %v3865, %v3865
    %v4002 = vmul.f32 %v3866, %v3866
    %v4003 = vmul.f32 %v3867, %v3867
    %v4004 = vmul.f32 %v3868, %v3868
    %v4005 = vmul.f32 %v3869, %v3869
    %v4006 = vmul.f32 %v3870, %v3870
    %v4007 = vmul.f32 %v3871, %v3871
    %v4008 = vmul.f32 %v3872, %v3872
    %v4009 = vmul.f32 %v3873, %v3873
    %v4010 = vmul.f32 %v3874, %v3874
    %v4011 = vmul.f32 %v3875, %v3875
    %v4012 = vmul.f32 %v3876, %v3876
    %v4013 = vmul.f32 %v3877, %v3877
    %v4014 = vmul.f32 %v3878, %v3878
    %v4015 = vmul.f32 %v3879, %v3879
    %v4016 = vmul.f32 %v3880, %v3880
    %v4017 = vmul.f32 %v3881, %v3881
    %v4018 = vmul.f32 %v3882, %v3882
    %v4019 = vmul.f32 %v3883, %v3883
    %v4020 = vmul.f32 %v3884, %v3884
    %v4021 = vmul.f32 %v3885, %v3885
    %v4022 = vmul.f32 %v3886, %v3886
    %v4023 = vmul.f32 %v3887, %v3887
    %v4024 = vmul.f32 %v3888, %v3888
    %v4025 = vmul.f32 %v3889, %v3889
    %v4026 = vmul.f32 %v3890, %v3890
    %v4027 = vadd.f32 %v3963, %v3964
    %v4028 = vadd.f32 %v4027, %v3965
    %v4029 = vadd.f32 %v4028, %v3966
    %v4030 = vadd.f32 %v4029, %v3967
    %v4031 = vadd.f32 %v4030, %v3968
    %v4032 = vadd.f32 %v4031, %v3969
    %v4033 = vadd.f32 %v4032, %v3970
    %v4034 = vadd.f32 %v4033, %v3971
    %v4035 = vadd.f32 %v4034, %v3972
    %v4036 = vadd.f32 %v4035, %v3973
    %v4037 = vadd.f32 %v4036, %v3974
    %v4038 = vadd.f32 %v4037, %v3975
    %v4039 = vadd.f32 %v4038, %v3976
    %v4040 = vadd.f32 %v4039, %v3977
    %v4041 = vadd.f32 %v4040, %v3978
    %v4042 = vadd.f32 %v4041, %v3979
    %v4043 = vadd.f32 %v4042, %v3980
    %v4044 = vadd.f32 %v4043, %v3981
    %v4045 = vadd.f32 %v4044, %v3982
    %v4046 = vadd.f32 %v4045, %v3983
    %v4047 = vadd.f32 %v4046, %v3984
    %v4048 = vadd.f32 %v4047, %v3985
    %v4049 = vadd.f32 %v4048, %v3986
    %v4050 = vadd.f32 %v4049, %v3987
    %v4051 = vadd.f32 %v4050, %v3988
    %v4052 = vadd.f32 %v4051, %v3989
    %v4053 = vadd.f32 %v4052, %v3990
    %v4054 = vadd.f32 %v4053, %v3991
    %v4055 = vadd.f32 %v4054, %v3992
    %v4056 = vadd.f32 %v4055, %v3993
    %v4057 = vadd.f32 %v4056, %v3994
    %v4058 = vadd.f32 %v4057, %v3995
    %v4059 = vadd.f32 %v4058, %v3996
    %v4060 = vadd.f32 %v4059, %v3997
    %v4061 = vadd.f32 %v4060, %v3998
    %v4062 = vadd.f32 %v4061, %v3999
    %v4063 = vadd.f32 %v4062, %v4000
    %v4064 = vadd.f32 %v4063, %v4001
    %v4065 = vadd.f32 %v4064, %v4002
    %v4066 = vadd.f32 %v4065, %v4003
    %v4067 = vadd.f32 %v4066, %v4004
    %v4068 = vadd.f32 %v4067, %v4005
    %v4069 = vadd.f32 %v4068, %v4006
    %v4070 = vadd.f32 %v4069, %v4007
    %v4071 = vadd.f32 %v4070, %v4008
    %v4072 = vadd.f32 %v4071, %v4009
    %v4073 = vadd.f32 %v4072, %v4010
    %v4074 = vadd.f32 %v4073, %v4011
    %v4075 = vadd.f32 %v4074, %v4012
    %v4076 = vadd.f32 %v4075, %v4013
    %v4077 = vadd.f32 %v4076, %v4014
    %v4078 = vadd.f32 %v4077, %v4015
    %v4079 = vadd.f32 %v4078, %v4016
    %v4080 = vadd.f32 %v4079, %v4017
    %v4081 = vadd.f32 %v4080, %v4018
    %v4082 = vadd.f32 %v4081, %v4019
    %v4083 = vadd.f32 %v4082, %v4020
    %v4084 = vadd.f32 %v4083, %v4021
    %v4085 = vadd.f32 %v4084, %v4022
    %v4086 = vadd.f32 %v4085, %v4023
    %v4087 = vadd.f32 %v4086, %v4024
    %v4088 = vadd.f32 %v4087, %v4025
    %v4089 = vadd.f32 %v4088, %v4026
    %v4090 = vrot.slane %v4089, 4
    %v4091 = vadd.f32 %v4089, %v4090
    %v4092 = vrot.slane %v4091, 2
    %v4093 = vadd.f32 %v4091, %v4092
    %v4094 = vrot.slane %v4093, 1
    %v4095 = vadd.f32 %v4093, %v4094
    %v4096 = vmul.f32 %v4095, %v1875
    %v4097 = vmul.f32 %v3962, %v3962
    %v4098 = vsub.f32 %v4096, %v4097
    %v4099 = vadd.f32 %v4098, 1e-05
    %v4100 = vrsqrt.pop %v4099
    %v4101 = vmul.f32 %v3891, %v4100
    %v4103 = vlaneseq
    %v4104 = vshrl.u32 %v4103, 7
    %v4105 = vsub.s32 0, %v4104
    %v4106 = vrot.slane %v4101, %v4105
    %v4108 = vmul.f32 %v3827, %v4106
    %v4109 = vmul.f32 %v3828, %v4106
    %v4110 = vmul.f32 %v3829, %v4106
    %v4111 = vmul.f32 %v3830, %v4106
    %v4112 = vmul.f32 %v3831, %v4106
    %v4113 = vmul.f32 %v3832, %v4106
    %v4114 = vmul.f32 %v3833, %v4106
    %v4115 = vmul.f32 %v3834, %v4106
    %v4116 = vmul.f32 %v3835, %v4106
    %v4117 = vmul.f32 %v3836, %v4106
    %v4118 = vmul.f32 %v3837, %v4106
    %v4119 = vmul.f32 %v3838, %v4106
    %v4120 = vmul.f32 %v3839, %v4106
    %v4121 = vmul.f32 %v3840, %v4106
    %v4122 = vmul.f32 %v3841, %v4106
    %v4123 = vmul.f32 %v3842, %v4106
    %v4124 = vmul.f32 %v3843, %v4106
    %v4125 = vmul.f32 %v3844, %v4106
    %v4126 = vmul.f32 %v3845, %v4106
    %v4127 = vmul.f32 %v3846, %v4106
    %v4128 = vmul.f32 %v3847, %v4106
    %v4129 = vmul.f32 %v3848, %v4106
    %v4130 = vmul.f32 %v3849, %v4106
    %v4131 = vmul.f32 %v3850, %v4106
    %v4132 = vmul.f32 %v3851, %v4106
    %v4133 = vmul.f32 %v3852, %v4106
    %v4134 = vmul.f32 %v3853, %v4106
    %v4135 = vmul.f32 %v3854, %v4106
    %v4136 = vmul.f32 %v3855, %v4106
    %v4137 = vmul.f32 %v3856, %v4106
    %v4138 = vmul.f32 %v3857, %v4106
    %v4139 = vmul.f32 %v3858, %v4106
    %v4140 = vmul.f32 %v3859, %v4106
    %v4141 = vmul.f32 %v3860, %v4106
    %v4142 = vmul.f32 %v3861, %v4106
    %v4143 = vmul.f32 %v3862, %v4106
    %v4144 = vmul.f32 %v3863, %v4106
    %v4145 = vmul.f32 %v3864, %v4106
    %v4146 = vmul.f32 %v3865, %v4106
    %v4147 = vmul.f32 %v3866, %v4106
    %v4148 = vmul.f32 %v3867, %v4106
    %v4149 = vmul.f32 %v3868, %v4106
    %v4150 = vmul.f32 %v3869, %v4106
    %v4151 = vmul.f32 %v3870, %v4106
    %v4152 = vmul.f32 %v3871, %v4106
    %v4153 = vmul.f32 %v3872, %v4106
    %v4154 = vmul.f32 %v3873, %v4106
    %v4155 = vmul.f32 %v3874, %v4106
    %v4156 = vmul.f32 %v3875, %v4106
    %v4157 = vmul.f32 %v3876, %v4106
    %v4158 = vmul.f32 %v3877, %v4106
    %v4159 = vmul.f32 %v3878, %v4106
    %v4160 = vmul.f32 %v3879, %v4106
    %v4161 = vmul.f32 %v3880, %v4106
    %v4162 = vmul.f32 %v3881, %v4106
    %v4163 = vmul.f32 %v3882, %v4106
    %v4164 = vmul.f32 %v3883, %v4106
    %v4165 = vmul.f32 %v3884, %v4106
    %v4166 = vmul.f32 %v3885, %v4106
    %v4167 = vmul.f32 %v3886, %v4106
    %v4168 = vmul.f32 %v3887, %v4106
    %v4169 = vmul.f32 %v3888, %v4106
    %v4170 = vmul.f32 %v3889, %v4106
    %v4171 = vmul.f32 %v3890, %v4106
    %v4172 = vmul.f32 %v3962, %v4101
    %v4173 = vsub.f32 %v3892, %v4172
    %v4175 = vlaneseq
    %v4176 = vshrl.u32 %v4175, 7
    %v4177 = vsub.s32 0, %v4176
    %v4178 = vrot.slane %v4173, %v4177
    %v4180 = vadd.f32 %v4108, %v4178
    %v4181 = vadd.f32 %v4109, %v4178
    %v4182 = vadd.f32 %v4110, %v4178
    %v4183 = vadd.f32 %v4111, %v4178
    %v4184 = vadd.f32 %v4112, %v4178
    %v4185 = vadd.f32 %v4113, %v4178
    %v4186 = vadd.f32 %v4114, %v4178
    %v4187 = vadd.f32 %v4115, %v4178
    %v4188 = vadd.f32 %v4116, %v4178
    %v4189 = vadd.f32 %v4117, %v4178
    %v4190 = vadd.f32 %v4118, %v4178
    %v4191 = vadd.f32 %v4119, %v4178
    %v4192 = vadd.f32 %v4120, %v4178
    %v4193 = vadd.f32 %v4121, %v4178
    %v4194 = vadd.f32 %v4122, %v4178
    %v4195 = vadd.f32 %v4123, %v4178
    %v4196 = vadd.f32 %v4124, %v4178
    %v4197 = vadd.f32 %v4125, %v4178
    %v4198 = vadd.f32 %v4126, %v4178
    %v4199 = vadd.f32 %v4127, %v4178
    %v4200 = vadd.f32 %v4128, %v4178
    %v4201 = vadd.f32 %v4129, %v4178
    %v4202 = vadd.f32 %v4130, %v4178
    %v4203 = vadd.f32 %v4131, %v4178
    %v4204 = vadd.f32 %v4132, %v4178
    %v4205 = vadd.f32 %v4133, %v4178
    %v4206 = vadd.f32 %v4134, %v4178
    %v4207 = vadd.f32 %v4135, %v4178
    %v4208 = vadd.f32 %v4136, %v4178
    %v4209 = vadd.f32 %v4137, %v4178
    %v4210 = vadd.f32 %v4138, %v4178
    %v4211 = vadd.f32 %v4139, %v4178
    %v4212 = vadd.f32 %v4140, %v4178
    %v4213 = vadd.f32 %v4141, %v4178
    %v4214 = vadd.f32 %v4142, %v4178
    %v4215 = vadd.f32 %v4143, %v4178
    %v4216 = vadd.f32 %v4144, %v4178
    %v4217 = vadd.f32 %v4145, %v4178
    %v4218 = vadd.f32 %v4146, %v4178
    %v4219 = vadd.f32 %v4147, %v4178
    %v4220 = vadd.f32 %v4148, %v4178
    %v4221 = vadd.f32 %v4149, %v4178
    %v4222 = vadd.f32 %v4150, %v4178
    %v4223 = vadd.f32 %v4151, %v4178
    %v4224 = vadd.f32 %v4152, %v4178
    %v4225 = vadd.f32 %v4153, %v4178
    %v4226 = vadd.f32 %v4154, %v4178
    %v4227 = vadd.f32 %v4155, %v4178
    %v4228 = vadd.f32 %v4156, %v4178
    %v4229 = vadd.f32 %v4157, %v4178
    %v4230 = vadd.f32 %v4158, %v4178
    %v4231 = vadd.f32 %v4159, %v4178
    %v4232 = vadd.f32 %v4160, %v4178
    %v4233 = vadd.f32 %v4161, %v4178
    %v4234 = vadd.f32 %v4162, %v4178
    %v4235 = vadd.f32 %v4163, %v4178
    %v4236 = vadd.f32 %v4164, %v4178
    %v4237 = vadd.f32 %v4165, %v4178
    %v4238 = vadd.f32 %v4166, %v4178
    %v4239 = vadd.f32 %v4167, %v4178
    %v4240 = vadd.f32 %v4168, %v4178
    %v4241 = vadd.f32 %v4169, %v4178
    %v4242 = vadd.f32 %v4170, %v4178
    %v4243 = vadd.f32 %v4171, %v4178
    %v4244 = vadd.f32 %v4180, %v69
    %v4245 = vadd.f32 %v4181, %v70
    %v4246 = vadd.f32 %v4182, %v71
    %v4247 = vadd.f32 %v4183, %v72
    %v4248 = vadd.f32 %v4184, %v73
    %v4249 = vadd.f32 %v4185, %v74
    %v4250 = vadd.f32 %v4186, %v75
    %v4251 = vadd.f32 %v4187, %v76
    %v4252 = vadd.f32 %v4188, %v77
    %v4253 = vadd.f32 %v4189, %v78
    %v4254 = vadd.f32 %v4190, %v79
    %v4255 = vadd.f32 %v4191, %v80
    %v4256 = vadd.f32 %v4192, %v81
    %v4257 = vadd.f32 %v4193, %v82
    %v4258 = vadd.f32 %v4194, %v83
    %v4259 = vadd.f32 %v4195, %v84
    %v4260 = vadd.f32 %v4196, %v85
    %v4261 = vadd.f32 %v4197, %v86
    %v4262 = vadd.f32 %v4198, %v87
    %v4263 = vadd.f32 %v4199, %v88
    %v4264 = vadd.f32 %v4200, %v89
    %v4265 = vadd.f32 %v4201, %v90
    %v4266 = vadd.f32 %v4202, %v91
    %v4267 = vadd.f32 %v4203, %v92
    %v4268 = vadd.f32 %v4204, %v93
    %v4269 = vadd.f32 %v4205, %v94
    %v4270 = vadd.f32 %v4206, %v95
    %v4271 = vadd.f32 %v4207, %v96
    %v4272 = vadd.f32 %v4208, %v97
    %v4273 = vadd.f32 %v4209, %v98
    %v4274 = vadd.f32 %v4210, %v99
    %v4275 = vadd.f32 %v4211, %v100
    %v4276 = vadd.f32 %v4212, %v101
    %v4277 = vadd.f32 %v4213, %v102
    %v4278 = vadd.f32 %v4214, %v103
    %v4279 = vadd.f32 %v4215, %v104
    %v4280 = vadd.f32 %v4216, %v105
    %v4281 = vadd.f32 %v4217, %v106
    %v4282 = vadd.f32 %v4218, %v107
    %v4283 = vadd.f32 %v4219, %v108
    %v4284 = vadd.f32 %v4220, %v109
    %v4285 = vadd.f32 %v4221, %v110
    %v4286 = vadd.f32 %v4222, %v111
    %v4287 = vadd.f32 %v4223, %v112
    %v4288 = vadd.f32 %v4224, %v113
    %v4289 = vadd.f32 %v4225, %v114
    %v4290 = vadd.f32 %v4226, %v115
    %v4291 = vadd.f32 %v4227, %v116
    %v4292 = vadd.f32 %v4228, %v117
    %v4293 = vadd.f32 %v4229, %v118
    %v4294 = vadd.f32 %v4230, %v119
    %v4295 = vadd.f32 %v4231, %v120
    %v4296 = vadd.f32 %v4232, %v121
    %v4297 = vadd.f32 %v4233, %v122
    %v4298 = vadd.f32 %v4234, %v123
    %v4299 = vadd.f32 %v4235, %v124
    %v4300 = vadd.f32 %v4236, %v125
    %v4301 = vadd.f32 %v4237, %v126
    %v4302 = vadd.f32 %v4238, %v127
    %v4303 = vadd.f32 %v4239, %v128
    %v4304 = vadd.f32 %v4240, %v129
    %v4305 = vadd.f32 %v4241, %v130
    %v4306 = vadd.f32 %v4242, %v131
    %v4307 = vadd.f32 %v4243, %v132
    %v4308 = vmax.f32 %v4244, 0.0
    %v4309 = vmax.f32 %v4245, 0.0
    %v4310 = vmax.f32 %v4246, 0.0
    %v4311 = vmax.f32 %v4247, 0.0
    %v4312 = vmax.f32 %v4248, 0.0
    %v4313 = vmax.f32 %v4249, 0.0
    %v4314 = vmax.f32 %v4250, 0.0
    %v4315 = vmax.f32 %v4251, 0.0
    %v4316 = vmax.f32 %v4252, 0.0
    %v4317 = vmax.f32 %v4253, 0.0
    %v4318 = vmax.f32 %v4254, 0.0
    %v4319 = vmax.f32 %v4255, 0.0
    %v4320 = vmax.f32 %v4256, 0.0
    %v4321 = vmax.f32 %v4257, 0.0
    %v4322 = vmax.f32 %v4258, 0.0
    %v4323 = vmax.f32 %v4259, 0.0
    %v4324 = vmax.f32 %v4260, 0.0
    %v4325 = vmax.f32 %v4261, 0.0
    %v4326 = vmax.f32 %v4262, 0.0
    %v4327 = vmax.f32 %v4263, 0.0
    %v4328 = vmax.f32 %v4264, 0.0
    %v4329 = vmax.f32 %v4265, 0.0
    %v4330 = vmax.f32 %v4266, 0.0
    %v4331 = vmax.f32 %v4267, 0.0
    %v4332 = vmax.f32 %v4268, 0.0
    %v4333 = vmax.f32 %v4269, 0.0
    %v4334 = vmax.f32 %v4270, 0.0
    %v4335 = vmax.f32 %v4271, 0.0
    %v4336 = vmax.f32 %v4272, 0.0
    %v4337 = vmax.f32 %v4273, 0.0
    %v4338 = vmax.f32 %v4274, 0.0
    %v4339 = vmax.f32 %v4275, 0.0
    %v4340 = vmax.f32 %v4276, 0.0
    %v4341 = vmax.f32 %v4277, 0.0
    %v4342 = vmax.f32 %v4278, 0.0
    %v4343 = vmax.f32 %v4279, 0.0
    %v4344 = vmax.f32 %v4280, 0.0
    %v4345 = vmax.f32 %v4281, 0.0
    %v4346 = vmax.f32 %v4282, 0.0
    %v4347 = vmax.f32 %v4283, 0.0
    %v4348 = vmax.f32 %v4284, 0.0
    %v4349 = vmax.f32 %v4285, 0.0
    %v4350 = vmax.f32 %v4286, 0.0
    %v4351 = vmax.f32 %v4287, 0.0
    %v4352 = vmax.f32 %v4288, 0.0
    %v4353 = vmax.f32 %v4289, 0.0
    %v4354 = vmax.f32 %v4290, 0.0
    %v4355 = vmax.f32 %v4291, 0.0
    %v4356 = vmax.f32 %v4292, 0.0
    %v4357 = vmax.f32 %v4293, 0.0
    %v4358 = vmax.f32 %v4294, 0.0
    %v4359 = vmax.f32 %v4295, 0.0
    %v4360 = vmax.f32 %v4296, 0.0
    %v4361 = vmax.f32 %v4297, 0.0
    %v4362 = vmax.f32 %v4298, 0.0
    %v4363 = vmax.f32 %v4299, 0.0
    %v4364 = vmax.f32 %v4300, 0.0
    %v4365 = vmax.f32 %v4301, 0.0
    %v4366 = vmax.f32 %v4302, 0.0
    %v4367 = vmax.f32 %v4303, 0.0
    %v4368 = vmax.f32 %v4304, 0.0
    %v4369 = vmax.f32 %v4305, 0.0
    %v4370 = vmax.f32 %v4306, 0.0
    %v4371 = vmax.f32 %v4307, 0.0
    %4372 = vst [vmem:[#allocation8] sm:$0xff] %v4308
    %4373 = vst [vmem:[#allocation8 + $0x8] sm:$0xff] %v4309
    %4374 = vst [vmem:[#allocation8 + $0x10] sm:$0xff] %v4310
    %4375 = vst [vmem:[#allocation8 + $0x18] sm:$0xff] %v4311
    %4376 = vst [vmem:[#allocation8 + $0x20] sm:$0xff] %v4312
    %4377 = vst [vmem:[#allocation8 + $0x28] sm:$0xff] %v4313
    %4378 = vst [vmem:[#allocation8 + $0x30] sm:$0xff] %v4314
    %4379 = vst [vmem:[#allocation8 + $0x38] sm:$0xff] %v4315
    %4380 = vst [vmem:[#allocation8 + $0x40] sm:$0xff] %v4316
    %4381 = vst [vmem:[#allocation8 + $0x48] sm:$0xff] %v4317
    %4382 = vst [vmem:[#allocation8 + $0x50] sm:$0xff] %v4318
    %4383 = vst [vmem:[#allocation8 + $0x58] sm:$0xff] %v4319
    %4384 = vst [vmem:[#allocation8 + $0x60] sm:$0xff] %v4320
    %4385 = vst [vmem:[#allocation8 + $0x68] sm:$0xff] %v4321
    %4386 = vst [vmem:[#allocation8 + $0x70] sm:$0xff] %v4322
    %4387 = vst [vmem:[#allocation8 + $0x78] sm:$0xff] %v4323
    %4388 = vst [vmem:[#allocation8 + $0x80] sm:$0xff] %v4324
    %4389 = vst [vmem:[#allocation8 + $0x88] sm:$0xff] %v4325
    %4390 = vst [vmem:[#allocation8 + $0x90] sm:$0xff] %v4326
    %4391 = vst [vmem:[#allocation8 + $0x98] sm:$0xff] %v4327
    %4392 = vst [vmem:[#allocation8 + $0xa0] sm:$0xff] %v4328
    %4393 = vst [vmem:[#allocation8 + $0xa8] sm:$0xff] %v4329
    %4394 = vst [vmem:[#allocation8 + $0xb0] sm:$0xff] %v4330
    %4395 = vst [vmem:[#allocation8 + $0xb8] sm:$0xff] %v4331
    %4396 = vst [vmem:[#allocation8 + $0xc0] sm:$0xff] %v4332
    %4397 = vst [vmem:[#allocation8 + $0xc8] sm:$0xff] %v4333
    %4398 = vst [vmem:[#allocation8 + $0xd0] sm:$0xff] %v4334
    %4399 = vst [vmem:[#allocation8 + $0xd8] sm:$0xff] %v4335
    %4400 = vst [vmem:[#allocation8 + $0xe0] sm:$0xff] %v4336
    %4401 = vst [vmem:[#allocation8 + $0xe8] sm:$0xff] %v4337
    %4402 = vst [vmem:[#allocation8 + $0xf0] sm:$0xff] %v4338
    %4403 = vst [vmem:[#allocation8 + $0xf8] sm:$0xff] %v4339
    %4404 = vst [vmem:[#allocation8 + $0x100] sm:$0xff] %v4340
    %4405 = vst [vmem:[#allocation8 + $0x108] sm:$0xff] %v4341
    %4406 = vst [vmem:[#allocation8 + $0x110] sm:$0xff] %v4342
    %4407 = vst [vmem:[#allocation8 + $0x118] sm:$0xff] %v4343
    %4408 = vst [vmem:[#allocation8 + $0x120] sm:$0xff] %v4344
    %4409 = vst [vmem:[#allocation8 + $0x128] sm:$0xff] %v4345
    %4410 = vst [vmem:[#allocation8 + $0x130] sm:$0xff] %v4346
    %4411 = vst [vmem:[#allocation8 + $0x138] sm:$0xff] %v4347
    %4412 = vst [vmem:[#allocation8 + $0x140] sm:$0xff] %v4348
    %4413 = vst [vmem:[#allocation8 + $0x148] sm:$0xff] %v4349
    %4414 = vst [vmem:[#allocation8 + $0x150] sm:$0xff] %v4350
    %4415 = vst [vmem:[#allocation8 + $0x158] sm:$0xff] %v4351
    %4416 = vst [vmem:[#allocation8 + $0x160] sm:$0xff] %v4352
    %4417 = vst [vmem:[#allocation8 + $0x168] sm:$0xff] %v4353
    %4418 = vst [vmem:[#allocation8 + $0x170] sm:$0xff] %v4354
    %4419 = vst [vmem:[#allocation8 + $0x178] sm:$0xff] %v4355
    %4420 = vst [vmem:[#allocation8 + $0x180] sm:$0xff] %v4356
    %4421 = vst [vmem:[#allocation8 + $0x188] sm:$0xff] %v4357
    %4422 = vst [vmem:[#allocation8 + $0x190] sm:$0xff] %v4358
    %4423 = vst [vmem:[#allocation8 + $0x198] sm:$0xff] %v4359
    %4424 = vst [vmem:[#allocation8 + $0x1a0] sm:$0xff] %v4360
    %4425 = vst [vmem:[#allocation8 + $0x1a8] sm:$0xff] %v4361
    %4426 = vst [vmem:[#allocation8 + $0x1b0] sm:$0xff] %v4362
    %4427 = vst [vmem:[#allocation8 + $0x1b8] sm:$0xff] %v4363
    %4428 = vst [vmem:[#allocation8 + $0x1c0] sm:$0xff] %v4364
    %4429 = vst [vmem:[#allocation8 + $0x1c8] sm:$0xff] %v4365
    %4430 = vst [vmem:[#allocation8 + $0x1d0] sm:$0xff] %v4366
    %4431 = vst [vmem:[#allocation8 + $0x1d8] sm:$0xff] %v4367
    %4432 = vst [vmem:[#allocation8 + $0x1e0] sm:$0xff] %v4368
    %4433 = vst [vmem:[#allocation8 + $0x1e8] sm:$0xff] %v4369
    %4434 = vst [vmem:[#allocation8 + $0x1f0] sm:$0xff] %v4370
    %4435 = vst [vmem:[#allocation8 + $0x1f8] sm:$0xff] %v4371
    // Predicated region
    $region42: #{tpu_custom_call.1} parent=1 // pred_check
      _
    $region43: #{tpu_custom_call.1} parent=1 // pred_check_branch
      %4437 = sbr.rel (0) target = $region45
    $region44: #{tpu_custom_call.1} parent=1 // pred_region
      %s4439 = ssub.s32 8192, 8192
      %4440 = vsyncadd [#allocation4], %s4439
      %s4441 = sshll.u32 [#allocation8], 4
      %s4442 = int_to_ptr.vmem [resolvable:$true] %s4441
      %4447 = dma.vmem_to_hbm [thread:$0]  %s4442, 8192, %s7, [#allocation4], 128, 128, 8
    $region45: #{tpu_custom_call.1} parent=1 // pred_fallthru
      _
    // Predicated region
    $region46: #{tpu_custom_call.1} parent=1 // pred_check
      _
    $region47: #{tpu_custom_call.1} parent=1 // pred_check_branch
      %4449 = sbr.rel (0) target = $region49
    $region48: #{tpu_custom_call.1} parent=1 // pred_region
      %4450 = dma.done [#allocation4], 8192
    $region49: #{tpu_custom_call.1} parent=1 // pred_fallthru
      _
    %4451 = vsyncpa [#allocation3], 1
    %4452 = vsyncpa [#allocation6], 1
    %4453 = vsyncpa [#allocation4], 1

</llo_original>
